<compile_context>
chip_gen: v7x
topology: tpu7x:2x2x1
jax: 0.10.0
libtpu: 0.0.40
codegen_flags: <defaults>
</compile_context>

<pallas_src>
import jax
import jax.numpy as jnp
from jax import lax
from jax.experimental import pallas as pl
from jax.experimental.pallas import tpu as pltpu

# Model hyper-parameters (mirroring the PyTorch script; vocab is synthetic).
EMBEDDING_DIM = 50
N_HIDDEN = 5
NUM_CLASSES = 2
VOCAB_SIZE = 16
GATE_PAD = 128   # lanes reserved per gate -> vreg-aligned gate slices


# ----------------------------------------------------------------------------
# Fused kernel: BiLSTM (fwd+bwd fused per step) + attention + output Linear
# ----------------------------------------------------------------------------
def _fused_bilstm_attention_kernel(x_ref, win_ref, b_ref, whh_ref,
                                   selh_ref, perm_ref, wout_ref, bout_ref,
                                   logits_ref, attn_ref,
                                   gin_ref, out_ref):
    """Inputs:
      x_ref    [T*2B, 2E]    stacked time-major inputs: per step s, rows
                             0..B-1 = [x_{t=s}, 0], rows B..2B-1 = [0, x_{T-1-s}]
      win_ref  [2E, 4*GP]    stacked input-proj weights (fwd rows, then bwd rows),
                             gate-padded (zeros beyond H per gate)
      b_ref    [2B, 4*GP]    (b_ih + b_hh), fwd rows then bwd rows, gate-padded
      whh_ref  [2*GP, 4*GP]  block-stacked recurrent weights (fwd block, bwd block)
      selh_ref [2B, 2B]      selector reproducing torch `.view(-1, 2H)` hidden
      perm_ref [2BT, 2BT]    descramble: step-major stacked rows -> [F(b,t); Bo(b,t)]
      wout_ref [2*GP, C]     output Linear weights (fwd half rows, bwd half rows)
      bout_ref [1, C]
    Outputs:
      logits_ref [B, C], attn_ref [B, T]
    Scratch (VMEM only, never written to HBM):
      gin_ref  [T*2B, 4*GP]  hoisted input projection
      out_ref  [T*2B, GP]    stacked per-step hidden states
    """
    B2, G4 = b_ref.shape            # 2B, 4*GP
    B = B2 // 2
    GP = out_ref.shape[1]
    T = out_ref.shape[0] // B2
    BT = B * T

    # ---- hoisted input projection: one MXU pass, all timesteps, both dirs.
    gin_ref[...] = jnp.dot(x_ref[...], win_ref[...],
                           preferred_element_type=jnp.float32)

    whh = whh_ref[...]              # [2*GP, 4*GP], loop-invariant
    bias = b_ref[...]               # [2B, 4*GP],   loop-invariant

    # Loop-invariant row mask for building the block-diagonal LHS.
    row = lax.broadcasted_iota(jnp.int32, (B2, 1), 0)
    mask_f = (row < B).astype(jnp.float32)          # rows 0..B-1 -> fwd
    mask_b = 1.0 - mask_f                           # rows B..2B-1 -> bwd

    h = jnp.zeros((B2, GP), jnp.float32)
    c = jnp.zeros((B2, GP), jnp.float32)

    # ---- fused fwd/bwd recurrence, statically unrolled (T small & fixed).
    for s in range(T):
        gin_s = gin_ref[s * B2:(s + 1) * B2, :]                     # [2B, 4*GP]
        # LHS [2B, 2*GP]: fwd rows live in lanes [0,GP), bwd rows in [GP,2GP).
        lhs = jnp.concatenate([h * mask_f, h * mask_b], axis=1)
        pre = gin_s + bias + jnp.dot(lhs, whh,
                                     preferred_element_type=jnp.float32)
        # PyTorch gate order i, f, g, o; each slice is a full 128-lane block.
        i = jax.nn.sigmoid(pre[:, 0 * GP:1 * GP])
        f = jax.nn.sigmoid(pre[:, 1 * GP:2 * GP])
        g = jnp.tanh(pre[:, 2 * GP:3 * GP])
        o = jax.nn.sigmoid(pre[:, 3 * GP:4 * GP])
        c = f * c + i * g                 # padded lanes stay exactly 0
        h = o * jnp.tanh(c)
        out_ref[s * B2:(s + 1) * B2, :] = h         # one dense store per step

    # ---- attention ----------------------------------------------------------
    # Faithfully reproduce torch `final_hidden_state.view(-1, 2H)` via a
    # precomputed row selector (rows 0..B-1 -> even blocks, B..2B-1 -> odd).
    hs = jnp.dot(selh_ref[...], h, preferred_element_type=jnp.float32)  # [2B, GP]
    hfp = hs[:B, :]        # dots against the fwd half of lstm_output
    hbp = hs[B:, :]        # dots against the bwd half

    # Descramble step-major stacked hidden states into time-ordered fwd / bwd.
    fb = jnp.dot(perm_ref[...], out_ref[...],
                 preferred_element_type=jnp.float32)                    # [2BT, GP]
    F = fb[:BT, :].reshape(B, T, GP)     # fwd hidden at (b, t)
    Bo = fb[BT:, :].reshape(B, T, GP)    # bwd hidden at (b, t)

    # scores[b, t] = <lstm_output[b, t, :], hidden[b, :]> (padded lanes are 0)
    scores = jnp.sum(F * hfp[:, None, :] + Bo * hbp[:, None, :], axis=-1)  # [B,T]

    # softmax over time (dim=1 in PyTorch) — exact (no approx reciprocal)
    scores = scores - jnp.max(scores, axis=1, keepdims=True)
    e = jnp.exp(scores)
    soft = e / jnp.sum(e, axis=1, keepdims=True)                           # [B,T]

    # context = sum_t soft[b, t] * lstm_output[b, t, :]
    ctx_f = jnp.sum(F * soft[:, :, None], axis=1)     # [B, GP]
    ctx_b = jnp.sum(Bo * soft[:, :, None], axis=1)    # [B, GP]
    ctx = jnp.concatenate([ctx_f, ctx_b], axis=1)     # [B, 2*GP]

    logits_ref[...] = (jnp.dot(ctx, wout_ref[...],
                               preferred_element_type=jnp.float32)
                       + bout_ref[...])
    attn_ref[...] = soft


# ----------------------------------------------------------------------------
# Weight layout helpers (plain JAX glue, outside the kernel)
# ----------------------------------------------------------------------------
def _split_pad_gates(w_t, H, GP):
    """w_t: [K, 4H] with gate order (i, f, g, o) along the columns.
    Returns [K, 4*GP] with gate g occupying lanes [g*GP, g*GP + H)."""
    blocks = [jnp.pad(w_t[:, g * H:(g + 1) * H], ((0, 0), (0, GP - H)))
              for g in range(4)]
    return jnp.concatenate(blocks, axis=1)


# ----------------------------------------------------------------------------
# Parameters (deterministic synthetic init, PyTorch-like shapes)
# ----------------------------------------------------------------------------
def init_params(key):
    ks = jax.random.split(key, 11)
    k_lstm = 1.0 / jnp.sqrt(jnp.float32(N_HIDDEN))
    k_lin = 1.0 / jnp.sqrt(jnp.float32(2 * N_HIDDEN))

    def u(k, shape, bound):
        return jax.random.uniform(k, shape, jnp.float32, -bound, bound)

    return {
        "embedding": jax.random.normal(ks[0], (VOCAB_SIZE, EMBEDDING_DIM),
                                       jnp.float32),
        "w_ih_f": u(ks[1], (4 * N_HIDDEN, EMBEDDING_DIM), k_lstm),
        "w_hh_f": u(ks[2], (4 * N_HIDDEN, N_HIDDEN), k_lstm),
        "b_ih_f": u(ks[3], (4 * N_HIDDEN,), k_lstm),
        "b_hh_f": u(ks[4], (4 * N_HIDDEN,), k_lstm),
        "w_ih_b": u(ks[5], (4 * N_HIDDEN, EMBEDDING_DIM), k_lstm),
        "w_hh_b": u(ks[6], (4 * N_HIDDEN, N_HIDDEN), k_lstm),
        "b_ih_b": u(ks[7], (4 * N_HIDDEN,), k_lstm),
        "b_hh_b": u(ks[8], (4 * N_HIDDEN,), k_lstm),
        "w_out": u(ks[9], (NUM_CLASSES, 2 * N_HIDDEN), k_lin),
        "b_out": u(ks[10], (NUM_CLASSES,), k_lin),
    }


# ----------------------------------------------------------------------------
# Forward pass (single fused Pallas kernel)
# ----------------------------------------------------------------------------
def bilstm_attention_forward(params, x_ids):
    B, T = x_ids.shape
    H, E, C, GP = N_HIDDEN, EMBEDDING_DIM, NUM_CLASSES, GATE_PAD
    B2 = 2 * B

    # nn.Embedding lookup (data-dependent gather stays in plain JAX), then
    # build the stacked time-major input: per step s, fwd rows carry x_t=s in
    # the first E features, bwd rows carry x_{T-1-s} in the last E features.
    emb = params["embedding"][x_ids]                       # [B, T, E]
    emb_tm = jnp.transpose(emb, (1, 0, 2))                 # [T, B, E]
    zeros_e = jnp.zeros_like(emb_tm)
    fwd_rows = jnp.concatenate([emb_tm, zeros_e], axis=-1)          # [T, B, 2E]
    bwd_rows = jnp.concatenate([zeros_e, emb_tm[::-1]], axis=-1)    # [T, B, 2E]
    x_stacked = jnp.concatenate([fwd_rows, bwd_rows], axis=1)       # [T, 2B, 2E]
    x_stacked = x_stacked.reshape(T * B2, 2 * E)

    # Lane-aligned, K-stacked weight layout (zeros in all padded positions —
    # this exactness is what keeps the padded lanes of c/h at 0 in-kernel).
    w_in = jnp.concatenate(
        [_split_pad_gates(params["w_ih_f"].T, H, GP),
         _split_pad_gates(params["w_ih_b"].T, H, GP)], axis=0)      # [2E, 4*GP]
    bf = _split_pad_gates((params["b_ih_f"] + params["b_hh_f"]).reshape(1, 4 * H),
                          H, GP)
    bb = _split_pad_gates((params["b_ih_b"] + params["b_hh_b"]).reshape(1, 4 * H),
                          H, GP)
    bias = jnp.concatenate([jnp.tile(bf, (B, 1)), jnp.tile(bb, (B, 1))],
                           axis=0)                                   # [2B, 4*GP]
    whf = jnp.pad(_split_pad_gates(params["w_hh_f"].T, H, GP),
                  ((0, GP - H), (0, 0)))                             # [GP, 4*GP]
    whb = jnp.pad(_split_pad_gates(params["w_hh_b"].T, H, GP),
                  ((0, GP - H), (0, 0)))
    whh = jnp.concatenate([whf, whb], axis=0)                        # [2*GP, 4*GP]
    w_out = jnp.concatenate(
        [jnp.pad(params["w_out"][:, :H].T, ((0, GP - H), (0, 0))),
         jnp.pad(params["w_out"][:, H:].T, ((0, GP - H), (0, 0)))],
        axis=0)                                                      # [2*GP, C]
    b_out = params["b_out"].reshape(1, C)

    # Precomputed epilogue selectors (no in-kernel iota / compare work).
    # torch `.view(-1, 2H)`: hidden row r = (flat block 2r, flat block 2r+1)
    # and flat block k equals row k of the stacked final state.
    r = jnp.arange(B2)
    sel_h = jax.nn.one_hot(jnp.where(r < B, 2 * r, 2 * (r - B) + 1), B2,
                           dtype=jnp.float32)                        # [2B, 2B]
    # Descramble: step-major stacked rows -> [fwd(b,t) ; bwd(b,t)] time-ordered.
    o = jnp.arange(2 * B * T)
    b_idx = (o % (B * T)) // T
    t_idx = o % T
    src = jnp.where(o < B * T,
                    t_idx * B2 + b_idx,                 # fwd at time t
                    (T - 1 - t_idx) * B2 + B + b_idx)   # bwd at time t
    perm = jax.nn.one_hot(src, T * B2, dtype=jnp.float32)            # [2BT, 2BT]

    vmem = pl.BlockSpec(memory_space=pltpu.MemorySpace.VMEM)

    logits, attention = pl.pallas_call(
        _fused_bilstm_attention_kernel,
        out_shape=(jax.ShapeDtypeStruct((B, C), jnp.float32),
                   jax.ShapeDtypeStruct((B, T), jnp.float32)),
        in_specs=[vmem] * 8,
        out_specs=(vmem, vmem),
        scratch_shapes=[
            pltpu.VMEM((T * B2, 4 * GP), jnp.float32),   # hoisted gate inputs
            pltpu.VMEM((T * B2, GP), jnp.float32),       # stacked hidden states
        ],
    )(x_stacked, w_in, bias, whh, sel_h, perm, w_out, b_out)
    return logits, attention


# ----------------------------------------------------------------------------
# Pure-JAX reference (for correctness check)
# ----------------------------------------------------------------------------
def reference_forward(params, x_ids):
    H = N_HIDDEN
    B = x_ids.shape[0]
    emb = params["embedding"][x_ids]
    emb = jnp.transpose(emb, (1, 0, 2))           # [T, B, E]

    def run_dir(x_seq, w_ih, w_hh, b):
        def step(carry, x):
            h, c = carry
            gates = x @ w_ih.T + h @ w_hh.T + b
            i = jax.nn.sigmoid(gates[:, 0 * H:1 * H])
            f = jax.nn.sigmoid(gates[:, 1 * H:2 * H])
            g = jnp.tanh(gates[:, 2 * H:3 * H])
            o = jax.nn.sigmoid(gates[:, 3 * H:4 * H])
            c = f * c + i * g
            h = o * jnp.tanh(c)
            return (h, c), h
        init = (jnp.zeros((B, H), jnp.float32), jnp.zeros((B, H), jnp.float32))
        (h, _), ys = lax.scan(step, init, x_seq)
        return ys, h

    bf = params["b_ih_f"] + params["b_hh_f"]
    bb = params["b_ih_b"] + params["b_hh_b"]
    out_f, hf = run_dir(emb, params["w_ih_f"], params["w_hh_f"], bf)
    out_b_rev, hb = run_dir(emb[::-1], params["w_ih_b"], params["w_hh_b"], bb)
    out_b = out_b_rev[::-1]

    output = jnp.concatenate([out_f, out_b], axis=-1).transpose(1, 0, 2)
    final = jnp.stack([hf, hb], axis=0)           # [2, B, H]
    hidden = final.reshape(-1, 2 * H)             # torch .view semantics (buggy)
    scores = jnp.einsum('bth,bh->bt', output, hidden)
    soft = jax.nn.softmax(scores, axis=1)
    context = jnp.einsum('bth,bt->bh', output, soft)
    logits = context @ params["w_out"].T + params["b_out"]
    return logits, soft


# ----------------------------------------------------------------------------
if __name__ == "__main__":
    key = jax.random.PRNGKey(0)
    pkey, xkey = jax.random.split(key)
    params = init_params(pkey)

    B, T = 2, 8
    x_ids = jax.random.randint(xkey, (B, T), 0, VOCAB_SIZE, dtype=jnp.int32)

    logits, attention = jax.jit(bilstm_attention_forward)(params, x_ids)
    jax.block_until_ready((logits, attention))

    ref_logits, ref_attn = reference_forward(params, x_ids)
    assert logits.shape == (B, NUM_CLASSES) and attention.shape == (B, T)
    assert jnp.allclose(logits, ref_logits, atol=1e-4, rtol=1e-4)
    assert jnp.allclose(attention, ref_attn, atol=1e-4, rtol=1e-4)

    print("KERNEL_OK")
</pallas_src>

<mosaic_0001>
module attributes {stable_mosaic.version = 11 : i64} {
  func.func @_fused_bilstm_attention_kernel(%arg0: memref<32x100xf32, #tpu.memory_space<vmem>>, %arg1: memref<100x512xf32, #tpu.memory_space<vmem>>, %arg2: memref<4x512xf32, #tpu.memory_space<vmem>>, %arg3: memref<256x512xf32, #tpu.memory_space<vmem>>, %arg4: memref<4x4xf32, #tpu.memory_space<vmem>>, %arg5: memref<32x32xf32, #tpu.memory_space<vmem>>, %arg6: memref<256x2xf32, #tpu.memory_space<vmem>>, %arg7: memref<1x2xf32, #tpu.memory_space<vmem>>, %arg8: memref<2x2xf32, #tpu.memory_space<vmem>>, %arg9: memref<2x8xf32, #tpu.memory_space<vmem>>, %arg10: memref<32x512xf32, #tpu.memory_space<vmem>>, %arg11: memref<32x128xf32, #tpu.memory_space<vmem>>) attributes {dimension_semantics = [], scalar_prefetch = 0 : i64, scratch_operands = 2 : i64, tpu.core_type = #tpu.core_type<tc>} {
    %c0 = arith.constant 0 : index
    %c0_0 = arith.constant 0 : index
    %0 = vector.load %arg0[%c0, %c0_0] : memref<32x100xf32, #tpu.memory_space<vmem>>, vector<32x100xf32>
    %c0_1 = arith.constant 0 : index
    %c0_2 = arith.constant 0 : index
    %1 = vector.load %arg1[%c0_1, %c0_2] : memref<100x512xf32, #tpu.memory_space<vmem>>, vector<100x512xf32>
    %cst = arith.constant dense<0.000000e+00> : vector<32x512xf32>
    %2 = tpu.matmul %0, %1, %cst {dimension_numbers = #tpu.dot_dimension_numbers<[1], [0], [0], [1], [0, 0, 1, 1], [], []>} : vector<32x100xf32>, vector<100x512xf32>, vector<32x512xf32> -> vector<32x512xf32>
    %c0_3 = arith.constant 0 : index
    %c0_4 = arith.constant 0 : index
    %3 = vector.load %arg10[%c0_3, %c0_4] : memref<32x512xf32, #tpu.memory_space<vmem>>, vector<32x512xf32>
    tpu.vector_store %arg10[%c0_3, %c0_4], %2 {strides = array<i32>} : memref<32x512xf32, #tpu.memory_space<vmem>>, vector<32x512xf32>,
    %c0_5 = arith.constant 0 : index
    %c0_6 = arith.constant 0 : index
    %4 = vector.load %arg3[%c0_5, %c0_6] : memref<256x512xf32, #tpu.memory_space<vmem>>, vector<256x512xf32>
    %c0_7 = arith.constant 0 : index
    %c0_8 = arith.constant 0 : index
    %5 = vector.load %arg2[%c0_7, %c0_8] : memref<4x512xf32, #tpu.memory_space<vmem>>, vector<4x512xf32>
    %6 = tpu.iota {dimensions = array<i32: 0>} : vector<4x1xi32>
    %c2_i32 = arith.constant 2 : i32
    %7 = vector.broadcast %c2_i32 : i32 to vector<4x1xi32>
    %8 = arith.cmpi slt, %6, %7 : vector<4x1xi32>
    %9 = arith.extui %8 : vector<4x1xi1> to vector<4x1xi32>
    %10 = arith.sitofp %9 : vector<4x1xi32> to vector<4x1xf32>
    %cst_9 = arith.constant 1.000000e+00 : f32
    %11 = vector.broadcast %cst_9 : f32 to vector<4x1xf32>
    %12 = arith.subf %11, %10 : vector<4x1xf32>
    %cst_10 = arith.constant 0.000000e+00 : f32
    %13 = vector.broadcast %cst_10 : f32 to vector<4x128xf32>
    %cst_11 = arith.constant 0.000000e+00 : f32
    %14 = vector.broadcast %cst_11 : f32 to vector<4x128xf32>
    %c0_12 = arith.constant 0 : index
    %c0_13 = arith.constant 0 : index
    %15 = vector.load %arg10[%c0_12, %c0_13] : memref<32x512xf32, #tpu.memory_space<vmem>>, vector<4x512xf32>
    %16 = vector.broadcast %10 : vector<4x1xf32> to vector<4x128xf32>
    %17 = arith.mulf %13, %16 : vector<4x128xf32>
    %18 = vector.broadcast %12 : vector<4x1xf32> to vector<4x128xf32>
    %19 = arith.mulf %13, %18 : vector<4x128xf32>
    %20 = tpu.concatenate %17, %19 in 1 : vector<4x128xf32>, vector<4x128xf32> -> vector<4x256xf32>
    %21 = arith.addf %15, %5 : vector<4x512xf32>
    %cst_14 = arith.constant dense<0.000000e+00> : vector<4x512xf32>
    %22 = tpu.matmul %20, %4, %cst_14 {dimension_numbers = #tpu.dot_dimension_numbers<[1], [0], [0], [1], [0, 0, 1, 1], [], []>} : vector<4x256xf32>, vector<256x512xf32>, vector<4x512xf32> -> vector<4x512xf32>
    %23 = arith.addf %21, %22 : vector<4x512xf32>
    %24 = vector.extract_strided_slice %23 {offsets = [0, 0], sizes = [4, 128], strides = [1, 1]} : vector<4x512xf32> to vector<4x128xf32>
    %25 = arith.negf %24 : vector<4x128xf32>
    %26 = math.exp %25 : vector<4x128xf32>
    %cst_15 = arith.constant 1.000000e+00 : f32
    %27 = vector.broadcast %cst_15 : f32 to vector<4x128xf32>
    %28 = arith.addf %27, %26 : vector<4x128xf32>
    %29 = arith.divf %27, %28 : vector<4x128xf32>
    %30 = vector.extract_strided_slice %23 {offsets = [0, 128], sizes = [4, 128], strides = [1, 1]} : vector<4x512xf32> to vector<4x128xf32>
    %31 = arith.negf %30 : vector<4x128xf32>
    %32 = math.exp %31 : vector<4x128xf32>
    %cst_16 = arith.constant 1.000000e+00 : f32
    %33 = vector.broadcast %cst_16 : f32 to vector<4x128xf32>
    %34 = arith.addf %33, %32 : vector<4x128xf32>
    %35 = arith.divf %33, %34 : vector<4x128xf32>
    %36 = vector.extract_strided_slice %23 {offsets = [0, 256], sizes = [4, 128], strides = [1, 1]} : vector<4x512xf32> to vector<4x128xf32>
    %37 = math.tanh %36 : vector<4x128xf32>
    %38 = vector.extract_strided_slice %23 {offsets = [0, 384], sizes = [4, 128], strides = [1, 1]} : vector<4x512xf32> to vector<4x128xf32>
    %39 = arith.negf %38 : vector<4x128xf32>
    %40 = math.exp %39 : vector<4x128xf32>
    %cst_17 = arith.constant 1.000000e+00 : f32
    %41 = vector.broadcast %cst_17 : f32 to vector<4x128xf32>
    %42 = arith.addf %41, %40 : vector<4x128xf32>
    %43 = arith.divf %41, %42 : vector<4x128xf32>
    %44 = arith.mulf %35, %14 : vector<4x128xf32>
    %45 = arith.mulf %29, %37 : vector<4x128xf32>
    %46 = arith.addf %44, %45 : vector<4x128xf32>
    %47 = math.tanh %46 : vector<4x128xf32>
    %48 = arith.mulf %43, %47 : vector<4x128xf32>
    %c0_18 = arith.constant 0 : index
    %c0_19 = arith.constant 0 : index
    %49 = vector.load %arg11[%c0_18, %c0_19] : memref<32x128xf32, #tpu.memory_space<vmem>>, vector<4x128xf32>
    tpu.vector_store %arg11[%c0_18, %c0_19], %48 {strides = array<i32>} : memref<32x128xf32, #tpu.memory_space<vmem>>, vector<4x128xf32>,
    %c4 = arith.constant 4 : index
    %c0_20 = arith.constant 0 : index
    %50 = vector.load %arg10[%c4, %c0_20] : memref<32x512xf32, #tpu.memory_space<vmem>>, vector<4x512xf32>
    %51 = vector.broadcast %10 : vector<4x1xf32> to vector<4x128xf32>
    %52 = arith.mulf %48, %51 : vector<4x128xf32>
    %53 = vector.broadcast %12 : vector<4x1xf32> to vector<4x128xf32>
    %54 = arith.mulf %48, %53 : vector<4x128xf32>
    %55 = tpu.concatenate %52, %54 in 1 : vector<4x128xf32>, vector<4x128xf32> -> vector<4x256xf32>
    %56 = arith.addf %50, %5 : vector<4x512xf32>
    %cst_21 = arith.constant dense<0.000000e+00> : vector<4x512xf32>
    %57 = tpu.matmul %55, %4, %cst_21 {dimension_numbers = #tpu.dot_dimension_numbers<[1], [0], [0], [1], [0, 0, 1, 1], [], []>} : vector<4x256xf32>, vector<256x512xf32>, vector<4x512xf32> -> vector<4x512xf32>
    %58 = arith.addf %56, %57 : vector<4x512xf32>
    %59 = vector.extract_strided_slice %58 {offsets = [0, 0], sizes = [4, 128], strides = [1, 1]} : vector<4x512xf32> to vector<4x128xf32>
    %60 = arith.negf %59 : vector<4x128xf32>
    %61 = math.exp %60 : vector<4x128xf32>
    %cst_22 = arith.constant 1.000000e+00 : f32
    %62 = vector.broadcast %cst_22 : f32 to vector<4x128xf32>
    %63 = arith.addf %62, %61 : vector<4x128xf32>
    %64 = arith.divf %62, %63 : vector<4x128xf32>
    %65 = vector.extract_strided_slice %58 {offsets = [0, 128], sizes = [4, 128], strides = [1, 1]} : vector<4x512xf32> to vector<4x128xf32>
    %66 = arith.negf %65 : vector<4x128xf32>
    %67 = math.exp %66 : vector<4x128xf32>
    %cst_23 = arith.constant 1.000000e+00 : f32
    %68 = vector.broadcast %cst_23 : f32 to vector<4x128xf32>
    %69 = arith.addf %68, %67 : vector<4x128xf32>
    %70 = arith.divf %68, %69 : vector<4x128xf32>
    %71 = vector.extract_strided_slice %58 {offsets = [0, 256], sizes = [4, 128], strides = [1, 1]} : vector<4x512xf32> to vector<4x128xf32>
    %72 = math.tanh %71 : vector<4x128xf32>
    %73 = vector.extract_strided_slice %58 {offsets = [0, 384], sizes = [4, 128], strides = [1, 1]} : vector<4x512xf32> to vector<4x128xf32>
    %74 = arith.negf %73 : vector<4x128xf32>
    %75 = math.exp %74 : vector<4x128xf32>
    %cst_24 = arith.constant 1.000000e+00 : f32
    %76 = vector.broadcast %cst_24 : f32 to vector<4x128xf32>
    %77 = arith.addf %76, %75 : vector<4x128xf32>
    %78 = arith.divf %76, %77 : vector<4x128xf32>
    %79 = arith.mulf %70, %46 : vector<4x128xf32>
    %80 = arith.mulf %64, %72 : vector<4x128xf32>
    %81 = arith.addf %79, %80 : vector<4x128xf32>
    %82 = math.tanh %81 : vector<4x128xf32>
    %83 = arith.mulf %78, %82 : vector<4x128xf32>
    %c4_25 = arith.constant 4 : index
    %c0_26 = arith.constant 0 : index
    %84 = vector.load %arg11[%c4_25, %c0_26] : memref<32x128xf32, #tpu.memory_space<vmem>>, vector<4x128xf32>
    tpu.vector_store %arg11[%c4_25, %c0_26], %83 {strides = array<i32>} : memref<32x128xf32, #tpu.memory_space<vmem>>, vector<4x128xf32>,
    %c8 = arith.constant 8 : index
    %c0_27 = arith.constant 0 : index
    %85 = vector.load %arg10[%c8, %c0_27] : memref<32x512xf32, #tpu.memory_space<vmem>>, vector<4x512xf32>
    %86 = vector.broadcast %10 : vector<4x1xf32> to vector<4x128xf32>
    %87 = arith.mulf %83, %86 : vector<4x128xf32>
    %88 = vector.broadcast %12 : vector<4x1xf32> to vector<4x128xf32>
    %89 = arith.mulf %83, %88 : vector<4x128xf32>
    %90 = tpu.concatenate %87, %89 in 1 : vector<4x128xf32>, vector<4x128xf32> -> vector<4x256xf32>
    %91 = arith.addf %85, %5 : vector<4x512xf32>
    %cst_28 = arith.constant dense<0.000000e+00> : vector<4x512xf32>
    %92 = tpu.matmul %90, %4, %cst_28 {dimension_numbers = #tpu.dot_dimension_numbers<[1], [0], [0], [1], [0, 0, 1, 1], [], []>} : vector<4x256xf32>, vector<256x512xf32>, vector<4x512xf32> -> vector<4x512xf32>
    %93 = arith.addf %91, %92 : vector<4x512xf32>
    %94 = vector.extract_strided_slice %93 {offsets = [0, 0], sizes = [4, 128], strides = [1, 1]} : vector<4x512xf32> to vector<4x128xf32>
    %95 = arith.negf %94 : vector<4x128xf32>
    %96 = math.exp %95 : vector<4x128xf32>
    %cst_29 = arith.constant 1.000000e+00 : f32
    %97 = vector.broadcast %cst_29 : f32 to vector<4x128xf32>
    %98 = arith.addf %97, %96 : vector<4x128xf32>
    %99 = arith.divf %97, %98 : vector<4x128xf32>
    %100 = vector.extract_strided_slice %93 {offsets = [0, 128], sizes = [4, 128], strides = [1, 1]} : vector<4x512xf32> to vector<4x128xf32>
    %101 = arith.negf %100 : vector<4x128xf32>
    %102 = math.exp %101 : vector<4x128xf32>
    %cst_30 = arith.constant 1.000000e+00 : f32
    %103 = vector.broadcast %cst_30 : f32 to vector<4x128xf32>
    %104 = arith.addf %103, %102 : vector<4x128xf32>
    %105 = arith.divf %103, %104 : vector<4x128xf32>
    %106 = vector.extract_strided_slice %93 {offsets = [0, 256], sizes = [4, 128], strides = [1, 1]} : vector<4x512xf32> to vector<4x128xf32>
    %107 = math.tanh %106 : vector<4x128xf32>
    %108 = vector.extract_strided_slice %93 {offsets = [0, 384], sizes = [4, 128], strides = [1, 1]} : vector<4x512xf32> to vector<4x128xf32>
    %109 = arith.negf %108 : vector<4x128xf32>
    %110 = math.exp %109 : vector<4x128xf32>
    %cst_31 = arith.constant 1.000000e+00 : f32
    %111 = vector.broadcast %cst_31 : f32 to vector<4x128xf32>
    %112 = arith.addf %111, %110 : vector<4x128xf32>
    %113 = arith.divf %111, %112 : vector<4x128xf32>
    %114 = arith.mulf %105, %81 : vector<4x128xf32>
    %115 = arith.mulf %99, %107 : vector<4x128xf32>
    %116 = arith.addf %114, %115 : vector<4x128xf32>
    %117 = math.tanh %116 : vector<4x128xf32>
    %118 = arith.mulf %113, %117 : vector<4x128xf32>
    %c8_32 = arith.constant 8 : index
    %c0_33 = arith.constant 0 : index
    %119 = vector.load %arg11[%c8_32, %c0_33] : memref<32x128xf32, #tpu.memory_space<vmem>>, vector<4x128xf32>
    tpu.vector_store %arg11[%c8_32, %c0_33], %118 {strides = array<i32>} : memref<32x128xf32, #tpu.memory_space<vmem>>, vector<4x128xf32>,
    %c12 = arith.constant 12 : index
    %c0_34 = arith.constant 0 : index
    %120 = vector.load %arg10[%c12, %c0_34] : memref<32x512xf32, #tpu.memory_space<vmem>>, vector<4x512xf32>
    %121 = vector.broadcast %10 : vector<4x1xf32> to vector<4x128xf32>
    %122 = arith.mulf %118, %121 : vector<4x128xf32>
    %123 = vector.broadcast %12 : vector<4x1xf32> to vector<4x128xf32>
    %124 = arith.mulf %118, %123 : vector<4x128xf32>
    %125 = tpu.concatenate %122, %124 in 1 : vector<4x128xf32>, vector<4x128xf32> -> vector<4x256xf32>
    %126 = arith.addf %120, %5 : vector<4x512xf32>
    %cst_35 = arith.constant dense<0.000000e+00> : vector<4x512xf32>
    %127 = tpu.matmul %125, %4, %cst_35 {dimension_numbers = #tpu.dot_dimension_numbers<[1], [0], [0], [1], [0, 0, 1, 1], [], []>} : vector<4x256xf32>, vector<256x512xf32>, vector<4x512xf32> -> vector<4x512xf32>
    %128 = arith.addf %126, %127 : vector<4x512xf32>
    %129 = vector.extract_strided_slice %128 {offsets = [0, 0], sizes = [4, 128], strides = [1, 1]} : vector<4x512xf32> to vector<4x128xf32>
    %130 = arith.negf %129 : vector<4x128xf32>
    %131 = math.exp %130 : vector<4x128xf32>
    %cst_36 = arith.constant 1.000000e+00 : f32
    %132 = vector.broadcast %cst_36 : f32 to vector<4x128xf32>
    %133 = arith.addf %132, %131 : vector<4x128xf32>
    %134 = arith.divf %132, %133 : vector<4x128xf32>
    %135 = vector.extract_strided_slice %128 {offsets = [0, 128], sizes = [4, 128], strides = [1, 1]} : vector<4x512xf32> to vector<4x128xf32>
    %136 = arith.negf %135 : vector<4x128xf32>
    %137 = math.exp %136 : vector<4x128xf32>
    %cst_37 = arith.constant 1.000000e+00 : f32
    %138 = vector.broadcast %cst_37 : f32 to vector<4x128xf32>
    %139 = arith.addf %138, %137 : vector<4x128xf32>
    %140 = arith.divf %138, %139 : vector<4x128xf32>
    %141 = vector.extract_strided_slice %128 {offsets = [0, 256], sizes = [4, 128], strides = [1, 1]} : vector<4x512xf32> to vector<4x128xf32>
    %142 = math.tanh %141 : vector<4x128xf32>
    %143 = vector.extract_strided_slice %128 {offsets = [0, 384], sizes = [4, 128], strides = [1, 1]} : vector<4x512xf32> to vector<4x128xf32>
    %144 = arith.negf %143 : vector<4x128xf32>
    %145 = math.exp %144 : vector<4x128xf32>
    %cst_38 = arith.constant 1.000000e+00 : f32
    %146 = vector.broadcast %cst_38 : f32 to vector<4x128xf32>
    %147 = arith.addf %146, %145 : vector<4x128xf32>
    %148 = arith.divf %146, %147 : vector<4x128xf32>
    %149 = arith.mulf %140, %116 : vector<4x128xf32>
    %150 = arith.mulf %134, %142 : vector<4x128xf32>
    %151 = arith.addf %149, %150 : vector<4x128xf32>
    %152 = math.tanh %151 : vector<4x128xf32>
    %153 = arith.mulf %148, %152 : vector<4x128xf32>
    %c12_39 = arith.constant 12 : index
    %c0_40 = arith.constant 0 : index
    %154 = vector.load %arg11[%c12_39, %c0_40] : memref<32x128xf32, #tpu.memory_space<vmem>>, vector<4x128xf32>
    tpu.vector_store %arg11[%c12_39, %c0_40], %153 {strides = array<i32>} : memref<32x128xf32, #tpu.memory_space<vmem>>, vector<4x128xf32>,
    %c16 = arith.constant 16 : index
    %c0_41 = arith.constant 0 : index
    %155 = vector.load %arg10[%c16, %c0_41] : memref<32x512xf32, #tpu.memory_space<vmem>>, vector<4x512xf32>
    %156 = vector.broadcast %10 : vector<4x1xf32> to vector<4x128xf32>
    %157 = arith.mulf %153, %156 : vector<4x128xf32>
    %158 = vector.broadcast %12 : vector<4x1xf32> to vector<4x128xf32>
    %159 = arith.mulf %153, %158 : vector<4x128xf32>
    %160 = tpu.concatenate %157, %159 in 1 : vector<4x128xf32>, vector<4x128xf32> -> vector<4x256xf32>
    %161 = arith.addf %155, %5 : vector<4x512xf32>
    %cst_42 = arith.constant dense<0.000000e+00> : vector<4x512xf32>
    %162 = tpu.matmul %160, %4, %cst_42 {dimension_numbers = #tpu.dot_dimension_numbers<[1], [0], [0], [1], [0, 0, 1, 1], [], []>} : vector<4x256xf32>, vector<256x512xf32>, vector<4x512xf32> -> vector<4x512xf32>
    %163 = arith.addf %161, %162 : vector<4x512xf32>
    %164 = vector.extract_strided_slice %163 {offsets = [0, 0], sizes = [4, 128], strides = [1, 1]} : vector<4x512xf32> to vector<4x128xf32>
    %165 = arith.negf %164 : vector<4x128xf32>
    %166 = math.exp %165 : vector<4x128xf32>
    %cst_43 = arith.constant 1.000000e+00 : f32
    %167 = vector.broadcast %cst_43 : f32 to vector<4x128xf32>
    %168 = arith.addf %167, %166 : vector<4x128xf32>
    %169 = arith.divf %167, %168 : vector<4x128xf32>
    %170 = vector.extract_strided_slice %163 {offsets = [0, 128], sizes = [4, 128], strides = [1, 1]} : vector<4x512xf32> to vector<4x128xf32>
    %171 = arith.negf %170 : vector<4x128xf32>
    %172 = math.exp %171 : vector<4x128xf32>
    %cst_44 = arith.constant 1.000000e+00 : f32
    %173 = vector.broadcast %cst_44 : f32 to vector<4x128xf32>
    %174 = arith.addf %173, %172 : vector<4x128xf32>
    %175 = arith.divf %173, %174 : vector<4x128xf32>
    %176 = vector.extract_strided_slice %163 {offsets = [0, 256], sizes = [4, 128], strides = [1, 1]} : vector<4x512xf32> to vector<4x128xf32>
    %177 = math.tanh %176 : vector<4x128xf32>
    %178 = vector.extract_strided_slice %163 {offsets = [0, 384], sizes = [4, 128], strides = [1, 1]} : vector<4x512xf32> to vector<4x128xf32>
    %179 = arith.negf %178 : vector<4x128xf32>
    %180 = math.exp %179 : vector<4x128xf32>
    %cst_45 = arith.constant 1.000000e+00 : f32
    %181 = vector.broadcast %cst_45 : f32 to vector<4x128xf32>
    %182 = arith.addf %181, %180 : vector<4x128xf32>
    %183 = arith.divf %181, %182 : vector<4x128xf32>
    %184 = arith.mulf %175, %151 : vector<4x128xf32>
    %185 = arith.mulf %169, %177 : vector<4x128xf32>
    %186 = arith.addf %184, %185 : vector<4x128xf32>
    %187 = math.tanh %186 : vector<4x128xf32>
    %188 = arith.mulf %183, %187 : vector<4x128xf32>
    %c16_46 = arith.constant 16 : index
    %c0_47 = arith.constant 0 : index
    %189 = vector.load %arg11[%c16_46, %c0_47] : memref<32x128xf32, #tpu.memory_space<vmem>>, vector<4x128xf32>
    tpu.vector_store %arg11[%c16_46, %c0_47], %188 {strides = array<i32>} : memref<32x128xf32, #tpu.memory_space<vmem>>, vector<4x128xf32>,
    %c20 = arith.constant 20 : index
    %c0_48 = arith.constant 0 : index
    %190 = vector.load %arg10[%c20, %c0_48] : memref<32x512xf32, #tpu.memory_space<vmem>>, vector<4x512xf32>
    %191 = vector.broadcast %10 : vector<4x1xf32> to vector<4x128xf32>
    %192 = arith.mulf %188, %191 : vector<4x128xf32>
    %193 = vector.broadcast %12 : vector<4x1xf32> to vector<4x128xf32>
    %194 = arith.mulf %188, %193 : vector<4x128xf32>
    %195 = tpu.concatenate %192, %194 in 1 : vector<4x128xf32>, vector<4x128xf32> -> vector<4x256xf32>
    %196 = arith.addf %190, %5 : vector<4x512xf32>
    %cst_49 = arith.constant dense<0.000000e+00> : vector<4x512xf32>
    %197 = tpu.matmul %195, %4, %cst_49 {dimension_numbers = #tpu.dot_dimension_numbers<[1], [0], [0], [1], [0, 0, 1, 1], [], []>} : vector<4x256xf32>, vector<256x512xf32>, vector<4x512xf32> -> vector<4x512xf32>
    %198 = arith.addf %196, %197 : vector<4x512xf32>
    %199 = vector.extract_strided_slice %198 {offsets = [0, 0], sizes = [4, 128], strides = [1, 1]} : vector<4x512xf32> to vector<4x128xf32>
    %200 = arith.negf %199 : vector<4x128xf32>
    %201 = math.exp %200 : vector<4x128xf32>
    %cst_50 = arith.constant 1.000000e+00 : f32
    %202 = vector.broadcast %cst_50 : f32 to vector<4x128xf32>
    %203 = arith.addf %202, %201 : vector<4x128xf32>
    %204 = arith.divf %202, %203 : vector<4x128xf32>
    %205 = vector.extract_strided_slice %198 {offsets = [0, 128], sizes = [4, 128], strides = [1, 1]} : vector<4x512xf32> to vector<4x128xf32>
    %206 = arith.negf %205 : vector<4x128xf32>
    %207 = math.exp %206 : vector<4x128xf32>
    %cst_51 = arith.constant 1.000000e+00 : f32
    %208 = vector.broadcast %cst_51 : f32 to vector<4x128xf32>
    %209 = arith.addf %208, %207 : vector<4x128xf32>
    %210 = arith.divf %208, %209 : vector<4x128xf32>
    %211 = vector.extract_strided_slice %198 {offsets = [0, 256], sizes = [4, 128], strides = [1, 1]} : vector<4x512xf32> to vector<4x128xf32>
    %212 = math.tanh %211 : vector<4x128xf32>
    %213 = vector.extract_strided_slice %198 {offsets = [0, 384], sizes = [4, 128], strides = [1, 1]} : vector<4x512xf32> to vector<4x128xf32>
    %214 = arith.negf %213 : vector<4x128xf32>
    %215 = math.exp %214 : vector<4x128xf32>
    %cst_52 = arith.constant 1.000000e+00 : f32
    %216 = vector.broadcast %cst_52 : f32 to vector<4x128xf32>
    %217 = arith.addf %216, %215 : vector<4x128xf32>
    %218 = arith.divf %216, %217 : vector<4x128xf32>
    %219 = arith.mulf %210, %186 : vector<4x128xf32>
    %220 = arith.mulf %204, %212 : vector<4x128xf32>
    %221 = arith.addf %219, %220 : vector<4x128xf32>
    %222 = math.tanh %221 : vector<4x128xf32>
    %223 = arith.mulf %218, %222 : vector<4x128xf32>
    %c20_53 = arith.constant 20 : index
    %c0_54 = arith.constant 0 : index
    %224 = vector.load %arg11[%c20_53, %c0_54] : memref<32x128xf32, #tpu.memory_space<vmem>>, vector<4x128xf32>
    tpu.vector_store %arg11[%c20_53, %c0_54], %223 {strides = array<i32>} : memref<32x128xf32, #tpu.memory_space<vmem>>, vector<4x128xf32>,
    %c24 = arith.constant 24 : index
    %c0_55 = arith.constant 0 : index
    %225 = vector.load %arg10[%c24, %c0_55] : memref<32x512xf32, #tpu.memory_space<vmem>>, vector<4x512xf32>
    %226 = vector.broadcast %10 : vector<4x1xf32> to vector<4x128xf32>
    %227 = arith.mulf %223, %226 : vector<4x128xf32>
    %228 = vector.broadcast %12 : vector<4x1xf32> to vector<4x128xf32>
    %229 = arith.mulf %223, %228 : vector<4x128xf32>
    %230 = tpu.concatenate %227, %229 in 1 : vector<4x128xf32>, vector<4x128xf32> -> vector<4x256xf32>
    %231 = arith.addf %225, %5 : vector<4x512xf32>
    %cst_56 = arith.constant dense<0.000000e+00> : vector<4x512xf32>
    %232 = tpu.matmul %230, %4, %cst_56 {dimension_numbers = #tpu.dot_dimension_numbers<[1], [0], [0], [1], [0, 0, 1, 1], [], []>} : vector<4x256xf32>, vector<256x512xf32>, vector<4x512xf32> -> vector<4x512xf32>
    %233 = arith.addf %231, %232 : vector<4x512xf32>
    %234 = vector.extract_strided_slice %233 {offsets = [0, 0], sizes = [4, 128], strides = [1, 1]} : vector<4x512xf32> to vector<4x128xf32>
    %235 = arith.negf %234 : vector<4x128xf32>
    %236 = math.exp %235 : vector<4x128xf32>
    %cst_57 = arith.constant 1.000000e+00 : f32
    %237 = vector.broadcast %cst_57 : f32 to vector<4x128xf32>
    %238 = arith.addf %237, %236 : vector<4x128xf32>
    %239 = arith.divf %237, %238 : vector<4x128xf32>
    %240 = vector.extract_strided_slice %233 {offsets = [0, 128], sizes = [4, 128], strides = [1, 1]} : vector<4x512xf32> to vector<4x128xf32>
    %241 = arith.negf %240 : vector<4x128xf32>
    %242 = math.exp %241 : vector<4x128xf32>
    %cst_58 = arith.constant 1.000000e+00 : f32
    %243 = vector.broadcast %cst_58 : f32 to vector<4x128xf32>
    %244 = arith.addf %243, %242 : vector<4x128xf32>
    %245 = arith.divf %243, %244 : vector<4x128xf32>
    %246 = vector.extract_strided_slice %233 {offsets = [0, 256], sizes = [4, 128], strides = [1, 1]} : vector<4x512xf32> to vector<4x128xf32>
    %247 = math.tanh %246 : vector<4x128xf32>
    %248 = vector.extract_strided_slice %233 {offsets = [0, 384], sizes = [4, 128], strides = [1, 1]} : vector<4x512xf32> to vector<4x128xf32>
    %249 = arith.negf %248 : vector<4x128xf32>
    %250 = math.exp %249 : vector<4x128xf32>
    %cst_59 = arith.constant 1.000000e+00 : f32
    %251 = vector.broadcast %cst_59 : f32 to vector<4x128xf32>
    %252 = arith.addf %251, %250 : vector<4x128xf32>
    %253 = arith.divf %251, %252 : vector<4x128xf32>
    %254 = arith.mulf %245, %221 : vector<4x128xf32>
    %255 = arith.mulf %239, %247 : vector<4x128xf32>
    %256 = arith.addf %254, %255 : vector<4x128xf32>
    %257 = math.tanh %256 : vector<4x128xf32>
    %258 = arith.mulf %253, %257 : vector<4x128xf32>
    %c24_60 = arith.constant 24 : index
    %c0_61 = arith.constant 0 : index
    %259 = vector.load %arg11[%c24_60, %c0_61] : memref<32x128xf32, #tpu.memory_space<vmem>>, vector<4x128xf32>
    tpu.vector_store %arg11[%c24_60, %c0_61], %258 {strides = array<i32>} : memref<32x128xf32, #tpu.memory_space<vmem>>, vector<4x128xf32>,
    %c28 = arith.constant 28 : index
    %c0_62 = arith.constant 0 : index
    %260 = vector.load %arg10[%c28, %c0_62] : memref<32x512xf32, #tpu.memory_space<vmem>>, vector<4x512xf32>
    %261 = vector.broadcast %10 : vector<4x1xf32> to vector<4x128xf32>
    %262 = arith.mulf %258, %261 : vector<4x128xf32>
    %263 = vector.broadcast %12 : vector<4x1xf32> to vector<4x128xf32>
    %264 = arith.mulf %258, %263 : vector<4x128xf32>
    %265 = tpu.concatenate %262, %264 in 1 : vector<4x128xf32>, vector<4x128xf32> -> vector<4x256xf32>
    %266 = arith.addf %260, %5 : vector<4x512xf32>
    %cst_63 = arith.constant dense<0.000000e+00> : vector<4x512xf32>
    %267 = tpu.matmul %265, %4, %cst_63 {dimension_numbers = #tpu.dot_dimension_numbers<[1], [0], [0], [1], [0, 0, 1, 1], [], []>} : vector<4x256xf32>, vector<256x512xf32>, vector<4x512xf32> -> vector<4x512xf32>
    %268 = arith.addf %266, %267 : vector<4x512xf32>
    %269 = vector.extract_strided_slice %268 {offsets = [0, 0], sizes = [4, 128], strides = [1, 1]} : vector<4x512xf32> to vector<4x128xf32>
    %270 = arith.negf %269 : vector<4x128xf32>
    %271 = math.exp %270 : vector<4x128xf32>
    %cst_64 = arith.constant 1.000000e+00 : f32
    %272 = vector.broadcast %cst_64 : f32 to vector<4x128xf32>
    %273 = arith.addf %272, %271 : vector<4x128xf32>
    %274 = arith.divf %272, %273 : vector<4x128xf32>
    %275 = vector.extract_strided_slice %268 {offsets = [0, 128], sizes = [4, 128], strides = [1, 1]} : vector<4x512xf32> to vector<4x128xf32>
    %276 = arith.negf %275 : vector<4x128xf32>
    %277 = math.exp %276 : vector<4x128xf32>
    %cst_65 = arith.constant 1.000000e+00 : f32
    %278 = vector.broadcast %cst_65 : f32 to vector<4x128xf32>
    %279 = arith.addf %278, %277 : vector<4x128xf32>
    %280 = arith.divf %278, %279 : vector<4x128xf32>
    %281 = vector.extract_strided_slice %268 {offsets = [0, 256], sizes = [4, 128], strides = [1, 1]} : vector<4x512xf32> to vector<4x128xf32>
    %282 = math.tanh %281 : vector<4x128xf32>
    %283 = vector.extract_strided_slice %268 {offsets = [0, 384], sizes = [4, 128], strides = [1, 1]} : vector<4x512xf32> to vector<4x128xf32>
    %284 = arith.negf %283 : vector<4x128xf32>
    %285 = math.exp %284 : vector<4x128xf32>
    %cst_66 = arith.constant 1.000000e+00 : f32
    %286 = vector.broadcast %cst_66 : f32 to vector<4x128xf32>
    %287 = arith.addf %286, %285 : vector<4x128xf32>
    %288 = arith.divf %286, %287 : vector<4x128xf32>
    %289 = arith.mulf %280, %256 : vector<4x128xf32>
    %290 = arith.mulf %274, %282 : vector<4x128xf32>
    %291 = arith.addf %289, %290 : vector<4x128xf32>
    %292 = math.tanh %291 : vector<4x128xf32>
    %293 = arith.mulf %288, %292 : vector<4x128xf32>
    %c28_67 = arith.constant 28 : index
    %c0_68 = arith.constant 0 : index
    %294 = vector.load %arg11[%c28_67, %c0_68] : memref<32x128xf32, #tpu.memory_space<vmem>>, vector<4x128xf32>
    tpu.vector_store %arg11[%c28_67, %c0_68], %293 {strides = array<i32>} : memref<32x128xf32, #tpu.memory_space<vmem>>, vector<4x128xf32>,
    %c0_69 = arith.constant 0 : index
    %c0_70 = arith.constant 0 : index
    %295 = vector.load %arg4[%c0_69, %c0_70] : memref<4x4xf32, #tpu.memory_space<vmem>>, vector<4x4xf32>
    %cst_71 = arith.constant dense<0.000000e+00> : vector<4x128xf32>
    %296 = tpu.matmul %295, %293, %cst_71 {dimension_numbers = #tpu.dot_dimension_numbers<[1], [0], [0], [1], [0, 0, 1, 1], [], []>} : vector<4x4xf32>, vector<4x128xf32>, vector<4x128xf32> -> vector<4x128xf32>
    %297 = vector.extract_strided_slice %296 {offsets = [0, 0], sizes = [2, 128], strides = [1, 1]} : vector<4x128xf32> to vector<2x128xf32>
    %298 = vector.extract_strided_slice %296 {offsets = [2, 0], sizes = [2, 128], strides = [1, 1]} : vector<4x128xf32> to vector<2x128xf32>
    %c0_72 = arith.constant 0 : index
    %c0_73 = arith.constant 0 : index
    %299 = vector.load %arg5[%c0_72, %c0_73] : memref<32x32xf32, #tpu.memory_space<vmem>>, vector<32x32xf32>
    %c0_74 = arith.constant 0 : index
    %c0_75 = arith.constant 0 : index
    %300 = vector.load %arg11[%c0_74, %c0_75] : memref<32x128xf32, #tpu.memory_space<vmem>>, vector<32x128xf32>
    %cst_76 = arith.constant dense<0.000000e+00> : vector<32x128xf32>
    %301 = tpu.matmul %299, %300, %cst_76 {dimension_numbers = #tpu.dot_dimension_numbers<[1], [0], [0], [1], [0, 0, 1, 1], [], []>} : vector<32x32xf32>, vector<32x128xf32>, vector<32x128xf32> -> vector<32x128xf32>
    %302 = vector.extract_strided_slice %301 {offsets = [0, 0], sizes = [16, 128], strides = [1, 1]} : vector<32x128xf32> to vector<16x128xf32>
    %303 = vector.shape_cast %302 : vector<16x128xf32> to vector<2x8x128xf32>
    %304 = vector.extract_strided_slice %301 {offsets = [16, 0], sizes = [16, 128], strides = [1, 1]} : vector<32x128xf32> to vector<16x128xf32>
    %305 = vector.shape_cast %304 : vector<16x128xf32> to vector<2x8x128xf32>
    %306 = vector.shape_cast %297 : vector<2x128xf32> to vector<2x1x128xf32>
    %307 = vector.broadcast %306 : vector<2x1x128xf32> to vector<2x8x128xf32>
    %308 = arith.mulf %303, %307 : vector<2x8x128xf32>
    %309 = vector.shape_cast %298 : vector<2x128xf32> to vector<2x1x128xf32>
    %310 = vector.broadcast %309 : vector<2x1x128xf32> to vector<2x8x128xf32>
    %311 = arith.mulf %305, %310 : vector<2x8x128xf32>
    %312 = arith.addf %308, %311 : vector<2x8x128xf32>
    %cst_77 = arith.constant dense<0.000000e+00> : vector<2x8xf32>
    %313 = vector.multi_reduction <add>, %312, %cst_77 [2] : vector<2x8x128xf32> to vector<2x8xf32>
    %cst_78 = arith.constant dense<0xFF800000> : vector<2xf32>
    %314 = vector.multi_reduction <maximumf>, %313, %cst_78 [1] : vector<2x8xf32> to vector<2xf32>
    %315 = vector.shape_cast %314 : vector<2xf32> to vector<2x1xf32>
    %316 = vector.broadcast %315 : vector<2x1xf32> to vector<2x8xf32>
    %317 = arith.subf %313, %316 : vector<2x8xf32>
    %318 = math.exp %317 : vector<2x8xf32>
    %cst_79 = arith.constant dense<0.000000e+00> : vector<2xf32>
    %319 = vector.multi_reduction <add>, %318, %cst_79 [1] : vector<2x8xf32> to vector<2xf32>
    %320 = vector.shape_cast %319 : vector<2xf32> to vector<2x1xf32>
    %321 = vector.broadcast %320 : vector<2x1xf32> to vector<2x8xf32>
    %322 = arith.divf %318, %321 : vector<2x8xf32>
    %323 = vector.shape_cast %322 : vector<2x8xf32> to vector<2x8x1xf32>
    %324 = vector.broadcast %323 : vector<2x8x1xf32> to vector<2x8x128xf32>
    %325 = arith.mulf %303, %324 : vector<2x8x128xf32>
    %cst_80 = arith.constant dense<0.000000e+00> : vector<2x128xf32>
    %326 = vector.multi_reduction <add>, %325, %cst_80 [1] : vector<2x8x128xf32> to vector<2x128xf32>
    %327 = vector.shape_cast %322 : vector<2x8xf32> to vector<2x8x1xf32>
    %328 = vector.broadcast %327 : vector<2x8x1xf32> to vector<2x8x128xf32>
    %329 = arith.mulf %305, %328 : vector<2x8x128xf32>
    %cst_81 = arith.constant dense<0.000000e+00> : vector<2x128xf32>
    %330 = vector.multi_reduction <add>, %329, %cst_81 [1] : vector<2x8x128xf32> to vector<2x128xf32>
    %331 = tpu.concatenate %326, %330 in 1 : vector<2x128xf32>, vector<2x128xf32> -> vector<2x256xf32>
    %c0_82 = arith.constant 0 : index
    %c0_83 = arith.constant 0 : index
    %332 = vector.load %arg6[%c0_82, %c0_83] : memref<256x2xf32, #tpu.memory_space<vmem>>, vector<256x2xf32>
    %cst_84 = arith.constant dense<0.000000e+00> : vector<2x2xf32>
    %333 = tpu.matmul %331, %332, %cst_84 {dimension_numbers = #tpu.dot_dimension_numbers<[1], [0], [0], [1], [0, 0, 1, 1], [], []>} : vector<2x256xf32>, vector<256x2xf32>, vector<2x2xf32> -> vector<2x2xf32>
    %c0_85 = arith.constant 0 : index
    %c0_86 = arith.constant 0 : index
    %334 = vector.load %arg7[%c0_85, %c0_86] : memref<1x2xf32, #tpu.memory_space<vmem>>, vector<1x2xf32>
    %335 = vector.broadcast %334 : vector<1x2xf32> to vector<2x2xf32>
    %336 = arith.addf %333, %335 : vector<2x2xf32>
    %c0_87 = arith.constant 0 : index
    %c0_88 = arith.constant 0 : index
    %337 = vector.load %arg8[%c0_87, %c0_88] : memref<2x2xf32, #tpu.memory_space<vmem>>, vector<2x2xf32>
    tpu.vector_store %arg8[%c0_87, %c0_88], %336 {strides = array<i32>} : memref<2x2xf32, #tpu.memory_space<vmem>>, vector<2x2xf32>,
    %c0_89 = arith.constant 0 : index
    %c0_90 = arith.constant 0 : index
    %338 = vector.load %arg9[%c0_89, %c0_90] : memref<2x8xf32, #tpu.memory_space<vmem>>, vector<2x8xf32>
    tpu.vector_store %arg9[%c0_89, %c0_90], %322 {strides = array<i32>} : memref<2x8xf32, #tpu.memory_space<vmem>>, vector<2x8xf32>,
    return
  }
}

</mosaic_0001>

<llo_original>
// kernel: bilstm_attention_forward.1
$region0: #{bilstm_attention_forward.1}
  #allocation0 [shape = 'u32[]', space=smem, size = 0x4, offset = 0x4, fixed_abs, tag = 'smem constant byte address 0x4 - core index']
  #allocation1 [shape = 'u32[144,128]{1,0:T(1,128)}', space=vmem, size = 0x12000, scoped, tag = 'internal scratch']
  #allocation2 [shape = 'f32[32,512]{1,0:T(8,128)}', space=vmem, size = 0x10000, scoped, tag = 'scratch operand']
  #allocation3 [shape = 'f32[32,128]{1,0:T(8,128)}', space=vmem, size = 0x4000, scoped, tag = 'scratch operand']
  %s0 = inlined_call_operand.vmem [shape: f32[32,100], index: 0, kind: input, shape index: {}]
  %s1 = inlined_call_operand.vmem [shape: f32[100,512], index: 1, kind: input, shape index: {}]
  %s2 = inlined_call_operand.vmem [shape: f32[4,512], index: 2, kind: input, shape index: {}]
  %s3 = inlined_call_operand.vmem [shape: f32[256,512], index: 3, kind: input, shape index: {}]
  %s4 = inlined_call_operand.vmem [shape: f32[4,4], index: 4, kind: input, shape index: {}]
  %s5 = inlined_call_operand.vmem [shape: f32[32,32], index: 5, kind: input, shape index: {}]
  %s6 = inlined_call_operand.vmem [shape: f32[256,2], index: 6, kind: input, shape index: {}]
  %s7 = inlined_call_operand.vmem [shape: f32[1,2], index: 7, kind: input, shape index: {}]
  %s8 = inlined_call_operand.hbm [shape: f32[2,2], index: 8, kind: output, shape index: {0}]
  %s9 = inlined_call_operand.hbm [shape: f32[2,8], index: 9, kind: output, shape index: {1}]
  %10 = xla_tuple %s8, %s9
  %s11 = sld [smem:[#allocation0]]
  $region50: #{bilstm_attention_forward.1} parent=0
    _
  %s13 = ssub.s32 1, %s11
  %s14 = scalar_select 0, %s13, %s11
  $region1: #{bilstm_attention_forward.1} parent=0
    #allocation4 [shape = 'u8[1024]{0}', space=vmem, size = 0x400, scoped, tag = 'output window, operand 0, single buffered']
    #allocation5 [shape = 's32[1]{0}', space=sflag, size = 0x4, scoped, tag = 'scoped memory for bilstm_attention_forward.1']
    #allocation6 [shape = 'u8[1024]{0}', space=vmem, size = 0x400, scoped, tag = 'output window, operand 1, single buffered']
    #allocation7 [shape = 's32[1]{0}', space=sflag, size = 0x4, scoped, tag = 'scoped memory for bilstm_attention_forward.1']
    %15 = vsyncpa [#allocation5], 0
    %16 = vsyncpa [#allocation7], 0
    // Predicated region
    $region2: #{bilstm_attention_forward.1} parent=1 // pred_check
      _
    $region3: #{bilstm_attention_forward.1} parent=1 // pred_check_branch
      %18 = sbr.rel (0) target = $region5
    $region4: #{bilstm_attention_forward.1} parent=1 // pred_region
      _
    $region5: #{bilstm_attention_forward.1} parent=1 // pred_fallthru
      _
    // Predicated region
    $region6: #{bilstm_attention_forward.1} parent=1 // pred_check
      _
    $region7: #{bilstm_attention_forward.1} parent=1 // pred_check_branch
      %20 = sbr.rel (0) target = $region9
    $region8: #{bilstm_attention_forward.1} parent=1 // pred_region
      _
    $region9: #{bilstm_attention_forward.1} parent=1 // pred_fallthru
      _
    // Predicated region
    $region10: #{bilstm_attention_forward.1} parent=1 // pred_check
      _
    $region11: #{bilstm_attention_forward.1} parent=1 // pred_check_branch
      %22 = sbr.rel (0) target = $region13
    $region12: #{bilstm_attention_forward.1} parent=1 // pred_region
      _
    $region13: #{bilstm_attention_forward.1} parent=1 // pred_fallthru
      _
    // Predicated region
    $region14: #{bilstm_attention_forward.1} parent=1 // pred_check
      _
    $region15: #{bilstm_attention_forward.1} parent=1 // pred_check_branch
      %24 = sbr.rel (0) target = $region17
    $region16: #{bilstm_attention_forward.1} parent=1 // pred_region
      _
    $region17: #{bilstm_attention_forward.1} parent=1 // pred_fallthru
      _
    // Predicated region
    $region18: #{bilstm_attention_forward.1} parent=1 // pred_check
      _
    $region19: #{bilstm_attention_forward.1} parent=1 // pred_check_branch
      %26 = sbr.rel (0) target = $region21
    $region20: #{bilstm_attention_forward.1} parent=1 // pred_region
      _
    $region21: #{bilstm_attention_forward.1} parent=1 // pred_fallthru
      _
    // Predicated region
    $region22: #{bilstm_attention_forward.1} parent=1 // pred_check
      _
    $region23: #{bilstm_attention_forward.1} parent=1 // pred_check_branch
      %28 = sbr.rel (0) target = $region25
    $region24: #{bilstm_attention_forward.1} parent=1 // pred_region
      _
    $region25: #{bilstm_attention_forward.1} parent=1 // pred_fallthru
      _
    // Predicated region
    $region26: #{bilstm_attention_forward.1} parent=1 // pred_check
      _
    $region27: #{bilstm_attention_forward.1} parent=1 // pred_check_branch
      %30 = sbr.rel (0) target = $region29
    $region28: #{bilstm_attention_forward.1} parent=1 // pred_region
      _
    $region29: #{bilstm_attention_forward.1} parent=1 // pred_fallthru
      _
    // Predicated region
    $region30: #{bilstm_attention_forward.1} parent=1 // pred_check
      _
    $region31: #{bilstm_attention_forward.1} parent=1 // pred_check_branch
      %32 = sbr.rel (0) target = $region33
    $region32: #{bilstm_attention_forward.1} parent=1 // pred_region
      _
    $region33: #{bilstm_attention_forward.1} parent=1 // pred_fallthru
      _
    %v33 = vld [vmem:[%s0] sm:$0xff]
    %v34 = vld [vmem:[%s0 + $0x8] sm:$0xff]
    %v35 = vld [vmem:[%s0 + $0x10] sm:$0xff]
    %v36 = vld [vmem:[%s0 + $0x18] sm:$0xff]
    %v37 = vld [vmem:[%s1] sm:$0xff]
    %v38 = vld [vmem:[%s1 + $0x8] sm:$0xff]
    %v39 = vld [vmem:[%s1 + $0x10] sm:$0xff]
    %v40 = vld [vmem:[%s1 + $0x18] sm:$0xff]
    %v41 = vld [vmem:[%s1 + $0x20] sm:$0xff]
    %v42 = vld [vmem:[%s1 + $0x28] sm:$0xff]
    %v43 = vld [vmem:[%s1 + $0x30] sm:$0xff]
    %v44 = vld [vmem:[%s1 + $0x38] sm:$0xff]
    %v45 = vld [vmem:[%s1 + $0x40] sm:$0xff]
    %v46 = vld [vmem:[%s1 + $0x48] sm:$0xff]
    %v47 = vld [vmem:[%s1 + $0x50] sm:$0xff]
    %v48 = vld [vmem:[%s1 + $0x58] sm:$0xff]
    %v49 = vld [vmem:[%s1 + $0x60] sm:$0xff]
    %v50 = vld [vmem:[%s1 + $0x68] sm:$0xff]
    %v51 = vld [vmem:[%s1 + $0x70] sm:$0xff]
    %v52 = vld [vmem:[%s1 + $0x78] sm:$0xff]
    %v53 = vld [vmem:[%s1 + $0x80] sm:$0xff]
    %v54 = vld [vmem:[%s1 + $0x88] sm:$0xff]
    %v55 = vld [vmem:[%s1 + $0x90] sm:$0xff]
    %v56 = vld [vmem:[%s1 + $0x98] sm:$0xff]
    %v57 = vld [vmem:[%s1 + $0xa0] sm:$0xff]
    %v58 = vld [vmem:[%s1 + $0xa8] sm:$0xff]
    %v59 = vld [vmem:[%s1 + $0xb0] sm:$0xff]
    %v60 = vld [vmem:[%s1 + $0xb8] sm:$0xff]
    %v61 = vld [vmem:[%s1 + $0xc0] sm:$0xff]
    %v62 = vld [vmem:[%s1 + $0xc8] sm:$0xff]
    %v63 = vld [vmem:[%s1 + $0xd0] sm:$0xff]
    %v64 = vld [vmem:[%s1 + $0xd8] sm:$0xff]
    %v65 = vld [vmem:[%s1 + $0xe0] sm:$0xff]
    %v66 = vld [vmem:[%s1 + $0xe8] sm:$0xff]
    %v67 = vld [vmem:[%s1 + $0xf0] sm:$0xff]
    %v68 = vld [vmem:[%s1 + $0xf8] sm:$0xff]
    %v69 = vld [vmem:[%s1 + $0x100] sm:$0xff]
    %v70 = vld [vmem:[%s1 + $0x108] sm:$0xff]
    %v71 = vld [vmem:[%s1 + $0x110] sm:$0xff]
    %v72 = vld [vmem:[%s1 + $0x118] sm:$0xff]
    %v73 = vld [vmem:[%s1 + $0x120] sm:$0xff]
    %v74 = vld [vmem:[%s1 + $0x128] sm:$0xff]
    %v75 = vld [vmem:[%s1 + $0x130] sm:$0xff]
    %v76 = vld [vmem:[%s1 + $0x138] sm:$0xff]
    %v77 = vld [vmem:[%s1 + $0x140] sm:$0xff]
    %v78 = vld [vmem:[%s1 + $0x148] sm:$0xff]
    %v79 = vld [vmem:[%s1 + $0x150] sm:$0xff]
    %v80 = vld [vmem:[%s1 + $0x158] sm:$0xff]
    %v81 = vld [vmem:[%s1 + $0x160] sm:$0xff]
    %v82 = vld [vmem:[%s1 + $0x168] sm:$0xff]
    %v83 = vld [vmem:[%s1 + $0x170] sm:$0xff]
    %v84 = vld [vmem:[%s1 + $0x178] sm:$0xff]
    %v85 = vld [vmem:[%s1 + $0x180] sm:$0xf]
    %v86 = vld [vmem:[%s1 + $0x188] sm:$0xf]
    %v87 = vld [vmem:[%s1 + $0x190] sm:$0xf]
    %v88 = vld [vmem:[%s1 + $0x198] sm:$0xf]
    %vm89 = vcmask 818176
    %v91 = vsel %vm89, %v33, 0
    %v94 = vsel %vm89, %v34, 0
    %v97 = vsel %vm89, %v35, 0
    %v100 = vsel %vm89, %v36, 0
    %vm102 = vcmask 1043456
    %v104 = vsel %vm102, %v85, 0
    %v107 = vsel %vm102, %v86, 0
    %v110 = vsel %vm102, %v87, 0
    %v113 = vsel %vm102, %v88, 0
    %115 = vmatprep.subr.mxu0 %v38
    %116 = vmatpush1.msra.mxu0 %v37
    %117 = vmatprep.subr.mxu0 %v42
    %118 = vmatpush1.msra.mxu0 %v41
    %119 = vmatprep.subr.mxu0 %v46
    %120 = vmatpush1.msra.mxu0 %v45
    %121 = vmatprep.subr.mxu0 %v50
    %122 = vmatpush1.msra.mxu0 %v49
    %123 = vmatprep.subr.mxu0 %v54
    %124 = vmatpush1.msra.mxu0 %v53
    %125 = vmatprep.subr.mxu0 %v58
    %126 = vmatpush1.msra.mxu0 %v57
    %127 = vmatprep.subr.mxu0 %v62
    %128 = vmatpush1.msra.mxu0 %v61
    %129 = vmatprep.subr.mxu0 %v66
    %130 = vmatpush1.msra.mxu0 %v65
    %131 = vmatprep.subr.mxu0 %v70
    %132 = vmatpush1.msra.mxu0 %v69
    %133 = vmatprep.subr.mxu0 %v74
    %134 = vmatpush1.msra.mxu0 %v73
    %135 = vmatprep.subr.mxu0 %v78
    %136 = vmatpush1.msra.mxu0 %v77
    %137 = vmatprep.subr.mxu0 %v82
    %138 = vmatpush1.msra.mxu0 %v81
    %139 = vmatprep.subr.mxu0 %v107
    %140 = vmatpush1.msra.mxu0 %v104
    %141 = vmatprep.subr.mxu0 0.0
    %142 = vmatpush1.msra.mxu0 0.0
    %143 = vmatprep.subr.mxu0 0.0
    %144 = vmatpush1.msra.mxu0 0.0
    %145 = vmatprep.subr.mxu0 0.0
    %146 = vmatpush1.msra.mxu0 0.0
    %147 = vmatprep.subr.mxu0 0.0
    %148 = vmatpush1.msra.mxu0 0.0
    %149 = vmatprep.subr.mxu0 0.0
    %150 = vmatpush1.msra.mxu0 0.0
    %151 = vmatprep.subr.mxu0 0.0
    %152 = vmatpush1.msra.mxu0 0.0
    %153 = vmatprep.subr.mxu0 0.0
    %154 = vmatpush1.msra.mxu0 0.0
    %155 = vmatprep.subr.mxu0 0.0
    %156 = vmatpush1.msra.mxu0 0.0
    %157 = vmatprep.subr.mxu0 0.0
    %158 = vmatpush1.msra.mxu0 0.0
    %159 = vmatprep.subr.mxu0 0.0
    %160 = vmatpush1.msra.mxu0 0.0
    %161 = vmatprep.subr.mxu0 0.0
    %162 = vmatpush1.msra.mxu0 0.0
    %163 = vmatprep.subr.mxu0 0.0
    %164 = vmatpush1.msra.mxu0 0.0
    %165 = vmatprep.subr.mxu0 0.0
    %166 = vmatpush1.msra.mxu0 0.0
    %167 = vmatprep.subr.mxu0 0.0
    %168 = vmatpush1.msra.mxu0 0.0
    %169 = vmatprep.subr.mxu0 0.0
    %170 = vmatpush1.msra.mxu0 0.0
    %171 = vmatprep.subr.mxu0 0.0
    %172 = vmatpush1.msra.mxu0 0.0
    %173 = vmatprep.subr.mxu0 0.0
    %174 = vmatpush1.msra.mxu0 0.0
    %175 = vmatprep.subr.mxu0 0.0
    %176 = vmatpush1.msra.mxu0 0.0
    %177 = vmatprep.subr.mxu0 0.0
    %178 = vmatpush1.msra.mxu0 0.0
    %179 = vmatprep.mubr.f32.mxu0 0.0
    %180 = vmatmul.mubr.f32.gmra.mrb[0].mxu0 %v91
    %v181 = vpop.f32.mrb[0].mxu0
    %v182 = vadd.f32 0.0, %v181
    %v183 = vpop.f32.mrb[0].mxu0
    %v184 = vadd.f32 0.0, %v183
    %185 = vmatprep.mubr.f32.mxu0 0.0
    %186 = vmatmul.mubr.f32.gmra.mrb[0].mxu0 %v94
    %v187 = vpop.f32.mrb[0].mxu0
    %v188 = vadd.f32 0.0, %v187
    %v189 = vpop.f32.mrb[0].mxu0
    %v190 = vadd.f32 0.0, %v189
    %191 = vmatprep.mubr.f32.mxu0 0.0
    %192 = vmatmul.mubr.f32.gmra.mrb[0].mxu0 %v97
    %v193 = vpop.f32.mrb[0].mxu0
    %v194 = vadd.f32 0.0, %v193
    %v195 = vpop.f32.mrb[0].mxu0
    %v196 = vadd.f32 0.0, %v195
    %197 = vmatprep.mubr.f32.mxu0 0.0
    %198 = vmatmul.mubr.f32.gmra.mrb[0].mxu0 %v100
    %v199 = vpop.f32.mrb[0].mxu0
    %v200 = vadd.f32 0.0, %v199
    %v201 = vpop.f32.mrb[0].mxu0
    %v202 = vadd.f32 0.0, %v201
    %203 = vdwg.mxu0
    %204 = vmatprep.subr.mxu0 %v40
    %205 = vmatpush1.msra.mxu0 %v39
    %206 = vmatprep.subr.mxu0 %v44
    %207 = vmatpush1.msra.mxu0 %v43
    %208 = vmatprep.subr.mxu0 %v48
    %209 = vmatpush1.msra.mxu0 %v47
    %210 = vmatprep.subr.mxu0 %v52
    %211 = vmatpush1.msra.mxu0 %v51
    %212 = vmatprep.subr.mxu0 %v56
    %213 = vmatpush1.msra.mxu0 %v55
    %214 = vmatprep.subr.mxu0 %v60
    %215 = vmatpush1.msra.mxu0 %v59
    %216 = vmatprep.subr.mxu0 %v64
    %217 = vmatpush1.msra.mxu0 %v63
    %218 = vmatprep.subr.mxu0 %v68
    %219 = vmatpush1.msra.mxu0 %v67
    %220 = vmatprep.subr.mxu0 %v72
    %221 = vmatpush1.msra.mxu0 %v71
    %222 = vmatprep.subr.mxu0 %v76
    %223 = vmatpush1.msra.mxu0 %v75
    %224 = vmatprep.subr.mxu0 %v80
    %225 = vmatpush1.msra.mxu0 %v79
    %226 = vmatprep.subr.mxu0 %v84
    %227 = vmatpush1.msra.mxu0 %v83
    %228 = vmatprep.subr.mxu0 %v113
    %229 = vmatpush1.msra.mxu0 %v110
    %230 = vmatprep.subr.mxu0 0.0
    %231 = vmatpush1.msra.mxu0 0.0
    %232 = vmatprep.subr.mxu0 0.0
    %233 = vmatpush1.msra.mxu0 0.0
    %234 = vmatprep.subr.mxu0 0.0
    %235 = vmatpush1.msra.mxu0 0.0
    %236 = vmatprep.subr.mxu0 0.0
    %237 = vmatpush1.msra.mxu0 0.0
    %238 = vmatprep.subr.mxu0 0.0
    %239 = vmatpush1.msra.mxu0 0.0
    %240 = vmatprep.subr.mxu0 0.0
    %241 = vmatpush1.msra.mxu0 0.0
    %242 = vmatprep.subr.mxu0 0.0
    %243 = vmatpush1.msra.mxu0 0.0
    %244 = vmatprep.subr.mxu0 0.0
    %245 = vmatpush1.msra.mxu0 0.0
    %246 = vmatprep.subr.mxu0 0.0
    %247 = vmatpush1.msra.mxu0 0.0
    %248 = vmatprep.subr.mxu0 0.0
    %249 = vmatpush1.msra.mxu0 0.0
    %250 = vmatprep.subr.mxu0 0.0
    %251 = vmatpush1.msra.mxu0 0.0
    %252 = vmatprep.subr.mxu0 0.0
    %253 = vmatpush1.msra.mxu0 0.0
    %254 = vmatprep.subr.mxu0 0.0
    %255 = vmatpush1.msra.mxu0 0.0
    %256 = vmatprep.subr.mxu0 0.0
    %257 = vmatpush1.msra.mxu0 0.0
    %258 = vmatprep.subr.mxu0 0.0
    %259 = vmatpush1.msra.mxu0 0.0
    %260 = vmatprep.subr.mxu0 0.0
    %261 = vmatpush1.msra.mxu0 0.0
    %262 = vmatprep.subr.mxu0 0.0
    %263 = vmatpush1.msra.mxu0 0.0
    %264 = vmatprep.subr.mxu0 0.0
    %265 = vmatpush1.msra.mxu0 0.0
    %266 = vmatprep.subr.mxu0 0.0
    %267 = vmatpush1.msra.mxu0 0.0
    %268 = vmatprep.mubr.f32.mxu0 0.0
    %269 = vmatmul.mubr.f32.gmra.mrb[0].mxu0 %v91
    %v270 = vpop.f32.mrb[0].mxu0
    %v271 = vadd.f32 0.0, %v270
    %v272 = vpop.f32.mrb[0].mxu0
    %v273 = vadd.f32 0.0, %v272
    %274 = vmatprep.mubr.f32.mxu0 0.0
    %275 = vmatmul.mubr.f32.gmra.mrb[0].mxu0 %v94
    %v276 = vpop.f32.mrb[0].mxu0
    %v277 = vadd.f32 0.0, %v276
    %v278 = vpop.f32.mrb[0].mxu0
    %v279 = vadd.f32 0.0, %v278
    %280 = vmatprep.mubr.f32.mxu0 0.0
    %281 = vmatmul.mubr.f32.gmra.mrb[0].mxu0 %v97
    %v282 = vpop.f32.mrb[0].mxu0
    %v283 = vadd.f32 0.0, %v282
    %v284 = vpop.f32.mrb[0].mxu0
    %v285 = vadd.f32 0.0, %v284
    %286 = vmatprep.mubr.f32.mxu0 0.0
    %287 = vmatmul.mubr.f32.gmra.mrb[0].mxu0 %v100
    %v288 = vpop.f32.mrb[0].mxu0
    %v289 = vadd.f32 0.0, %v288
    %v290 = vpop.f32.mrb[0].mxu0
    %v291 = vadd.f32 0.0, %v290
    %292 = vdwg.mxu0
    %293 = vst [vmem:[#allocation2] sm:$0xff] %v182
    %294 = vst [vmem:[#allocation2 + $0x8] sm:$0xff] %v184
    %295 = vst [vmem:[#allocation2 + $0x10] sm:$0xff] %v271
    %296 = vst [vmem:[#allocation2 + $0x18] sm:$0xff] %v273
    %297 = vst [vmem:[#allocation2 + $0x20] sm:$0xff] %v188
    %298 = vst [vmem:[#allocation2 + $0x28] sm:$0xff] %v190
    %299 = vst [vmem:[#allocation2 + $0x30] sm:$0xff] %v277
    %300 = vst [vmem:[#allocation2 + $0x38] sm:$0xff] %v279
    %301 = vst [vmem:[#allocation2 + $0x40] sm:$0xff] %v194
    %302 = vst [vmem:[#allocation2 + $0x48] sm:$0xff] %v196
    %303 = vst [vmem:[#allocation2 + $0x50] sm:$0xff] %v283
    %304 = vst [vmem:[#allocation2 + $0x58] sm:$0xff] %v285
    %305 = vst [vmem:[#allocation2 + $0x60] sm:$0xff] %v200
    %306 = vst [vmem:[#allocation2 + $0x68] sm:$0xff] %v202
    %307 = vst [vmem:[#allocation2 + $0x70] sm:$0xff] %v289
    %308 = vst [vmem:[#allocation2 + $0x78] sm:$0xff] %v291
    %v309 = vld [vmem:[%s3] sm:$0xff]
    %v310 = vld [vmem:[%s3 + $0x8] sm:$0xff]
    %v311 = vld [vmem:[%s3 + $0x10] sm:$0xff]
    %v312 = vld [vmem:[%s3 + $0x18] sm:$0xff]
    %v313 = vld [vmem:[%s3 + $0x20] sm:$0xff]
    %v314 = vld [vmem:[%s3 + $0x28] sm:$0xff]
    %v315 = vld [vmem:[%s3 + $0x30] sm:$0xff]
    %v316 = vld [vmem:[%s3 + $0x38] sm:$0xff]
    %v317 = vld [vmem:[%s3 + $0x40] sm:$0xff]
    %v318 = vld [vmem:[%s3 + $0x48] sm:$0xff]
    %v319 = vld [vmem:[%s3 + $0x50] sm:$0xff]
    %v320 = vld [vmem:[%s3 + $0x58] sm:$0xff]
    %v321 = vld [vmem:[%s3 + $0x60] sm:$0xff]
    %v322 = vld [vmem:[%s3 + $0x68] sm:$0xff]
    %v323 = vld [vmem:[%s3 + $0x70] sm:$0xff]
    %v324 = vld [vmem:[%s3 + $0x78] sm:$0xff]
    %v325 = vld [vmem:[%s3 + $0x80] sm:$0xff]
    %v326 = vld [vmem:[%s3 + $0x88] sm:$0xff]
    %v327 = vld [vmem:[%s3 + $0x90] sm:$0xff]
    %v328 = vld [vmem:[%s3 + $0x98] sm:$0xff]
    %v329 = vld [vmem:[%s3 + $0xa0] sm:$0xff]
    %v330 = vld [vmem:[%s3 + $0xa8] sm:$0xff]
    %v331 = vld [vmem:[%s3 + $0xb0] sm:$0xff]
    %v332 = vld [vmem:[%s3 + $0xb8] sm:$0xff]
    %v333 = vld [vmem:[%s3 + $0xc0] sm:$0xff]
    %v334 = vld [vmem:[%s3 + $0xc8] sm:$0xff]
    %v335 = vld [vmem:[%s3 + $0xd0] sm:$0xff]
    %v336 = vld [vmem:[%s3 + $0xd8] sm:$0xff]
    %v337 = vld [vmem:[%s3 + $0xe0] sm:$0xff]
    %v338 = vld [vmem:[%s3 + $0xe8] sm:$0xff]
    %v339 = vld [vmem:[%s3 + $0xf0] sm:$0xff]
    %v340 = vld [vmem:[%s3 + $0xf8] sm:$0xff]
    %v341 = vld [vmem:[%s3 + $0x100] sm:$0xff]
    %v342 = vld [vmem:[%s3 + $0x108] sm:$0xff]
    %v343 = vld [vmem:[%s3 + $0x110] sm:$0xff]
    %v344 = vld [vmem:[%s3 + $0x118] sm:$0xff]
    %v345 = vld [vmem:[%s3 + $0x120] sm:$0xff]
    %v346 = vld [vmem:[%s3 + $0x128] sm:$0xff]
    %v347 = vld [vmem:[%s3 + $0x130] sm:$0xff]
    %v348 = vld [vmem:[%s3 + $0x138] sm:$0xff]
    %v349 = vld [vmem:[%s3 + $0x140] sm:$0xff]
    %v350 = vld [vmem:[%s3 + $0x148] sm:$0xff]
    %v351 = vld [vmem:[%s3 + $0x150] sm:$0xff]
    %v352 = vld [vmem:[%s3 + $0x158] sm:$0xff]
    %v353 = vld [vmem:[%s3 + $0x160] sm:$0xff]
    %v354 = vld [vmem:[%s3 + $0x168] sm:$0xff]
    %v355 = vld [vmem:[%s3 + $0x170] sm:$0xff]
    %v356 = vld [vmem:[%s3 + $0x178] sm:$0xff]
    %v357 = vld [vmem:[%s3 + $0x180] sm:$0xff]
    %v358 = vld [vmem:[%s3 + $0x188] sm:$0xff]
    %v359 = vld [vmem:[%s3 + $0x190] sm:$0xff]
    %v360 = vld [vmem:[%s3 + $0x198] sm:$0xff]
    %v361 = vld [vmem:[%s3 + $0x1a0] sm:$0xff]
    %v362 = vld [vmem:[%s3 + $0x1a8] sm:$0xff]
    %v363 = vld [vmem:[%s3 + $0x1b0] sm:$0xff]
    %v364 = vld [vmem:[%s3 + $0x1b8] sm:$0xff]
    %v365 = vld [vmem:[%s3 + $0x1c0] sm:$0xff]
    %v366 = vld [vmem:[%s3 + $0x1c8] sm:$0xff]
    %v367 = vld [vmem:[%s3 + $0x1d0] sm:$0xff]
    %v368 = vld [vmem:[%s3 + $0x1d8] sm:$0xff]
    %v369 = vld [vmem:[%s3 + $0x1e0] sm:$0xff]
    %v370 = vld [vmem:[%s3 + $0x1e8] sm:$0xff]
    %v371 = vld [vmem:[%s3 + $0x1f0] sm:$0xff]
    %v372 = vld [vmem:[%s3 + $0x1f8] sm:$0xff]
    %v373 = vld [vmem:[%s3 + $0x200] sm:$0xff]
    %v374 = vld [vmem:[%s3 + $0x208] sm:$0xff]
    %v375 = vld [vmem:[%s3 + $0x210] sm:$0xff]
    %v376 = vld [vmem:[%s3 + $0x218] sm:$0xff]
    %v377 = vld [vmem:[%s3 + $0x220] sm:$0xff]
    %v378 = vld [vmem:[%s3 + $0x228] sm:$0xff]
    %v379 = vld [vmem:[%s3 + $0x230] sm:$0xff]
    %v380 = vld [vmem:[%s3 + $0x238] sm:$0xff]
    %v381 = vld [vmem:[%s3 + $0x240] sm:$0xff]
    %v382 = vld [vmem:[%s3 + $0x248] sm:$0xff]
    %v383 = vld [vmem:[%s3 + $0x250] sm:$0xff]
    %v384 = vld [vmem:[%s3 + $0x258] sm:$0xff]
    %v385 = vld [vmem:[%s3 + $0x260] sm:$0xff]
    %v386 = vld [vmem:[%s3 + $0x268] sm:$0xff]
    %v387 = vld [vmem:[%s3 + $0x270] sm:$0xff]
    %v388 = vld [vmem:[%s3 + $0x278] sm:$0xff]
    %v389 = vld [vmem:[%s3 + $0x280] sm:$0xff]
    %v390 = vld [vmem:[%s3 + $0x288] sm:$0xff]
    %v391 = vld [vmem:[%s3 + $0x290] sm:$0xff]
    %v392 = vld [vmem:[%s3 + $0x298] sm:$0xff]
    %v393 = vld [vmem:[%s3 + $0x2a0] sm:$0xff]
    %v394 = vld [vmem:[%s3 + $0x2a8] sm:$0xff]
    %v395 = vld [vmem:[%s3 + $0x2b0] sm:$0xff]
    %v396 = vld [vmem:[%s3 + $0x2b8] sm:$0xff]
    %v397 = vld [vmem:[%s3 + $0x2c0] sm:$0xff]
    %v398 = vld [vmem:[%s3 + $0x2c8] sm:$0xff]
    %v399 = vld [vmem:[%s3 + $0x2d0] sm:$0xff]
    %v400 = vld [vmem:[%s3 + $0x2d8] sm:$0xff]
    %v401 = vld [vmem:[%s3 + $0x2e0] sm:$0xff]
    %v402 = vld [vmem:[%s3 + $0x2e8] sm:$0xff]
    %v403 = vld [vmem:[%s3 + $0x2f0] sm:$0xff]
    %v404 = vld [vmem:[%s3 + $0x2f8] sm:$0xff]
    %v405 = vld [vmem:[%s3 + $0x300] sm:$0xff]
    %v406 = vld [vmem:[%s3 + $0x308] sm:$0xff]
    %v407 = vld [vmem:[%s3 + $0x310] sm:$0xff]
    %v408 = vld [vmem:[%s3 + $0x318] sm:$0xff]
    %v409 = vld [vmem:[%s3 + $0x320] sm:$0xff]
    %v410 = vld [vmem:[%s3 + $0x328] sm:$0xff]
    %v411 = vld [vmem:[%s3 + $0x330] sm:$0xff]
    %v412 = vld [vmem:[%s3 + $0x338] sm:$0xff]
    %v413 = vld [vmem:[%s3 + $0x340] sm:$0xff]
    %v414 = vld [vmem:[%s3 + $0x348] sm:$0xff]
    %v415 = vld [vmem:[%s3 + $0x350] sm:$0xff]
    %v416 = vld [vmem:[%s3 + $0x358] sm:$0xff]
    %v417 = vld [vmem:[%s3 + $0x360] sm:$0xff]
    %v418 = vld [vmem:[%s3 + $0x368] sm:$0xff]
    %v419 = vld [vmem:[%s3 + $0x370] sm:$0xff]
    %v420 = vld [vmem:[%s3 + $0x378] sm:$0xff]
    %v421 = vld [vmem:[%s3 + $0x380] sm:$0xff]
    %v422 = vld [vmem:[%s3 + $0x388] sm:$0xff]
    %v423 = vld [vmem:[%s3 + $0x390] sm:$0xff]
    %v424 = vld [vmem:[%s3 + $0x398] sm:$0xff]
    %v425 = vld [vmem:[%s3 + $0x3a0] sm:$0xff]
    %v426 = vld [vmem:[%s3 + $0x3a8] sm:$0xff]
    %v427 = vld [vmem:[%s3 + $0x3b0] sm:$0xff]
    %v428 = vld [vmem:[%s3 + $0x3b8] sm:$0xff]
    %v429 = vld [vmem:[%s3 + $0x3c0] sm:$0xff]
    %v430 = vld [vmem:[%s3 + $0x3c8] sm:$0xff]
    %v431 = vld [vmem:[%s3 + $0x3d0] sm:$0xff]
    %v432 = vld [vmem:[%s3 + $0x3d8] sm:$0xff]
    %v433 = vld [vmem:[%s3 + $0x3e0] sm:$0xff]
    %v434 = vld [vmem:[%s3 + $0x3e8] sm:$0xff]
    %v435 = vld [vmem:[%s3 + $0x3f0] sm:$0xff]
    %v436 = vld [vmem:[%s3 + $0x3f8] sm:$0xff]
    %v437 = vld [vmem:[%s2] sm:$0xff]
    %v438 = vld [vmem:[%s2 + $0x8] sm:$0xff]
    %v439 = vlaneseq
    %v440 = vshrl.u32 %v439, 7
    %vm441 = vcmp.lt.s32.totalorder %v440, 2
    %v442 = vsel %vm441, 1, 0
    %v443 = vcvt.s32.f32 %v442
    %v444 = vsub.f32 1.0, %v443
    %v445 = vld [vmem:[#allocation2] sm:$0xf]
    %v446 = vld [vmem:[#allocation2 + $0x8] sm:$0xf]
    %v447 = vld [vmem:[#allocation2 + $0x10] sm:$0xf]
    %v448 = vld [vmem:[#allocation2 + $0x18] sm:$0xf]
    %v449 = vmul.f32 %v443, 0.0
    %v450 = vmul.f32 %v444, 0.0
    %v453 = vcombine.high %v437, %v437
    %v454 = vcombine.high %v438, %v438
    %v457 = vadd.f32 %v445, %v437
    %v458 = vadd.f32 %v446, %v453
    %v459 = vadd.f32 %v447, %v438
    %v460 = vadd.f32 %v448, %v454
    %461 = vmatprep.subr.mxu0 %v310
    %462 = vmatpush1.msra.mxu0 %v309
    %463 = vmatprep.subr.mxu0 %v314
    %464 = vmatpush1.msra.mxu0 %v313
    %465 = vmatprep.subr.mxu0 %v318
    %466 = vmatpush1.msra.mxu0 %v317
    %467 = vmatprep.subr.mxu0 %v322
    %468 = vmatpush1.msra.mxu0 %v321
    %469 = vmatprep.subr.mxu0 %v326
    %470 = vmatpush1.msra.mxu0 %v325
    %471 = vmatprep.subr.mxu0 %v330
    %472 = vmatpush1.msra.mxu0 %v329
    %473 = vmatprep.subr.mxu0 %v334
    %474 = vmatpush1.msra.mxu0 %v333
    %475 = vmatprep.subr.mxu0 %v338
    %476 = vmatpush1.msra.mxu0 %v337
    %477 = vmatprep.subr.mxu0 %v342
    %478 = vmatpush1.msra.mxu0 %v341
    %479 = vmatprep.subr.mxu0 %v346
    %480 = vmatpush1.msra.mxu0 %v345
    %481 = vmatprep.subr.mxu0 %v350
    %482 = vmatpush1.msra.mxu0 %v349
    %483 = vmatprep.subr.mxu0 %v354
    %484 = vmatpush1.msra.mxu0 %v353
    %485 = vmatprep.subr.mxu0 %v358
    %486 = vmatpush1.msra.mxu0 %v357
    %487 = vmatprep.subr.mxu0 %v362
    %488 = vmatpush1.msra.mxu0 %v361
    %489 = vmatprep.subr.mxu0 %v366
    %490 = vmatpush1.msra.mxu0 %v365
    %491 = vmatprep.subr.mxu0 %v370
    %492 = vmatpush1.msra.mxu0 %v369
    %493 = vmatprep.subr.mxu0 %v374
    %494 = vmatpush1.msra.mxu0 %v373
    %495 = vmatprep.subr.mxu0 %v378
    %496 = vmatpush1.msra.mxu0 %v377
    %497 = vmatprep.subr.mxu0 %v382
    %498 = vmatpush1.msra.mxu0 %v381
    %499 = vmatprep.subr.mxu0 %v386
    %500 = vmatpush1.msra.mxu0 %v385
    %501 = vmatprep.subr.mxu0 %v390
    %502 = vmatpush1.msra.mxu0 %v389
    %503 = vmatprep.subr.mxu0 %v394
    %504 = vmatpush1.msra.mxu0 %v393
    %505 = vmatprep.subr.mxu0 %v398
    %506 = vmatpush1.msra.mxu0 %v397
    %507 = vmatprep.subr.mxu0 %v402
    %508 = vmatpush1.msra.mxu0 %v401
    %509 = vmatprep.subr.mxu0 %v406
    %510 = vmatpush1.msra.mxu0 %v405
    %511 = vmatprep.subr.mxu0 %v410
    %512 = vmatpush1.msra.mxu0 %v409
    %513 = vmatprep.subr.mxu0 %v414
    %514 = vmatpush1.msra.mxu0 %v413
    %515 = vmatprep.subr.mxu0 %v418
    %516 = vmatpush1.msra.mxu0 %v417
    %517 = vmatprep.subr.mxu0 %v422
    %518 = vmatpush1.msra.mxu0 %v421
    %519 = vmatprep.subr.mxu0 %v426
    %520 = vmatpush1.msra.mxu0 %v425
    %521 = vmatprep.subr.mxu0 %v430
    %522 = vmatpush1.msra.mxu0 %v429
    %523 = vmatprep.subr.mxu0 %v434
    %524 = vmatpush1.msra.mxu0 %v433
    %525 = vmatprep.mubr.f32.mxu0 %v450
    %526 = vmatmul.mubr.f32.gmra.mrb[0].mxu0 %v449
    %v527 = vpop.f32.mrb[0].mxu0
    %v528 = vadd.f32 0.0, %v527
    %v529 = vpop.f32.mrb[0].mxu0
    %v530 = vadd.f32 0.0, %v529
    %531 = vdwg.mxu0
    %532 = vmatprep.subr.mxu0 %v312
    %533 = vmatpush1.msra.mxu0 %v311
    %534 = vmatprep.subr.mxu0 %v316
    %535 = vmatpush1.msra.mxu0 %v315
    %536 = vmatprep.subr.mxu0 %v320
    %537 = vmatpush1.msra.mxu0 %v319
    %538 = vmatprep.subr.mxu0 %v324
    %539 = vmatpush1.msra.mxu0 %v323
    %540 = vmatprep.subr.mxu0 %v328
    %541 = vmatpush1.msra.mxu0 %v327
    %542 = vmatprep.subr.mxu0 %v332
    %543 = vmatpush1.msra.mxu0 %v331
    %544 = vmatprep.subr.mxu0 %v336
    %545 = vmatpush1.msra.mxu0 %v335
    %546 = vmatprep.subr.mxu0 %v340
    %547 = vmatpush1.msra.mxu0 %v339
    %548 = vmatprep.subr.mxu0 %v344
    %549 = vmatpush1.msra.mxu0 %v343
    %550 = vmatprep.subr.mxu0 %v348
    %551 = vmatpush1.msra.mxu0 %v347
    %552 = vmatprep.subr.mxu0 %v352
    %553 = vmatpush1.msra.mxu0 %v351
    %554 = vmatprep.subr.mxu0 %v356
    %555 = vmatpush1.msra.mxu0 %v355
    %556 = vmatprep.subr.mxu0 %v360
    %557 = vmatpush1.msra.mxu0 %v359
    %558 = vmatprep.subr.mxu0 %v364
    %559 = vmatpush1.msra.mxu0 %v363
    %560 = vmatprep.subr.mxu0 %v368
    %561 = vmatpush1.msra.mxu0 %v367
    %562 = vmatprep.subr.mxu0 %v372
    %563 = vmatpush1.msra.mxu0 %v371
    %564 = vmatprep.subr.mxu0 %v376
    %565 = vmatpush1.msra.mxu0 %v375
    %566 = vmatprep.subr.mxu0 %v380
    %567 = vmatpush1.msra.mxu0 %v379
    %568 = vmatprep.subr.mxu0 %v384
    %569 = vmatpush1.msra.mxu0 %v383
    %570 = vmatprep.subr.mxu0 %v388
    %571 = vmatpush1.msra.mxu0 %v387
    %572 = vmatprep.subr.mxu0 %v392
    %573 = vmatpush1.msra.mxu0 %v391
    %574 = vmatprep.subr.mxu0 %v396
    %575 = vmatpush1.msra.mxu0 %v395
    %576 = vmatprep.subr.mxu0 %v400
    %577 = vmatpush1.msra.mxu0 %v399
    %578 = vmatprep.subr.mxu0 %v404
    %579 = vmatpush1.msra.mxu0 %v403
    %580 = vmatprep.subr.mxu0 %v408
    %581 = vmatpush1.msra.mxu0 %v407
    %582 = vmatprep.subr.mxu0 %v412
    %583 = vmatpush1.msra.mxu0 %v411
    %584 = vmatprep.subr.mxu0 %v416
    %585 = vmatpush1.msra.mxu0 %v415
    %586 = vmatprep.subr.mxu0 %v420
    %587 = vmatpush1.msra.mxu0 %v419
    %588 = vmatprep.subr.mxu0 %v424
    %589 = vmatpush1.msra.mxu0 %v423
    %590 = vmatprep.subr.mxu0 %v428
    %591 = vmatpush1.msra.mxu0 %v427
    %592 = vmatprep.subr.mxu0 %v432
    %593 = vmatpush1.msra.mxu0 %v431
    %594 = vmatprep.subr.mxu0 %v436
    %595 = vmatpush1.msra.mxu0 %v435
    %596 = vmatprep.mubr.f32.mxu0 %v450
    %597 = vmatmul.mubr.f32.gmra.mrb[0].mxu0 %v449
    %v598 = vpop.f32.mrb[0].mxu0
    %v599 = vadd.f32 0.0, %v598
    %v600 = vpop.f32.mrb[0].mxu0
    %v601 = vadd.f32 0.0, %v600
    %602 = vdwg.mxu0
    %v603 = vadd.f32 %v457, %v528
    %v604 = vadd.f32 %v458, %v530
    %v605 = vadd.f32 %v459, %v599
    %v606 = vadd.f32 %v460, %v601
    %v607 = vxor.u32 %v603, 2147483648
    %v608 = vmul.f32 %v607, 1.442695
    %v609 = vpow.pop %v608
    %v610 = vadd.f32 %v609, 1.0
    %v611 = vrcp.pop %v610
    %v612 = vmul.f32 1.0, %v611
    %v613 = vxor.u32 %v604, 2147483648
    %v614 = vmul.f32 %v613, 1.442695
    %v615 = vpow.pop %v614
    %v616 = vadd.f32 %v615, 1.0
    %v617 = vrcp.pop %v616
    %v618 = vmul.f32 1.0, %v617
    %v619 = vtanh.pop %v605
    %v620 = vxor.u32 %v606, 2147483648
    %v621 = vmul.f32 %v620, 1.442695
    %v622 = vpow.pop %v621
    %v623 = vadd.f32 %v622, 1.0
    %v624 = vrcp.pop %v623
    %v625 = vmul.f32 1.0, %v624
    %v626 = vmul.f32 %v618, 0.0
    %v627 = vmul.f32 %v612, %v619
    %v628 = vadd.f32 %v626, %v627
    %v629 = vtanh.pop %v628
    %v630 = vmul.f32 %v625, %v629
    %631 = vst [vmem:[#allocation3] sm:$0xf] %v630
    %v632 = vld [vmem:[#allocation2] sm:$0xf0]
    %v633 = vld [vmem:[#allocation2 + $0x8] sm:$0xf0]
    %v634 = vld [vmem:[#allocation2 + $0x10] sm:$0xf0]
    %v635 = vld [vmem:[#allocation2 + $0x18] sm:$0xf0]
    %v636 = vmul.f32 %v630, %v443
    %v637 = vmul.f32 %v630, %v444
    %v638 = vcombine.low %v437, %v437
    %v639 = vcombine.low %v438, %v438
    %v642 = vadd.f32 %v632, %v638
    %v643 = vadd.f32 %v633, %v437
    %v644 = vadd.f32 %v634, %v639
    %v645 = vadd.f32 %v635, %v438
    %646 = vmatprep.subr.mxu0 %v310
    %647 = vmatpush1.msra.mxu0 %v309
    %648 = vmatprep.subr.mxu0 %v314
    %649 = vmatpush1.msra.mxu0 %v313
    %650 = vmatprep.subr.mxu0 %v318
    %651 = vmatpush1.msra.mxu0 %v317
    %652 = vmatprep.subr.mxu0 %v322
    %653 = vmatpush1.msra.mxu0 %v321
    %654 = vmatprep.subr.mxu0 %v326
    %655 = vmatpush1.msra.mxu0 %v325
    %656 = vmatprep.subr.mxu0 %v330
    %657 = vmatpush1.msra.mxu0 %v329
    %658 = vmatprep.subr.mxu0 %v334
    %659 = vmatpush1.msra.mxu0 %v333
    %660 = vmatprep.subr.mxu0 %v338
    %661 = vmatpush1.msra.mxu0 %v337
    %662 = vmatprep.subr.mxu0 %v342
    %663 = vmatpush1.msra.mxu0 %v341
    %664 = vmatprep.subr.mxu0 %v346
    %665 = vmatpush1.msra.mxu0 %v345
    %666 = vmatprep.subr.mxu0 %v350
    %667 = vmatpush1.msra.mxu0 %v349
    %668 = vmatprep.subr.mxu0 %v354
    %669 = vmatpush1.msra.mxu0 %v353
    %670 = vmatprep.subr.mxu0 %v358
    %671 = vmatpush1.msra.mxu0 %v357
    %672 = vmatprep.subr.mxu0 %v362
    %673 = vmatpush1.msra.mxu0 %v361
    %674 = vmatprep.subr.mxu0 %v366
    %675 = vmatpush1.msra.mxu0 %v365
    %676 = vmatprep.subr.mxu0 %v370
    %677 = vmatpush1.msra.mxu0 %v369
    %678 = vmatprep.subr.mxu0 %v374
    %679 = vmatpush1.msra.mxu0 %v373
    %680 = vmatprep.subr.mxu0 %v378
    %681 = vmatpush1.msra.mxu0 %v377
    %682 = vmatprep.subr.mxu0 %v382
    %683 = vmatpush1.msra.mxu0 %v381
    %684 = vmatprep.subr.mxu0 %v386
    %685 = vmatpush1.msra.mxu0 %v385
    %686 = vmatprep.subr.mxu0 %v390
    %687 = vmatpush1.msra.mxu0 %v389
    %688 = vmatprep.subr.mxu0 %v394
    %689 = vmatpush1.msra.mxu0 %v393
    %690 = vmatprep.subr.mxu0 %v398
    %691 = vmatpush1.msra.mxu0 %v397
    %692 = vmatprep.subr.mxu0 %v402
    %693 = vmatpush1.msra.mxu0 %v401
    %694 = vmatprep.subr.mxu0 %v406
    %695 = vmatpush1.msra.mxu0 %v405
    %696 = vmatprep.subr.mxu0 %v410
    %697 = vmatpush1.msra.mxu0 %v409
    %698 = vmatprep.subr.mxu0 %v414
    %699 = vmatpush1.msra.mxu0 %v413
    %700 = vmatprep.subr.mxu0 %v418
    %701 = vmatpush1.msra.mxu0 %v417
    %702 = vmatprep.subr.mxu0 %v422
    %703 = vmatpush1.msra.mxu0 %v421
    %704 = vmatprep.subr.mxu0 %v426
    %705 = vmatpush1.msra.mxu0 %v425
    %706 = vmatprep.subr.mxu0 %v430
    %707 = vmatpush1.msra.mxu0 %v429
    %708 = vmatprep.subr.mxu0 %v434
    %709 = vmatpush1.msra.mxu0 %v433
    %710 = vmatprep.mubr.f32.mxu0 %v637
    %711 = vmatmul.mubr.f32.gmra.mrb[0].mxu0 %v636
    %v712 = vpop.f32.mrb[0].mxu0
    %v713 = vadd.f32 0.0, %v712
    %v714 = vpop.f32.mrb[0].mxu0
    %v715 = vadd.f32 0.0, %v714
    %716 = vdwg.mxu0
    %717 = vmatprep.subr.mxu0 %v312
    %718 = vmatpush1.msra.mxu0 %v311
    %719 = vmatprep.subr.mxu0 %v316
    %720 = vmatpush1.msra.mxu0 %v315
    %721 = vmatprep.subr.mxu0 %v320
    %722 = vmatpush1.msra.mxu0 %v319
    %723 = vmatprep.subr.mxu0 %v324
    %724 = vmatpush1.msra.mxu0 %v323
    %725 = vmatprep.subr.mxu0 %v328
    %726 = vmatpush1.msra.mxu0 %v327
    %727 = vmatprep.subr.mxu0 %v332
    %728 = vmatpush1.msra.mxu0 %v331
    %729 = vmatprep.subr.mxu0 %v336
    %730 = vmatpush1.msra.mxu0 %v335
    %731 = vmatprep.subr.mxu0 %v340
    %732 = vmatpush1.msra.mxu0 %v339
    %733 = vmatprep.subr.mxu0 %v344
    %734 = vmatpush1.msra.mxu0 %v343
    %735 = vmatprep.subr.mxu0 %v348
    %736 = vmatpush1.msra.mxu0 %v347
    %737 = vmatprep.subr.mxu0 %v352
    %738 = vmatpush1.msra.mxu0 %v351
    %739 = vmatprep.subr.mxu0 %v356
    %740 = vmatpush1.msra.mxu0 %v355
    %741 = vmatprep.subr.mxu0 %v360
    %742 = vmatpush1.msra.mxu0 %v359
    %743 = vmatprep.subr.mxu0 %v364
    %744 = vmatpush1.msra.mxu0 %v363
    %745 = vmatprep.subr.mxu0 %v368
    %746 = vmatpush1.msra.mxu0 %v367
    %747 = vmatprep.subr.mxu0 %v372
    %748 = vmatpush1.msra.mxu0 %v371
    %749 = vmatprep.subr.mxu0 %v376
    %750 = vmatpush1.msra.mxu0 %v375
    %751 = vmatprep.subr.mxu0 %v380
    %752 = vmatpush1.msra.mxu0 %v379
    %753 = vmatprep.subr.mxu0 %v384
    %754 = vmatpush1.msra.mxu0 %v383
    %755 = vmatprep.subr.mxu0 %v388
    %756 = vmatpush1.msra.mxu0 %v387
    %757 = vmatprep.subr.mxu0 %v392
    %758 = vmatpush1.msra.mxu0 %v391
    %759 = vmatprep.subr.mxu0 %v396
    %760 = vmatpush1.msra.mxu0 %v395
    %761 = vmatprep.subr.mxu0 %v400
    %762 = vmatpush1.msra.mxu0 %v399
    %763 = vmatprep.subr.mxu0 %v404
    %764 = vmatpush1.msra.mxu0 %v403
    %765 = vmatprep.subr.mxu0 %v408
    %766 = vmatpush1.msra.mxu0 %v407
    %767 = vmatprep.subr.mxu0 %v412
    %768 = vmatpush1.msra.mxu0 %v411
    %769 = vmatprep.subr.mxu0 %v416
    %770 = vmatpush1.msra.mxu0 %v415
    %771 = vmatprep.subr.mxu0 %v420
    %772 = vmatpush1.msra.mxu0 %v419
    %773 = vmatprep.subr.mxu0 %v424
    %774 = vmatpush1.msra.mxu0 %v423
    %775 = vmatprep.subr.mxu0 %v428
    %776 = vmatpush1.msra.mxu0 %v427
    %777 = vmatprep.subr.mxu0 %v432
    %778 = vmatpush1.msra.mxu0 %v431
    %779 = vmatprep.subr.mxu0 %v436
    %780 = vmatpush1.msra.mxu0 %v435
    %781 = vmatprep.mubr.f32.mxu0 %v637
    %782 = vmatmul.mubr.f32.gmra.mrb[0].mxu0 %v636
    %v783 = vpop.f32.mrb[0].mxu0
    %v784 = vadd.f32 0.0, %v783
    %v785 = vpop.f32.mrb[0].mxu0
    %v786 = vadd.f32 0.0, %v785
    %787 = vdwg.mxu0
    %v792 = vrot.slane %v713, 4
    %v793 = vrot.slane %v715, 4
    %v794 = vrot.slane %v784, 4
    %v795 = vrot.slane %v786, 4
    %v800 = vadd.f32 %v642, %v792
    %v801 = vadd.f32 %v643, %v793
    %v802 = vadd.f32 %v644, %v794
    %v803 = vadd.f32 %v645, %v795
    %v804 = vxor.u32 %v800, 2147483648
    %v805 = vmul.f32 %v804, 1.442695
    %v806 = vpow.pop %v805
    %v807 = vadd.f32 %v806, 1.0
    %v808 = vrcp.pop %v807
    %v809 = vmul.f32 1.0, %v808
    %v810 = vxor.u32 %v801, 2147483648
    %v811 = vmul.f32 %v810, 1.442695
    %v812 = vpow.pop %v811
    %v813 = vadd.f32 %v812, 1.0
    %v814 = vrcp.pop %v813
    %v815 = vmul.f32 1.0, %v814
    %v816 = vtanh.pop %v802
    %v817 = vxor.u32 %v803, 2147483648
    %v818 = vmul.f32 %v817, 1.442695
    %v819 = vpow.pop %v818
    %v820 = vadd.f32 %v819, 1.0
    %v821 = vrcp.pop %v820
    %v822 = vmul.f32 1.0, %v821
    %v824 = vrot.slane %v628, 4
    %v826 = vmul.f32 %v815, %v824
    %v827 = vmul.f32 %v809, %v816
    %v828 = vadd.f32 %v826, %v827
    %v829 = vtanh.pop %v828
    %v830 = vmul.f32 %v822, %v829
    %831 = vst [vmem:[#allocation3] sm:$0xf0] %v830
    %v832 = vld [vmem:[#allocation2 + $0x20] sm:$0xf]
    %v833 = vld [vmem:[#allocation2 + $0x28] sm:$0xf]
    %v834 = vld [vmem:[#allocation2 + $0x30] sm:$0xf]
    %v835 = vld [vmem:[#allocation2 + $0x38] sm:$0xf]
    %v837 = vrot.slane %v443, 4
    %v839 = vmul.f32 %v830, %v837
    %v841 = vrot.slane %v444, 4
    %v843 = vmul.f32 %v830, %v841
    %v844 = vadd.f32 %v832, %v437
    %v845 = vadd.f32 %v833, %v453
    %v846 = vadd.f32 %v834, %v438
    %v847 = vadd.f32 %v835, %v454
    %v850 = vrot.slane %v839, 4
    %v851 = vrot.slane %v843, 4
    %854 = vmatprep.subr.mxu0 %v310
    %855 = vmatpush1.msra.mxu0 %v309
    %856 = vmatprep.subr.mxu0 %v314
    %857 = vmatpush1.msra.mxu0 %v313
    %858 = vmatprep.subr.mxu0 %v318
    %859 = vmatpush1.msra.mxu0 %v317
    %860 = vmatprep.subr.mxu0 %v322
    %861 = vmatpush1.msra.mxu0 %v321
    %862 = vmatprep.subr.mxu0 %v326
    %863 = vmatpush1.msra.mxu0 %v325
    %864 = vmatprep.subr.mxu0 %v330
    %865 = vmatpush1.msra.mxu0 %v329
    %866 = vmatprep.subr.mxu0 %v334
    %867 = vmatpush1.msra.mxu0 %v333
    %868 = vmatprep.subr.mxu0 %v338
    %869 = vmatpush1.msra.mxu0 %v337
    %870 = vmatprep.subr.mxu0 %v342
    %871 = vmatpush1.msra.mxu0 %v341
    %872 = vmatprep.subr.mxu0 %v346
    %873 = vmatpush1.msra.mxu0 %v345
    %874 = vmatprep.subr.mxu0 %v350
    %875 = vmatpush1.msra.mxu0 %v349
    %876 = vmatprep.subr.mxu0 %v354
    %877 = vmatpush1.msra.mxu0 %v353
    %878 = vmatprep.subr.mxu0 %v358
    %879 = vmatpush1.msra.mxu0 %v357
    %880 = vmatprep.subr.mxu0 %v362
    %881 = vmatpush1.msra.mxu0 %v361
    %882 = vmatprep.subr.mxu0 %v366
    %883 = vmatpush1.msra.mxu0 %v365
    %884 = vmatprep.subr.mxu0 %v370
    %885 = vmatpush1.msra.mxu0 %v369
    %886 = vmatprep.subr.mxu0 %v374
    %887 = vmatpush1.msra.mxu0 %v373
    %888 = vmatprep.subr.mxu0 %v378
    %889 = vmatpush1.msra.mxu0 %v377
    %890 = vmatprep.subr.mxu0 %v382
    %891 = vmatpush1.msra.mxu0 %v381
    %892 = vmatprep.subr.mxu0 %v386
    %893 = vmatpush1.msra.mxu0 %v385
    %894 = vmatprep.subr.mxu0 %v390
    %895 = vmatpush1.msra.mxu0 %v389
    %896 = vmatprep.subr.mxu0 %v394
    %897 = vmatpush1.msra.mxu0 %v393
    %898 = vmatprep.subr.mxu0 %v398
    %899 = vmatpush1.msra.mxu0 %v397
    %900 = vmatprep.subr.mxu0 %v402
    %901 = vmatpush1.msra.mxu0 %v401
    %902 = vmatprep.subr.mxu0 %v406
    %903 = vmatpush1.msra.mxu0 %v405
    %904 = vmatprep.subr.mxu0 %v410
    %905 = vmatpush1.msra.mxu0 %v409
    %906 = vmatprep.subr.mxu0 %v414
    %907 = vmatpush1.msra.mxu0 %v413
    %908 = vmatprep.subr.mxu0 %v418
    %909 = vmatpush1.msra.mxu0 %v417
    %910 = vmatprep.subr.mxu0 %v422
    %911 = vmatpush1.msra.mxu0 %v421
    %912 = vmatprep.subr.mxu0 %v426
    %913 = vmatpush1.msra.mxu0 %v425
    %914 = vmatprep.subr.mxu0 %v430
    %915 = vmatpush1.msra.mxu0 %v429
    %916 = vmatprep.subr.mxu0 %v434
    %917 = vmatpush1.msra.mxu0 %v433
    %918 = vmatprep.mubr.f32.mxu0 %v851
    %919 = vmatmul.mubr.f32.gmra.mrb[0].mxu0 %v850
    %v920 = vpop.f32.mrb[0].mxu0
    %v921 = vadd.f32 0.0, %v920
    %v922 = vpop.f32.mrb[0].mxu0
    %v923 = vadd.f32 0.0, %v922
    %924 = vdwg.mxu0
    %925 = vmatprep.subr.mxu0 %v312
    %926 = vmatpush1.msra.mxu0 %v311
    %927 = vmatprep.subr.mxu0 %v316
    %928 = vmatpush1.msra.mxu0 %v315
    %929 = vmatprep.subr.mxu0 %v320
    %930 = vmatpush1.msra.mxu0 %v319
    %931 = vmatprep.subr.mxu0 %v324
    %932 = vmatpush1.msra.mxu0 %v323
    %933 = vmatprep.subr.mxu0 %v328
    %934 = vmatpush1.msra.mxu0 %v327
    %935 = vmatprep.subr.mxu0 %v332
    %936 = vmatpush1.msra.mxu0 %v331
    %937 = vmatprep.subr.mxu0 %v336
    %938 = vmatpush1.msra.mxu0 %v335
    %939 = vmatprep.subr.mxu0 %v340
    %940 = vmatpush1.msra.mxu0 %v339
    %941 = vmatprep.subr.mxu0 %v344
    %942 = vmatpush1.msra.mxu0 %v343
    %943 = vmatprep.subr.mxu0 %v348
    %944 = vmatpush1.msra.mxu0 %v347
    %945 = vmatprep.subr.mxu0 %v352
    %946 = vmatpush1.msra.mxu0 %v351
    %947 = vmatprep.subr.mxu0 %v356
    %948 = vmatpush1.msra.mxu0 %v355
    %949 = vmatprep.subr.mxu0 %v360
    %950 = vmatpush1.msra.mxu0 %v359
    %951 = vmatprep.subr.mxu0 %v364
    %952 = vmatpush1.msra.mxu0 %v363
    %953 = vmatprep.subr.mxu0 %v368
    %954 = vmatpush1.msra.mxu0 %v367
    %955 = vmatprep.subr.mxu0 %v372
    %956 = vmatpush1.msra.mxu0 %v371
    %957 = vmatprep.subr.mxu0 %v376
    %958 = vmatpush1.msra.mxu0 %v375
    %959 = vmatprep.subr.mxu0 %v380
    %960 = vmatpush1.msra.mxu0 %v379
    %961 = vmatprep.subr.mxu0 %v384
    %962 = vmatpush1.msra.mxu0 %v383
    %963 = vmatprep.subr.mxu0 %v388
    %964 = vmatpush1.msra.mxu0 %v387
    %965 = vmatprep.subr.mxu0 %v392
    %966 = vmatpush1.msra.mxu0 %v391
    %967 = vmatprep.subr.mxu0 %v396
    %968 = vmatpush1.msra.mxu0 %v395
    %969 = vmatprep.subr.mxu0 %v400
    %970 = vmatpush1.msra.mxu0 %v399
    %971 = vmatprep.subr.mxu0 %v404
    %972 = vmatpush1.msra.mxu0 %v403
    %973 = vmatprep.subr.mxu0 %v408
    %974 = vmatpush1.msra.mxu0 %v407
    %975 = vmatprep.subr.mxu0 %v412
    %976 = vmatpush1.msra.mxu0 %v411
    %977 = vmatprep.subr.mxu0 %v416
    %978 = vmatpush1.msra.mxu0 %v415
    %979 = vmatprep.subr.mxu0 %v420
    %980 = vmatpush1.msra.mxu0 %v419
    %981 = vmatprep.subr.mxu0 %v424
    %982 = vmatpush1.msra.mxu0 %v423
    %983 = vmatprep.subr.mxu0 %v428
    %984 = vmatpush1.msra.mxu0 %v427
    %985 = vmatprep.subr.mxu0 %v432
    %986 = vmatpush1.msra.mxu0 %v431
    %987 = vmatprep.subr.mxu0 %v436
    %988 = vmatpush1.msra.mxu0 %v435
    %989 = vmatprep.mubr.f32.mxu0 %v851
    %990 = vmatmul.mubr.f32.gmra.mrb[0].mxu0 %v850
    %v991 = vpop.f32.mrb[0].mxu0
    %v992 = vadd.f32 0.0, %v991
    %v993 = vpop.f32.mrb[0].mxu0
    %v994 = vadd.f32 0.0, %v993
    %995 = vdwg.mxu0
    %v996 = vadd.f32 %v844, %v921
    %v997 = vadd.f32 %v845, %v923
    %v998 = vadd.f32 %v846, %v992
    %v999 = vadd.f32 %v847, %v994
    %v1000 = vxor.u32 %v996, 2147483648
    %v1001 = vmul.f32 %v1000, 1.442695
    %v1002 = vpow.pop %v1001
    %v1003 = vadd.f32 %v1002, 1.0
    %v1004 = vrcp.pop %v1003
    %v1005 = vmul.f32 1.0, %v1004
    %v1006 = vxor.u32 %v997, 2147483648
    %v1007 = vmul.f32 %v1006, 1.442695
    %v1008 = vpow.pop %v1007
    %v1009 = vadd.f32 %v1008, 1.0
    %v1010 = vrcp.pop %v1009
    %v1011 = vmul.f32 1.0, %v1010
    %v1012 = vtanh.pop %v998
    %v1013 = vxor.u32 %v999, 2147483648
    %v1014 = vmul.f32 %v1013, 1.442695
    %v1015 = vpow.pop %v1014
    %v1016 = vadd.f32 %v1015, 1.0
    %v1017 = vrcp.pop %v1016
    %v1018 = vmul.f32 1.0, %v1017
    %v1020 = vrot.slane %v828, 4
    %v1022 = vmul.f32 %v1011, %v1020
    %v1023 = vmul.f32 %v1005, %v1012
    %v1024 = vadd.f32 %v1022, %v1023
    %v1025 = vtanh.pop %v1024
    %v1026 = vmul.f32 %v1018, %v1025
    %1027 = vst [vmem:[#allocation3 + $0x8] sm:$0xf] %v1026
    %v1028 = vld [vmem:[#allocation2 + $0x20] sm:$0xf0]
    %v1029 = vld [vmem:[#allocation2 + $0x28] sm:$0xf0]
    %v1030 = vld [vmem:[#allocation2 + $0x30] sm:$0xf0]
    %v1031 = vld [vmem:[#allocation2 + $0x38] sm:$0xf0]
    %v1032 = vmul.f32 %v1026, %v443
    %v1033 = vmul.f32 %v1026, %v444
    %v1034 = vadd.f32 %v1028, %v638
    %v1035 = vadd.f32 %v1029, %v437
    %v1036 = vadd.f32 %v1030, %v639
    %v1037 = vadd.f32 %v1031, %v438
    %1038 = vmatprep.subr.mxu0 %v310
    %1039 = vmatpush1.msra.mxu0 %v309
    %1040 = vmatprep.subr.mxu0 %v314
    %1041 = vmatpush1.msra.mxu0 %v313
    %1042 = vmatprep.subr.mxu0 %v318
    %1043 = vmatpush1.msra.mxu0 %v317
    %1044 = vmatprep.subr.mxu0 %v322
    %1045 = vmatpush1.msra.mxu0 %v321
    %1046 = vmatprep.subr.mxu0 %v326
    %1047 = vmatpush1.msra.mxu0 %v325
    %1048 = vmatprep.subr.mxu0 %v330
    %1049 = vmatpush1.msra.mxu0 %v329
    %1050 = vmatprep.subr.mxu0 %v334
    %1051 = vmatpush1.msra.mxu0 %v333
    %1052 = vmatprep.subr.mxu0 %v338
    %1053 = vmatpush1.msra.mxu0 %v337
    %1054 = vmatprep.subr.mxu0 %v342
    %1055 = vmatpush1.msra.mxu0 %v341
    %1056 = vmatprep.subr.mxu0 %v346
    %1057 = vmatpush1.msra.mxu0 %v345
    %1058 = vmatprep.subr.mxu0 %v350
    %1059 = vmatpush1.msra.mxu0 %v349
    %1060 = vmatprep.subr.mxu0 %v354
    %1061 = vmatpush1.msra.mxu0 %v353
    %1062 = vmatprep.subr.mxu0 %v358
    %1063 = vmatpush1.msra.mxu0 %v357
    %1064 = vmatprep.subr.mxu0 %v362
    %1065 = vmatpush1.msra.mxu0 %v361
    %1066 = vmatprep.subr.mxu0 %v366
    %1067 = vmatpush1.msra.mxu0 %v365
    %1068 = vmatprep.subr.mxu0 %v370
    %1069 = vmatpush1.msra.mxu0 %v369
    %1070 = vmatprep.subr.mxu0 %v374
    %1071 = vmatpush1.msra.mxu0 %v373
    %1072 = vmatprep.subr.mxu0 %v378
    %1073 = vmatpush1.msra.mxu0 %v377
    %1074 = vmatprep.subr.mxu0 %v382
    %1075 = vmatpush1.msra.mxu0 %v381
    %1076 = vmatprep.subr.mxu0 %v386
    %1077 = vmatpush1.msra.mxu0 %v385
    %1078 = vmatprep.subr.mxu0 %v390
    %1079 = vmatpush1.msra.mxu0 %v389
    %1080 = vmatprep.subr.mxu0 %v394
    %1081 = vmatpush1.msra.mxu0 %v393
    %1082 = vmatprep.subr.mxu0 %v398
    %1083 = vmatpush1.msra.mxu0 %v397
    %1084 = vmatprep.subr.mxu0 %v402
    %1085 = vmatpush1.msra.mxu0 %v401
    %1086 = vmatprep.subr.mxu0 %v406
    %1087 = vmatpush1.msra.mxu0 %v405
    %1088 = vmatprep.subr.mxu0 %v410
    %1089 = vmatpush1.msra.mxu0 %v409
    %1090 = vmatprep.subr.mxu0 %v414
    %1091 = vmatpush1.msra.mxu0 %v413
    %1092 = vmatprep.subr.mxu0 %v418
    %1093 = vmatpush1.msra.mxu0 %v417
    %1094 = vmatprep.subr.mxu0 %v422
    %1095 = vmatpush1.msra.mxu0 %v421
    %1096 = vmatprep.subr.mxu0 %v426
    %1097 = vmatpush1.msra.mxu0 %v425
    %1098 = vmatprep.subr.mxu0 %v430
    %1099 = vmatpush1.msra.mxu0 %v429
    %1100 = vmatprep.subr.mxu0 %v434
    %1101 = vmatpush1.msra.mxu0 %v433
    %1102 = vmatprep.mubr.f32.mxu0 %v1033
    %1103 = vmatmul.mubr.f32.gmra.mrb[0].mxu0 %v1032
    %v1104 = vpop.f32.mrb[0].mxu0
    %v1105 = vadd.f32 0.0, %v1104
    %v1106 = vpop.f32.mrb[0].mxu0
    %v1107 = vadd.f32 0.0, %v1106
    %1108 = vdwg.mxu0
    %1109 = vmatprep.subr.mxu0 %v312
    %1110 = vmatpush1.msra.mxu0 %v311
    %1111 = vmatprep.subr.mxu0 %v316
    %1112 = vmatpush1.msra.mxu0 %v315
    %1113 = vmatprep.subr.mxu0 %v320
    %1114 = vmatpush1.msra.mxu0 %v319
    %1115 = vmatprep.subr.mxu0 %v324
    %1116 = vmatpush1.msra.mxu0 %v323
    %1117 = vmatprep.subr.mxu0 %v328
    %1118 = vmatpush1.msra.mxu0 %v327
    %1119 = vmatprep.subr.mxu0 %v332
    %1120 = vmatpush1.msra.mxu0 %v331
    %1121 = vmatprep.subr.mxu0 %v336
    %1122 = vmatpush1.msra.mxu0 %v335
    %1123 = vmatprep.subr.mxu0 %v340
    %1124 = vmatpush1.msra.mxu0 %v339
    %1125 = vmatprep.subr.mxu0 %v344
    %1126 = vmatpush1.msra.mxu0 %v343
    %1127 = vmatprep.subr.mxu0 %v348
    %1128 = vmatpush1.msra.mxu0 %v347
    %1129 = vmatprep.subr.mxu0 %v352
    %1130 = vmatpush1.msra.mxu0 %v351
    %1131 = vmatprep.subr.mxu0 %v356
    %1132 = vmatpush1.msra.mxu0 %v355
    %1133 = vmatprep.subr.mxu0 %v360
    %1134 = vmatpush1.msra.mxu0 %v359
    %1135 = vmatprep.subr.mxu0 %v364
    %1136 = vmatpush1.msra.mxu0 %v363
    %1137 = vmatprep.subr.mxu0 %v368
    %1138 = vmatpush1.msra.mxu0 %v367
    %1139 = vmatprep.subr.mxu0 %v372
    %1140 = vmatpush1.msra.mxu0 %v371
    %1141 = vmatprep.subr.mxu0 %v376
    %1142 = vmatpush1.msra.mxu0 %v375
    %1143 = vmatprep.subr.mxu0 %v380
    %1144 = vmatpush1.msra.mxu0 %v379
    %1145 = vmatprep.subr.mxu0 %v384
    %1146 = vmatpush1.msra.mxu0 %v383
    %1147 = vmatprep.subr.mxu0 %v388
    %1148 = vmatpush1.msra.mxu0 %v387
    %1149 = vmatprep.subr.mxu0 %v392
    %1150 = vmatpush1.msra.mxu0 %v391
    %1151 = vmatprep.subr.mxu0 %v396
    %1152 = vmatpush1.msra.mxu0 %v395
    %1153 = vmatprep.subr.mxu0 %v400
    %1154 = vmatpush1.msra.mxu0 %v399
    %1155 = vmatprep.subr.mxu0 %v404
    %1156 = vmatpush1.msra.mxu0 %v403
    %1157 = vmatprep.subr.mxu0 %v408
    %1158 = vmatpush1.msra.mxu0 %v407
    %1159 = vmatprep.subr.mxu0 %v412
    %1160 = vmatpush1.msra.mxu0 %v411
    %1161 = vmatprep.subr.mxu0 %v416
    %1162 = vmatpush1.msra.mxu0 %v415
    %1163 = vmatprep.subr.mxu0 %v420
    %1164 = vmatpush1.msra.mxu0 %v419
    %1165 = vmatprep.subr.mxu0 %v424
    %1166 = vmatpush1.msra.mxu0 %v423
    %1167 = vmatprep.subr.mxu0 %v428
    %1168 = vmatpush1.msra.mxu0 %v427
    %1169 = vmatprep.subr.mxu0 %v432
    %1170 = vmatpush1.msra.mxu0 %v431
    %1171 = vmatprep.subr.mxu0 %v436
    %1172 = vmatpush1.msra.mxu0 %v435
    %1173 = vmatprep.mubr.f32.mxu0 %v1033
    %1174 = vmatmul.mubr.f32.gmra.mrb[0].mxu0 %v1032
    %v1175 = vpop.f32.mrb[0].mxu0
    %v1176 = vadd.f32 0.0, %v1175
    %v1177 = vpop.f32.mrb[0].mxu0
    %v1178 = vadd.f32 0.0, %v1177
    %1179 = vdwg.mxu0
    %v1184 = vrot.slane %v1105, 4
    %v1185 = vrot.slane %v1107, 4
    %v1186 = vrot.slane %v1176, 4
    %v1187 = vrot.slane %v1178, 4
    %v1192 = vadd.f32 %v1034, %v1184
    %v1193 = vadd.f32 %v1035, %v1185
    %v1194 = vadd.f32 %v1036, %v1186
    %v1195 = vadd.f32 %v1037, %v1187
    %v1196 = vxor.u32 %v1192, 2147483648
    %v1197 = vmul.f32 %v1196, 1.442695
    %v1198 = vpow.pop %v1197
    %v1199 = vadd.f32 %v1198, 1.0
    %v1200 = vrcp.pop %v1199
    %v1201 = vmul.f32 1.0, %v1200
    %v1202 = vxor.u32 %v1193, 2147483648
    %v1203 = vmul.f32 %v1202, 1.442695
    %v1204 = vpow.pop %v1203
    %v1205 = vadd.f32 %v1204, 1.0
    %v1206 = vrcp.pop %v1205
    %v1207 = vmul.f32 1.0, %v1206
    %v1208 = vtanh.pop %v1194
    %v1209 = vxor.u32 %v1195, 2147483648
    %v1210 = vmul.f32 %v1209, 1.442695
    %v1211 = vpow.pop %v1210
    %v1212 = vadd.f32 %v1211, 1.0
    %v1213 = vrcp.pop %v1212
    %v1214 = vmul.f32 1.0, %v1213
    %v1216 = vrot.slane %v1024, 4
    %v1218 = vmul.f32 %v1207, %v1216
    %v1219 = vmul.f32 %v1201, %v1208
    %v1220 = vadd.f32 %v1218, %v1219
    %v1221 = vtanh.pop %v1220
    %v1222 = vmul.f32 %v1214, %v1221
    %1223 = vst [vmem:[#allocation3 + $0x8] sm:$0xf0] %v1222
    %v1224 = vld [vmem:[#allocation2 + $0x40] sm:$0xf]
    %v1225 = vld [vmem:[#allocation2 + $0x48] sm:$0xf]
    %v1226 = vld [vmem:[#allocation2 + $0x50] sm:$0xf]
    %v1227 = vld [vmem:[#allocation2 + $0x58] sm:$0xf]
    %v1228 = vmul.f32 %v1222, %v837
    %v1229 = vmul.f32 %v1222, %v841
    %v1230 = vadd.f32 %v1224, %v437
    %v1231 = vadd.f32 %v1225, %v453
    %v1232 = vadd.f32 %v1226, %v438
    %v1233 = vadd.f32 %v1227, %v454
    %v1236 = vrot.slane %v1228, 4
    %v1237 = vrot.slane %v1229, 4
    %1240 = vmatprep.subr.mxu0 %v310
    %1241 = vmatpush1.msra.mxu0 %v309
    %1242 = vmatprep.subr.mxu0 %v314
    %1243 = vmatpush1.msra.mxu0 %v313
    %1244 = vmatprep.subr.mxu0 %v318
    %1245 = vmatpush1.msra.mxu0 %v317
    %1246 = vmatprep.subr.mxu0 %v322
    %1247 = vmatpush1.msra.mxu0 %v321
    %1248 = vmatprep.subr.mxu0 %v326
    %1249 = vmatpush1.msra.mxu0 %v325
    %1250 = vmatprep.subr.mxu0 %v330
    %1251 = vmatpush1.msra.mxu0 %v329
    %1252 = vmatprep.subr.mxu0 %v334
    %1253 = vmatpush1.msra.mxu0 %v333
    %1254 = vmatprep.subr.mxu0 %v338
    %1255 = vmatpush1.msra.mxu0 %v337
    %1256 = vmatprep.subr.mxu0 %v342
    %1257 = vmatpush1.msra.mxu0 %v341
    %1258 = vmatprep.subr.mxu0 %v346
    %1259 = vmatpush1.msra.mxu0 %v345
    %1260 = vmatprep.subr.mxu0 %v350
    %1261 = vmatpush1.msra.mxu0 %v349
    %1262 = vmatprep.subr.mxu0 %v354
    %1263 = vmatpush1.msra.mxu0 %v353
    %1264 = vmatprep.subr.mxu0 %v358
    %1265 = vmatpush1.msra.mxu0 %v357
    %1266 = vmatprep.subr.mxu0 %v362
    %1267 = vmatpush1.msra.mxu0 %v361
    %1268 = vmatprep.subr.mxu0 %v366
    %1269 = vmatpush1.msra.mxu0 %v365
    %1270 = vmatprep.subr.mxu0 %v370
    %1271 = vmatpush1.msra.mxu0 %v369
    %1272 = vmatprep.subr.mxu0 %v374
    %1273 = vmatpush1.msra.mxu0 %v373
    %1274 = vmatprep.subr.mxu0 %v378
    %1275 = vmatpush1.msra.mxu0 %v377
    %1276 = vmatprep.subr.mxu0 %v382
    %1277 = vmatpush1.msra.mxu0 %v381
    %1278 = vmatprep.subr.mxu0 %v386
    %1279 = vmatpush1.msra.mxu0 %v385
    %1280 = vmatprep.subr.mxu0 %v390
    %1281 = vmatpush1.msra.mxu0 %v389
    %1282 = vmatprep.subr.mxu0 %v394
    %1283 = vmatpush1.msra.mxu0 %v393
    %1284 = vmatprep.subr.mxu0 %v398
    %1285 = vmatpush1.msra.mxu0 %v397
    %1286 = vmatprep.subr.mxu0 %v402
    %1287 = vmatpush1.msra.mxu0 %v401
    %1288 = vmatprep.subr.mxu0 %v406
    %1289 = vmatpush1.msra.mxu0 %v405
    %1290 = vmatprep.subr.mxu0 %v410
    %1291 = vmatpush1.msra.mxu0 %v409
    %1292 = vmatprep.subr.mxu0 %v414
    %1293 = vmatpush1.msra.mxu0 %v413
    %1294 = vmatprep.subr.mxu0 %v418
    %1295 = vmatpush1.msra.mxu0 %v417
    %1296 = vmatprep.subr.mxu0 %v422
    %1297 = vmatpush1.msra.mxu0 %v421
    %1298 = vmatprep.subr.mxu0 %v426
    %1299 = vmatpush1.msra.mxu0 %v425
    %1300 = vmatprep.subr.mxu0 %v430
    %1301 = vmatpush1.msra.mxu0 %v429
    %1302 = vmatprep.subr.mxu0 %v434
    %1303 = vmatpush1.msra.mxu0 %v433
    %1304 = vmatprep.mubr.f32.mxu0 %v1237
    %1305 = vmatmul.mubr.f32.gmra.mrb[0].mxu0 %v1236
    %v1306 = vpop.f32.mrb[0].mxu0
    %v1307 = vadd.f32 0.0, %v1306
    %v1308 = vpop.f32.mrb[0].mxu0
    %v1309 = vadd.f32 0.0, %v1308
    %1310 = vdwg.mxu0
    %1311 = vmatprep.subr.mxu0 %v312
    %1312 = vmatpush1.msra.mxu0 %v311
    %1313 = vmatprep.subr.mxu0 %v316
    %1314 = vmatpush1.msra.mxu0 %v315
    %1315 = vmatprep.subr.mxu0 %v320
    %1316 = vmatpush1.msra.mxu0 %v319
    %1317 = vmatprep.subr.mxu0 %v324
    %1318 = vmatpush1.msra.mxu0 %v323
    %1319 = vmatprep.subr.mxu0 %v328
    %1320 = vmatpush1.msra.mxu0 %v327
    %1321 = vmatprep.subr.mxu0 %v332
    %1322 = vmatpush1.msra.mxu0 %v331
    %1323 = vmatprep.subr.mxu0 %v336
    %1324 = vmatpush1.msra.mxu0 %v335
    %1325 = vmatprep.subr.mxu0 %v340
    %1326 = vmatpush1.msra.mxu0 %v339
    %1327 = vmatprep.subr.mxu0 %v344
    %1328 = vmatpush1.msra.mxu0 %v343
    %1329 = vmatprep.subr.mxu0 %v348
    %1330 = vmatpush1.msra.mxu0 %v347
    %1331 = vmatprep.subr.mxu0 %v352
    %1332 = vmatpush1.msra.mxu0 %v351
    %1333 = vmatprep.subr.mxu0 %v356
    %1334 = vmatpush1.msra.mxu0 %v355
    %1335 = vmatprep.subr.mxu0 %v360
    %1336 = vmatpush1.msra.mxu0 %v359
    %1337 = vmatprep.subr.mxu0 %v364
    %1338 = vmatpush1.msra.mxu0 %v363
    %1339 = vmatprep.subr.mxu0 %v368
    %1340 = vmatpush1.msra.mxu0 %v367
    %1341 = vmatprep.subr.mxu0 %v372
    %1342 = vmatpush1.msra.mxu0 %v371
    %1343 = vmatprep.subr.mxu0 %v376
    %1344 = vmatpush1.msra.mxu0 %v375
    %1345 = vmatprep.subr.mxu0 %v380
    %1346 = vmatpush1.msra.mxu0 %v379
    %1347 = vmatprep.subr.mxu0 %v384
    %1348 = vmatpush1.msra.mxu0 %v383
    %1349 = vmatprep.subr.mxu0 %v388
    %1350 = vmatpush1.msra.mxu0 %v387
    %1351 = vmatprep.subr.mxu0 %v392
    %1352 = vmatpush1.msra.mxu0 %v391
    %1353 = vmatprep.subr.mxu0 %v396
    %1354 = vmatpush1.msra.mxu0 %v395
    %1355 = vmatprep.subr.mxu0 %v400
    %1356 = vmatpush1.msra.mxu0 %v399
    %1357 = vmatprep.subr.mxu0 %v404
    %1358 = vmatpush1.msra.mxu0 %v403
    %1359 = vmatprep.subr.mxu0 %v408
    %1360 = vmatpush1.msra.mxu0 %v407
    %1361 = vmatprep.subr.mxu0 %v412
    %1362 = vmatpush1.msra.mxu0 %v411
    %1363 = vmatprep.subr.mxu0 %v416
    %1364 = vmatpush1.msra.mxu0 %v415
    %1365 = vmatprep.subr.mxu0 %v420
    %1366 = vmatpush1.msra.mxu0 %v419
    %1367 = vmatprep.subr.mxu0 %v424
    %1368 = vmatpush1.msra.mxu0 %v423
    %1369 = vmatprep.subr.mxu0 %v428
    %1370 = vmatpush1.msra.mxu0 %v427
    %1371 = vmatprep.subr.mxu0 %v432
    %1372 = vmatpush1.msra.mxu0 %v431
    %1373 = vmatprep.subr.mxu0 %v436
    %1374 = vmatpush1.msra.mxu0 %v435
    %1375 = vmatprep.mubr.f32.mxu0 %v1237
    %1376 = vmatmul.mubr.f32.gmra.mrb[0].mxu0 %v1236
    %v1377 = vpop.f32.mrb[0].mxu0
    %v1378 = vadd.f32 0.0, %v1377
    %v1379 = vpop.f32.mrb[0].mxu0
    %v1380 = vadd.f32 0.0, %v1379
    %1381 = vdwg.mxu0
    %v1382 = vadd.f32 %v1230, %v1307
    %v1383 = vadd.f32 %v1231, %v1309
    %v1384 = vadd.f32 %v1232, %v1378
    %v1385 = vadd.f32 %v1233, %v1380
    %v1386 = vxor.u32 %v1382, 2147483648
    %v1387 = vmul.f32 %v1386, 1.442695
    %v1388 = vpow.pop %v1387
    %v1389 = vadd.f32 %v1388, 1.0
    %v1390 = vrcp.pop %v1389
    %v1391 = vmul.f32 1.0, %v1390
    %v1392 = vxor.u32 %v1383, 2147483648
    %v1393 = vmul.f32 %v1392, 1.442695
    %v1394 = vpow.pop %v1393
    %v1395 = vadd.f32 %v1394, 1.0
    %v1396 = vrcp.pop %v1395
    %v1397 = vmul.f32 1.0, %v1396
    %v1398 = vtanh.pop %v1384
    %v1399 = vxor.u32 %v1385, 2147483648
    %v1400 = vmul.f32 %v1399, 1.442695
    %v1401 = vpow.pop %v1400
    %v1402 = vadd.f32 %v1401, 1.0
    %v1403 = vrcp.pop %v1402
    %v1404 = vmul.f32 1.0, %v1403
    %v1406 = vrot.slane %v1220, 4
    %v1408 = vmul.f32 %v1397, %v1406
    %v1409 = vmul.f32 %v1391, %v1398
    %v1410 = vadd.f32 %v1408, %v1409
    %v1411 = vtanh.pop %v1410
    %v1412 = vmul.f32 %v1404, %v1411
    %1413 = vst [vmem:[#allocation3 + $0x10] sm:$0xf] %v1412
    %v1414 = vld [vmem:[#allocation2 + $0x40] sm:$0xf0]
    %v1415 = vld [vmem:[#allocation2 + $0x48] sm:$0xf0]
    %v1416 = vld [vmem:[#allocation2 + $0x50] sm:$0xf0]
    %v1417 = vld [vmem:[#allocation2 + $0x58] sm:$0xf0]
    %v1418 = vmul.f32 %v1412, %v443
    %v1419 = vmul.f32 %v1412, %v444
    %v1420 = vadd.f32 %v1414, %v638
    %v1421 = vadd.f32 %v1415, %v437
    %v1422 = vadd.f32 %v1416, %v639
    %v1423 = vadd.f32 %v1417, %v438
    %1424 = vmatprep.subr.mxu0 %v310
    %1425 = vmatpush1.msra.mxu0 %v309
    %1426 = vmatprep.subr.mxu0 %v314
    %1427 = vmatpush1.msra.mxu0 %v313
    %1428 = vmatprep.subr.mxu0 %v318
    %1429 = vmatpush1.msra.mxu0 %v317
    %1430 = vmatprep.subr.mxu0 %v322
    %1431 = vmatpush1.msra.mxu0 %v321
    %1432 = vmatprep.subr.mxu0 %v326
    %1433 = vmatpush1.msra.mxu0 %v325
    %1434 = vmatprep.subr.mxu0 %v330
    %1435 = vmatpush1.msra.mxu0 %v329
    %1436 = vmatprep.subr.mxu0 %v334
    %1437 = vmatpush1.msra.mxu0 %v333
    %1438 = vmatprep.subr.mxu0 %v338
    %1439 = vmatpush1.msra.mxu0 %v337
    %1440 = vmatprep.subr.mxu0 %v342
    %1441 = vmatpush1.msra.mxu0 %v341
    %1442 = vmatprep.subr.mxu0 %v346
    %1443 = vmatpush1.msra.mxu0 %v345
    %1444 = vmatprep.subr.mxu0 %v350
    %1445 = vmatpush1.msra.mxu0 %v349
    %1446 = vmatprep.subr.mxu0 %v354
    %1447 = vmatpush1.msra.mxu0 %v353
    %1448 = vmatprep.subr.mxu0 %v358
    %1449 = vmatpush1.msra.mxu0 %v357
    %1450 = vmatprep.subr.mxu0 %v362
    %1451 = vmatpush1.msra.mxu0 %v361
    %1452 = vmatprep.subr.mxu0 %v366
    %1453 = vmatpush1.msra.mxu0 %v365
    %1454 = vmatprep.subr.mxu0 %v370
    %1455 = vmatpush1.msra.mxu0 %v369
    %1456 = vmatprep.subr.mxu0 %v374
    %1457 = vmatpush1.msra.mxu0 %v373
    %1458 = vmatprep.subr.mxu0 %v378
    %1459 = vmatpush1.msra.mxu0 %v377
    %1460 = vmatprep.subr.mxu0 %v382
    %1461 = vmatpush1.msra.mxu0 %v381
    %1462 = vmatprep.subr.mxu0 %v386
    %1463 = vmatpush1.msra.mxu0 %v385
    %1464 = vmatprep.subr.mxu0 %v390
    %1465 = vmatpush1.msra.mxu0 %v389
    %1466 = vmatprep.subr.mxu0 %v394
    %1467 = vmatpush1.msra.mxu0 %v393
    %1468 = vmatprep.subr.mxu0 %v398
    %1469 = vmatpush1.msra.mxu0 %v397
    %1470 = vmatprep.subr.mxu0 %v402
    %1471 = vmatpush1.msra.mxu0 %v401
    %1472 = vmatprep.subr.mxu0 %v406
    %1473 = vmatpush1.msra.mxu0 %v405
    %1474 = vmatprep.subr.mxu0 %v410
    %1475 = vmatpush1.msra.mxu0 %v409
    %1476 = vmatprep.subr.mxu0 %v414
    %1477 = vmatpush1.msra.mxu0 %v413
    %1478 = vmatprep.subr.mxu0 %v418
    %1479 = vmatpush1.msra.mxu0 %v417
    %1480 = vmatprep.subr.mxu0 %v422
    %1481 = vmatpush1.msra.mxu0 %v421
    %1482 = vmatprep.subr.mxu0 %v426
    %1483 = vmatpush1.msra.mxu0 %v425
    %1484 = vmatprep.subr.mxu0 %v430
    %1485 = vmatpush1.msra.mxu0 %v429
    %1486 = vmatprep.subr.mxu0 %v434
    %1487 = vmatpush1.msra.mxu0 %v433
    %1488 = vmatprep.mubr.f32.mxu0 %v1419
    %1489 = vmatmul.mubr.f32.gmra.mrb[0].mxu0 %v1418
    %v1490 = vpop.f32.mrb[0].mxu0
    %v1491 = vadd.f32 0.0, %v1490
    %v1492 = vpop.f32.mrb[0].mxu0
    %v1493 = vadd.f32 0.0, %v1492
    %1494 = vdwg.mxu0
    %1495 = vmatprep.subr.mxu0 %v312
    %1496 = vmatpush1.msra.mxu0 %v311
    %1497 = vmatprep.subr.mxu0 %v316
    %1498 = vmatpush1.msra.mxu0 %v315
    %1499 = vmatprep.subr.mxu0 %v320
    %1500 = vmatpush1.msra.mxu0 %v319
    %1501 = vmatprep.subr.mxu0 %v324
    %1502 = vmatpush1.msra.mxu0 %v323
    %1503 = vmatprep.subr.mxu0 %v328
    %1504 = vmatpush1.msra.mxu0 %v327
    %1505 = vmatprep.subr.mxu0 %v332
    %1506 = vmatpush1.msra.mxu0 %v331
    %1507 = vmatprep.subr.mxu0 %v336
    %1508 = vmatpush1.msra.mxu0 %v335
    %1509 = vmatprep.subr.mxu0 %v340
    %1510 = vmatpush1.msra.mxu0 %v339
    %1511 = vmatprep.subr.mxu0 %v344
    %1512 = vmatpush1.msra.mxu0 %v343
    %1513 = vmatprep.subr.mxu0 %v348
    %1514 = vmatpush1.msra.mxu0 %v347
    %1515 = vmatprep.subr.mxu0 %v352
    %1516 = vmatpush1.msra.mxu0 %v351
    %1517 = vmatprep.subr.mxu0 %v356
    %1518 = vmatpush1.msra.mxu0 %v355
    %1519 = vmatprep.subr.mxu0 %v360
    %1520 = vmatpush1.msra.mxu0 %v359
    %1521 = vmatprep.subr.mxu0 %v364
    %1522 = vmatpush1.msra.mxu0 %v363
    %1523 = vmatprep.subr.mxu0 %v368
    %1524 = vmatpush1.msra.mxu0 %v367
    %1525 = vmatprep.subr.mxu0 %v372
    %1526 = vmatpush1.msra.mxu0 %v371
    %1527 = vmatprep.subr.mxu0 %v376
    %1528 = vmatpush1.msra.mxu0 %v375
    %1529 = vmatprep.subr.mxu0 %v380
    %1530 = vmatpush1.msra.mxu0 %v379
    %1531 = vmatprep.subr.mxu0 %v384
    %1532 = vmatpush1.msra.mxu0 %v383
    %1533 = vmatprep.subr.mxu0 %v388
    %1534 = vmatpush1.msra.mxu0 %v387
    %1535 = vmatprep.subr.mxu0 %v392
    %1536 = vmatpush1.msra.mxu0 %v391
    %1537 = vmatprep.subr.mxu0 %v396
    %1538 = vmatpush1.msra.mxu0 %v395
    %1539 = vmatprep.subr.mxu0 %v400
    %1540 = vmatpush1.msra.mxu0 %v399
    %1541 = vmatprep.subr.mxu0 %v404
    %1542 = vmatpush1.msra.mxu0 %v403
    %1543 = vmatprep.subr.mxu0 %v408
    %1544 = vmatpush1.msra.mxu0 %v407
    %1545 = vmatprep.subr.mxu0 %v412
    %1546 = vmatpush1.msra.mxu0 %v411
    %1547 = vmatprep.subr.mxu0 %v416
    %1548 = vmatpush1.msra.mxu0 %v415
    %1549 = vmatprep.subr.mxu0 %v420
    %1550 = vmatpush1.msra.mxu0 %v419
    %1551 = vmatprep.subr.mxu0 %v424
    %1552 = vmatpush1.msra.mxu0 %v423
    %1553 = vmatprep.subr.mxu0 %v428
    %1554 = vmatpush1.msra.mxu0 %v427
    %1555 = vmatprep.subr.mxu0 %v432
    %1556 = vmatpush1.msra.mxu0 %v431
    %1557 = vmatprep.subr.mxu0 %v436
    %1558 = vmatpush1.msra.mxu0 %v435
    %1559 = vmatprep.mubr.f32.mxu0 %v1419
    %1560 = vmatmul.mubr.f32.gmra.mrb[0].mxu0 %v1418
    %v1561 = vpop.f32.mrb[0].mxu0
    %v1562 = vadd.f32 0.0, %v1561
    %v1563 = vpop.f32.mrb[0].mxu0
    %v1564 = vadd.f32 0.0, %v1563
    %1565 = vdwg.mxu0
    %v1570 = vrot.slane %v1491, 4
    %v1571 = vrot.slane %v1493, 4
    %v1572 = vrot.slane %v1562, 4
    %v1573 = vrot.slane %v1564, 4
    %v1578 = vadd.f32 %v1420, %v1570
    %v1579 = vadd.f32 %v1421, %v1571
    %v1580 = vadd.f32 %v1422, %v1572
    %v1581 = vadd.f32 %v1423, %v1573
    %v1582 = vxor.u32 %v1578, 2147483648
    %v1583 = vmul.f32 %v1582, 1.442695
    %v1584 = vpow.pop %v1583
    %v1585 = vadd.f32 %v1584, 1.0
    %v1586 = vrcp.pop %v1585
    %v1587 = vmul.f32 1.0, %v1586
    %v1588 = vxor.u32 %v1579, 2147483648
    %v1589 = vmul.f32 %v1588, 1.442695
    %v1590 = vpow.pop %v1589
    %v1591 = vadd.f32 %v1590, 1.0
    %v1592 = vrcp.pop %v1591
    %v1593 = vmul.f32 1.0, %v1592
    %v1594 = vtanh.pop %v1580
    %v1595 = vxor.u32 %v1581, 2147483648
    %v1596 = vmul.f32 %v1595, 1.442695
    %v1597 = vpow.pop %v1596
    %v1598 = vadd.f32 %v1597, 1.0
    %v1599 = vrcp.pop %v1598
    %v1600 = vmul.f32 1.0, %v1599
    %v1602 = vrot.slane %v1410, 4
    %v1604 = vmul.f32 %v1593, %v1602
    %v1605 = vmul.f32 %v1587, %v1594
    %v1606 = vadd.f32 %v1604, %v1605
    %v1607 = vtanh.pop %v1606
    %v1608 = vmul.f32 %v1600, %v1607
    %1609 = vst [vmem:[#allocation3 + $0x10] sm:$0xf0] %v1608
    %v1610 = vld [vmem:[#allocation2 + $0x60] sm:$0xf]
    %v1611 = vld [vmem:[#allocation2 + $0x68] sm:$0xf]
    %v1612 = vld [vmem:[#allocation2 + $0x70] sm:$0xf]
    %v1613 = vld [vmem:[#allocation2 + $0x78] sm:$0xf]
    %v1614 = vmul.f32 %v1608, %v837
    %v1615 = vmul.f32 %v1608, %v841
    %v1616 = vadd.f32 %v1610, %v437
    %v1617 = vadd.f32 %v1611, %v453
    %v1618 = vadd.f32 %v1612, %v438
    %v1619 = vadd.f32 %v1613, %v454
    %v1622 = vrot.slane %v1614, 4
    %v1623 = vrot.slane %v1615, 4
    %1626 = vmatprep.subr.mxu0 %v310
    %1627 = vmatpush1.msra.mxu0 %v309
    %1628 = vmatprep.subr.mxu0 %v314
    %1629 = vmatpush1.msra.mxu0 %v313
    %1630 = vmatprep.subr.mxu0 %v318
    %1631 = vmatpush1.msra.mxu0 %v317
    %1632 = vmatprep.subr.mxu0 %v322
    %1633 = vmatpush1.msra.mxu0 %v321
    %1634 = vmatprep.subr.mxu0 %v326
    %1635 = vmatpush1.msra.mxu0 %v325
    %1636 = vmatprep.subr.mxu0 %v330
    %1637 = vmatpush1.msra.mxu0 %v329
    %1638 = vmatprep.subr.mxu0 %v334
    %1639 = vmatpush1.msra.mxu0 %v333
    %1640 = vmatprep.subr.mxu0 %v338
    %1641 = vmatpush1.msra.mxu0 %v337
    %1642 = vmatprep.subr.mxu0 %v342
    %1643 = vmatpush1.msra.mxu0 %v341
    %1644 = vmatprep.subr.mxu0 %v346
    %1645 = vmatpush1.msra.mxu0 %v345
    %1646 = vmatprep.subr.mxu0 %v350
    %1647 = vmatpush1.msra.mxu0 %v349
    %1648 = vmatprep.subr.mxu0 %v354
    %1649 = vmatpush1.msra.mxu0 %v353
    %1650 = vmatprep.subr.mxu0 %v358
    %1651 = vmatpush1.msra.mxu0 %v357
    %1652 = vmatprep.subr.mxu0 %v362
    %1653 = vmatpush1.msra.mxu0 %v361
    %1654 = vmatprep.subr.mxu0 %v366
    %1655 = vmatpush1.msra.mxu0 %v365
    %1656 = vmatprep.subr.mxu0 %v370
    %1657 = vmatpush1.msra.mxu0 %v369
    %1658 = vmatprep.subr.mxu0 %v374
    %1659 = vmatpush1.msra.mxu0 %v373
    %1660 = vmatprep.subr.mxu0 %v378
    %1661 = vmatpush1.msra.mxu0 %v377
    %1662 = vmatprep.subr.mxu0 %v382
    %1663 = vmatpush1.msra.mxu0 %v381
    %1664 = vmatprep.subr.mxu0 %v386
    %1665 = vmatpush1.msra.mxu0 %v385
    %1666 = vmatprep.subr.mxu0 %v390
    %1667 = vmatpush1.msra.mxu0 %v389
    %1668 = vmatprep.subr.mxu0 %v394
    %1669 = vmatpush1.msra.mxu0 %v393
    %1670 = vmatprep.subr.mxu0 %v398
    %1671 = vmatpush1.msra.mxu0 %v397
    %1672 = vmatprep.subr.mxu0 %v402
    %1673 = vmatpush1.msra.mxu0 %v401
    %1674 = vmatprep.subr.mxu0 %v406
    %1675 = vmatpush1.msra.mxu0 %v405
    %1676 = vmatprep.subr.mxu0 %v410
    %1677 = vmatpush1.msra.mxu0 %v409
    %1678 = vmatprep.subr.mxu0 %v414
    %1679 = vmatpush1.msra.mxu0 %v413
    %1680 = vmatprep.subr.mxu0 %v418
    %1681 = vmatpush1.msra.mxu0 %v417
    %1682 = vmatprep.subr.mxu0 %v422
    %1683 = vmatpush1.msra.mxu0 %v421
    %1684 = vmatprep.subr.mxu0 %v426
    %1685 = vmatpush1.msra.mxu0 %v425
    %1686 = vmatprep.subr.mxu0 %v430
    %1687 = vmatpush1.msra.mxu0 %v429
    %1688 = vmatprep.subr.mxu0 %v434
    %1689 = vmatpush1.msra.mxu0 %v433
    %1690 = vmatprep.mubr.f32.mxu0 %v1623
    %1691 = vmatmul.mubr.f32.gmra.mrb[0].mxu0 %v1622
    %v1692 = vpop.f32.mrb[0].mxu0
    %v1693 = vadd.f32 0.0, %v1692
    %v1694 = vpop.f32.mrb[0].mxu0
    %v1695 = vadd.f32 0.0, %v1694
    %1696 = vdwg.mxu0
    %1697 = vmatprep.subr.mxu0 %v312
    %1698 = vmatpush1.msra.mxu0 %v311
    %1699 = vmatprep.subr.mxu0 %v316
    %1700 = vmatpush1.msra.mxu0 %v315
    %1701 = vmatprep.subr.mxu0 %v320
    %1702 = vmatpush1.msra.mxu0 %v319
    %1703 = vmatprep.subr.mxu0 %v324
    %1704 = vmatpush1.msra.mxu0 %v323
    %1705 = vmatprep.subr.mxu0 %v328
    %1706 = vmatpush1.msra.mxu0 %v327
    %1707 = vmatprep.subr.mxu0 %v332
    %1708 = vmatpush1.msra.mxu0 %v331
    %1709 = vmatprep.subr.mxu0 %v336
    %1710 = vmatpush1.msra.mxu0 %v335
    %1711 = vmatprep.subr.mxu0 %v340
    %1712 = vmatpush1.msra.mxu0 %v339
    %1713 = vmatprep.subr.mxu0 %v344
    %1714 = vmatpush1.msra.mxu0 %v343
    %1715 = vmatprep.subr.mxu0 %v348
    %1716 = vmatpush1.msra.mxu0 %v347
    %1717 = vmatprep.subr.mxu0 %v352
    %1718 = vmatpush1.msra.mxu0 %v351
    %1719 = vmatprep.subr.mxu0 %v356
    %1720 = vmatpush1.msra.mxu0 %v355
    %1721 = vmatprep.subr.mxu0 %v360
    %1722 = vmatpush1.msra.mxu0 %v359
    %1723 = vmatprep.subr.mxu0 %v364
    %1724 = vmatpush1.msra.mxu0 %v363
    %1725 = vmatprep.subr.mxu0 %v368
    %1726 = vmatpush1.msra.mxu0 %v367
    %1727 = vmatprep.subr.mxu0 %v372
    %1728 = vmatpush1.msra.mxu0 %v371
    %1729 = vmatprep.subr.mxu0 %v376
    %1730 = vmatpush1.msra.mxu0 %v375
    %1731 = vmatprep.subr.mxu0 %v380
    %1732 = vmatpush1.msra.mxu0 %v379
    %1733 = vmatprep.subr.mxu0 %v384
    %1734 = vmatpush1.msra.mxu0 %v383
    %1735 = vmatprep.subr.mxu0 %v388
    %1736 = vmatpush1.msra.mxu0 %v387
    %1737 = vmatprep.subr.mxu0 %v392
    %1738 = vmatpush1.msra.mxu0 %v391
    %1739 = vmatprep.subr.mxu0 %v396
    %1740 = vmatpush1.msra.mxu0 %v395
    %1741 = vmatprep.subr.mxu0 %v400
    %1742 = vmatpush1.msra.mxu0 %v399
    %1743 = vmatprep.subr.mxu0 %v404
    %1744 = vmatpush1.msra.mxu0 %v403
    %1745 = vmatprep.subr.mxu0 %v408
    %1746 = vmatpush1.msra.mxu0 %v407
    %1747 = vmatprep.subr.mxu0 %v412
    %1748 = vmatpush1.msra.mxu0 %v411
    %1749 = vmatprep.subr.mxu0 %v416
    %1750 = vmatpush1.msra.mxu0 %v415
    %1751 = vmatprep.subr.mxu0 %v420
    %1752 = vmatpush1.msra.mxu0 %v419
    %1753 = vmatprep.subr.mxu0 %v424
    %1754 = vmatpush1.msra.mxu0 %v423
    %1755 = vmatprep.subr.mxu0 %v428
    %1756 = vmatpush1.msra.mxu0 %v427
    %1757 = vmatprep.subr.mxu0 %v432
    %1758 = vmatpush1.msra.mxu0 %v431
    %1759 = vmatprep.subr.mxu0 %v436
    %1760 = vmatpush1.msra.mxu0 %v435
    %1761 = vmatprep.mubr.f32.mxu0 %v1623
    %1762 = vmatmul.mubr.f32.gmra.mrb[0].mxu0 %v1622
    %v1763 = vpop.f32.mrb[0].mxu0
    %v1764 = vadd.f32 0.0, %v1763
    %v1765 = vpop.f32.mrb[0].mxu0
    %v1766 = vadd.f32 0.0, %v1765
    %1767 = vdwg.mxu0
    %v1768 = vadd.f32 %v1616, %v1693
    %v1769 = vadd.f32 %v1617, %v1695
    %v1770 = vadd.f32 %v1618, %v1764
    %v1771 = vadd.f32 %v1619, %v1766
    %v1772 = vxor.u32 %v1768, 2147483648
    %v1773 = vmul.f32 %v1772, 1.442695
    %v1774 = vpow.pop %v1773
    %v1775 = vadd.f32 %v1774, 1.0
    %v1776 = vrcp.pop %v1775
    %v1777 = vmul.f32 1.0, %v1776
    %v1778 = vxor.u32 %v1769, 2147483648
    %v1779 = vmul.f32 %v1778, 1.442695
    %v1780 = vpow.pop %v1779
    %v1781 = vadd.f32 %v1780, 1.0
    %v1782 = vrcp.pop %v1781
    %v1783 = vmul.f32 1.0, %v1782
    %v1784 = vtanh.pop %v1770
    %v1785 = vxor.u32 %v1771, 2147483648
    %v1786 = vmul.f32 %v1785, 1.442695
    %v1787 = vpow.pop %v1786
    %v1788 = vadd.f32 %v1787, 1.0
    %v1789 = vrcp.pop %v1788
    %v1790 = vmul.f32 1.0, %v1789
    %v1792 = vrot.slane %v1606, 4
    %v1794 = vmul.f32 %v1783, %v1792
    %v1795 = vmul.f32 %v1777, %v1784
    %v1796 = vadd.f32 %v1794, %v1795
    %v1797 = vtanh.pop %v1796
    %v1798 = vmul.f32 %v1790, %v1797
    %1799 = vst [vmem:[#allocation3 + $0x18] sm:$0xf] %v1798
    %v1800 = vld [vmem:[#allocation2 + $0x60] sm:$0xf0]
    %v1801 = vld [vmem:[#allocation2 + $0x68] sm:$0xf0]
    %v1802 = vld [vmem:[#allocation2 + $0x70] sm:$0xf0]
    %v1803 = vld [vmem:[#allocation2 + $0x78] sm:$0xf0]
    %v1804 = vmul.f32 %v1798, %v443
    %v1805 = vmul.f32 %v1798, %v444
    %v1806 = vadd.f32 %v1800, %v638
    %v1807 = vadd.f32 %v1801, %v437
    %v1808 = vadd.f32 %v1802, %v639
    %v1809 = vadd.f32 %v1803, %v438
    %1810 = vmatprep.subr.mxu0 %v310
    %1811 = vmatpush1.msra.mxu0 %v309
    %1812 = vmatprep.subr.mxu0 %v314
    %1813 = vmatpush1.msra.mxu0 %v313
    %1814 = vmatprep.subr.mxu0 %v318
    %1815 = vmatpush1.msra.mxu0 %v317
    %1816 = vmatprep.subr.mxu0 %v322
    %1817 = vmatpush1.msra.mxu0 %v321
    %1818 = vmatprep.subr.mxu0 %v326
    %1819 = vmatpush1.msra.mxu0 %v325
    %1820 = vmatprep.subr.mxu0 %v330
    %1821 = vmatpush1.msra.mxu0 %v329
    %1822 = vmatprep.subr.mxu0 %v334
    %1823 = vmatpush1.msra.mxu0 %v333
    %1824 = vmatprep.subr.mxu0 %v338
    %1825 = vmatpush1.msra.mxu0 %v337
    %1826 = vmatprep.subr.mxu0 %v342
    %1827 = vmatpush1.msra.mxu0 %v341
    %1828 = vmatprep.subr.mxu0 %v346
    %1829 = vmatpush1.msra.mxu0 %v345
    %1830 = vmatprep.subr.mxu0 %v350
    %1831 = vmatpush1.msra.mxu0 %v349
    %1832 = vmatprep.subr.mxu0 %v354
    %1833 = vmatpush1.msra.mxu0 %v353
    %1834 = vmatprep.subr.mxu0 %v358
    %1835 = vmatpush1.msra.mxu0 %v357
    %1836 = vmatprep.subr.mxu0 %v362
    %1837 = vmatpush1.msra.mxu0 %v361
    %1838 = vmatprep.subr.mxu0 %v366
    %1839 = vmatpush1.msra.mxu0 %v365
    %1840 = vmatprep.subr.mxu0 %v370
    %1841 = vmatpush1.msra.mxu0 %v369
    %1842 = vmatprep.subr.mxu0 %v374
    %1843 = vmatpush1.msra.mxu0 %v373
    %1844 = vmatprep.subr.mxu0 %v378
    %1845 = vmatpush1.msra.mxu0 %v377
    %1846 = vmatprep.subr.mxu0 %v382
    %1847 = vmatpush1.msra.mxu0 %v381
    %1848 = vmatprep.subr.mxu0 %v386
    %1849 = vmatpush1.msra.mxu0 %v385
    %1850 = vmatprep.subr.mxu0 %v390
    %1851 = vmatpush1.msra.mxu0 %v389
    %1852 = vmatprep.subr.mxu0 %v394
    %1853 = vmatpush1.msra.mxu0 %v393
    %1854 = vmatprep.subr.mxu0 %v398
    %1855 = vmatpush1.msra.mxu0 %v397
    %1856 = vmatprep.subr.mxu0 %v402
    %1857 = vmatpush1.msra.mxu0 %v401
    %1858 = vmatprep.subr.mxu0 %v406
    %1859 = vmatpush1.msra.mxu0 %v405
    %1860 = vmatprep.subr.mxu0 %v410
    %1861 = vmatpush1.msra.mxu0 %v409
    %1862 = vmatprep.subr.mxu0 %v414
    %1863 = vmatpush1.msra.mxu0 %v413
    %1864 = vmatprep.subr.mxu0 %v418
    %1865 = vmatpush1.msra.mxu0 %v417
    %1866 = vmatprep.subr.mxu0 %v422
    %1867 = vmatpush1.msra.mxu0 %v421
    %1868 = vmatprep.subr.mxu0 %v426
    %1869 = vmatpush1.msra.mxu0 %v425
    %1870 = vmatprep.subr.mxu0 %v430
    %1871 = vmatpush1.msra.mxu0 %v429
    %1872 = vmatprep.subr.mxu0 %v434
    %1873 = vmatpush1.msra.mxu0 %v433
    %1874 = vmatprep.mubr.f32.mxu0 %v1805
    %1875 = vmatmul.mubr.f32.gmra.mrb[0].mxu0 %v1804
    %v1876 = vpop.f32.mrb[0].mxu0
    %v1877 = vadd.f32 0.0, %v1876
    %v1878 = vpop.f32.mrb[0].mxu0
    %v1879 = vadd.f32 0.0, %v1878
    %1880 = vdwg.mxu0
    %1881 = vmatprep.subr.mxu0 %v312
    %1882 = vmatpush1.msra.mxu0 %v311
    %1883 = vmatprep.subr.mxu0 %v316
    %1884 = vmatpush1.msra.mxu0 %v315
    %1885 = vmatprep.subr.mxu0 %v320
    %1886 = vmatpush1.msra.mxu0 %v319
    %1887 = vmatprep.subr.mxu0 %v324
    %1888 = vmatpush1.msra.mxu0 %v323
    %1889 = vmatprep.subr.mxu0 %v328
    %1890 = vmatpush1.msra.mxu0 %v327
    %1891 = vmatprep.subr.mxu0 %v332
    %1892 = vmatpush1.msra.mxu0 %v331
    %1893 = vmatprep.subr.mxu0 %v336
    %1894 = vmatpush1.msra.mxu0 %v335
    %1895 = vmatprep.subr.mxu0 %v340
    %1896 = vmatpush1.msra.mxu0 %v339
    %1897 = vmatprep.subr.mxu0 %v344
    %1898 = vmatpush1.msra.mxu0 %v343
    %1899 = vmatprep.subr.mxu0 %v348
    %1900 = vmatpush1.msra.mxu0 %v347
    %1901 = vmatprep.subr.mxu0 %v352
    %1902 = vmatpush1.msra.mxu0 %v351
    %1903 = vmatprep.subr.mxu0 %v356
    %1904 = vmatpush1.msra.mxu0 %v355
    %1905 = vmatprep.subr.mxu0 %v360
    %1906 = vmatpush1.msra.mxu0 %v359
    %1907 = vmatprep.subr.mxu0 %v364
    %1908 = vmatpush1.msra.mxu0 %v363
    %1909 = vmatprep.subr.mxu0 %v368
    %1910 = vmatpush1.msra.mxu0 %v367
    %1911 = vmatprep.subr.mxu0 %v372
    %1912 = vmatpush1.msra.mxu0 %v371
    %1913 = vmatprep.subr.mxu0 %v376
    %1914 = vmatpush1.msra.mxu0 %v375
    %1915 = vmatprep.subr.mxu0 %v380
    %1916 = vmatpush1.msra.mxu0 %v379
    %1917 = vmatprep.subr.mxu0 %v384
    %1918 = vmatpush1.msra.mxu0 %v383
    %1919 = vmatprep.subr.mxu0 %v388
    %1920 = vmatpush1.msra.mxu0 %v387
    %1921 = vmatprep.subr.mxu0 %v392
    %1922 = vmatpush1.msra.mxu0 %v391
    %1923 = vmatprep.subr.mxu0 %v396
    %1924 = vmatpush1.msra.mxu0 %v395
    %1925 = vmatprep.subr.mxu0 %v400
    %1926 = vmatpush1.msra.mxu0 %v399
    %1927 = vmatprep.subr.mxu0 %v404
    %1928 = vmatpush1.msra.mxu0 %v403
    %1929 = vmatprep.subr.mxu0 %v408
    %1930 = vmatpush1.msra.mxu0 %v407
    %1931 = vmatprep.subr.mxu0 %v412
    %1932 = vmatpush1.msra.mxu0 %v411
    %1933 = vmatprep.subr.mxu0 %v416
    %1934 = vmatpush1.msra.mxu0 %v415
    %1935 = vmatprep.subr.mxu0 %v420
    %1936 = vmatpush1.msra.mxu0 %v419
    %1937 = vmatprep.subr.mxu0 %v424
    %1938 = vmatpush1.msra.mxu0 %v423
    %1939 = vmatprep.subr.mxu0 %v428
    %1940 = vmatpush1.msra.mxu0 %v427
    %1941 = vmatprep.subr.mxu0 %v432
    %1942 = vmatpush1.msra.mxu0 %v431
    %1943 = vmatprep.subr.mxu0 %v436
    %1944 = vmatpush1.msra.mxu0 %v435
    %1945 = vmatprep.mubr.f32.mxu0 %v1805
    %1946 = vmatmul.mubr.f32.gmra.mrb[0].mxu0 %v1804
    %v1947 = vpop.f32.mrb[0].mxu0
    %v1948 = vadd.f32 0.0, %v1947
    %v1949 = vpop.f32.mrb[0].mxu0
    %v1950 = vadd.f32 0.0, %v1949
    %1951 = vdwg.mxu0
    %v1956 = vrot.slane %v1877, 4
    %v1957 = vrot.slane %v1879, 4
    %v1958 = vrot.slane %v1948, 4
    %v1959 = vrot.slane %v1950, 4
    %v1964 = vadd.f32 %v1806, %v1956
    %v1965 = vadd.f32 %v1807, %v1957
    %v1966 = vadd.f32 %v1808, %v1958
    %v1967 = vadd.f32 %v1809, %v1959
    %v1968 = vxor.u32 %v1964, 2147483648
    %v1969 = vmul.f32 %v1968, 1.442695
    %v1970 = vpow.pop %v1969
    %v1971 = vadd.f32 %v1970, 1.0
    %v1972 = vrcp.pop %v1971
    %v1973 = vmul.f32 1.0, %v1972
    %v1974 = vxor.u32 %v1965, 2147483648
    %v1975 = vmul.f32 %v1974, 1.442695
    %v1976 = vpow.pop %v1975
    %v1977 = vadd.f32 %v1976, 1.0
    %v1978 = vrcp.pop %v1977
    %v1979 = vmul.f32 1.0, %v1978
    %v1980 = vtanh.pop %v1966
    %v1981 = vxor.u32 %v1967, 2147483648
    %v1982 = vmul.f32 %v1981, 1.442695
    %v1983 = vpow.pop %v1982
    %v1984 = vadd.f32 %v1983, 1.0
    %v1985 = vrcp.pop %v1984
    %v1986 = vmul.f32 1.0, %v1985
    %v1988 = vrot.slane %v1796, 4
    %v1990 = vmul.f32 %v1979, %v1988
    %v1991 = vmul.f32 %v1973, %v1980
    %v1992 = vadd.f32 %v1990, %v1991
    %v1993 = vtanh.pop %v1992
    %v1994 = vmul.f32 %v1986, %v1993
    %1995 = vst [vmem:[#allocation3 + $0x18] sm:$0xf0] %v1994
    %v1996 = vld [vmem:[%s4] sm:$0xf]
    %v1998 = vrot.slane %v1994, 4
    %vm1999 = vcmask 31744
    %v2001 = vsel %vm1999, %v1996, 0
    %v2003 = vsel %vm102, %v1998, 0
    %2005 = vmatprep.subr.mxu0 0.0
    %2006 = vmatpush1.msra.mxu0 %v2003
    %2007 = vmatprep.subr.mxu0 0.0
    %2008 = vmatpush1.msra.mxu0 0.0
    %2009 = vmatprep.subr.mxu0 0.0
    %2010 = vmatpush1.msra.mxu0 0.0
    %2011 = vmatprep.subr.mxu0 0.0
    %2012 = vmatpush1.msra.mxu0 0.0
    %2013 = vmatprep.subr.mxu0 0.0
    %2014 = vmatpush1.msra.mxu0 0.0
    %2015 = vmatprep.subr.mxu0 0.0
    %2016 = vmatpush1.msra.mxu0 0.0
    %2017 = vmatprep.subr.mxu0 0.0
    %2018 = vmatpush1.msra.mxu0 0.0
    %2019 = vmatprep.subr.mxu0 0.0
    %2020 = vmatpush1.msra.mxu0 0.0
    %2021 = vmatprep.subr.mxu0 0.0
    %2022 = vmatpush1.msra.mxu0 0.0
    %2023 = vmatprep.subr.mxu0 0.0
    %2024 = vmatpush1.msra.mxu0 0.0
    %2025 = vmatprep.subr.mxu0 0.0
    %2026 = vmatpush1.msra.mxu0 0.0
    %2027 = vmatprep.subr.mxu0 0.0
    %2028 = vmatpush1.msra.mxu0 0.0
    %2029 = vmatprep.subr.mxu0 0.0
    %2030 = vmatpush1.msra.mxu0 0.0
    %2031 = vmatprep.subr.mxu0 0.0
    %2032 = vmatpush1.msra.mxu0 0.0
    %2033 = vmatprep.subr.mxu0 0.0
    %2034 = vmatpush1.msra.mxu0 0.0
    %2035 = vmatprep.subr.mxu0 0.0
    %2036 = vmatpush1.msra.mxu0 0.0
    %2037 = vmatprep.subr.mxu0 0.0
    %2038 = vmatpush1.msra.mxu0 0.0
    %2039 = vmatprep.subr.mxu0 0.0
    %2040 = vmatpush1.msra.mxu0 0.0
    %2041 = vmatprep.subr.mxu0 0.0
    %2042 = vmatpush1.msra.mxu0 0.0
    %2043 = vmatprep.subr.mxu0 0.0
    %2044 = vmatpush1.msra.mxu0 0.0
    %2045 = vmatprep.subr.mxu0 0.0
    %2046 = vmatpush1.msra.mxu0 0.0
    %2047 = vmatprep.subr.mxu0 0.0
    %2048 = vmatpush1.msra.mxu0 0.0
    %2049 = vmatprep.subr.mxu0 0.0
    %2050 = vmatpush1.msra.mxu0 0.0
    %2051 = vmatprep.subr.mxu0 0.0
    %2052 = vmatpush1.msra.mxu0 0.0
    %2053 = vmatprep.subr.mxu0 0.0
    %2054 = vmatpush1.msra.mxu0 0.0
    %2055 = vmatprep.subr.mxu0 0.0
    %2056 = vmatpush1.msra.mxu0 0.0
    %2057 = vmatprep.subr.mxu0 0.0
    %2058 = vmatpush1.msra.mxu0 0.0
    %2059 = vmatprep.subr.mxu0 0.0
    %2060 = vmatpush1.msra.mxu0 0.0
    %2061 = vmatprep.subr.mxu0 0.0
    %2062 = vmatpush1.msra.mxu0 0.0
    %2063 = vmatprep.subr.mxu0 0.0
    %2064 = vmatpush1.msra.mxu0 0.0
    %2065 = vmatprep.subr.mxu0 0.0
    %2066 = vmatpush1.msra.mxu0 0.0
    %2067 = vmatprep.subr.mxu0 0.0
    %2068 = vmatpush1.msra.mxu0 0.0
    %2069 = vmatprep.mubr.f32.mxu0 0.0
    %2070 = vmatmul.mubr.f32.gmra.mrb[0].mxu0 %v2001
    %v2071 = vpop.f32.mrb[0].mxu0
    %v2072 = vadd.f32 0.0, %v2071
    %v2073 = vpop.f32.mrb[0].mxu0
    %2074 = vdwg.mxu0
    %v2075 = vld [vmem:[%s5] sm:$0xff]
    %v2076 = vld [vmem:[%s5 + $0x8] sm:$0xff]
    %v2077 = vld [vmem:[%s5 + $0x10] sm:$0xff]
    %v2078 = vld [vmem:[%s5 + $0x18] sm:$0xff]
    %v2079 = vld [vmem:[#allocation3] sm:$0xff]
    %v2080 = vld [vmem:[#allocation3 + $0x8] sm:$0xff]
    %v2081 = vld [vmem:[#allocation3 + $0x10] sm:$0xff]
    %v2082 = vld [vmem:[#allocation3 + $0x18] sm:$0xff]
    %vm2083 = vcmask 261120
    %v2085 = vsel %vm2083, %v2075, 0
    %v2088 = vsel %vm2083, %v2076, 0
    %v2091 = vsel %vm2083, %v2077, 0
    %v2094 = vsel %vm2083, %v2078, 0
    %2096 = vmatprep.subr.mxu0 0.0
    %2097 = vmatpush1.msra.mxu0 %v2079
    %2098 = vmatprep.subr.mxu0 0.0
    %2099 = vmatpush1.msra.mxu0 %v2080
    %2100 = vmatprep.subr.mxu0 0.0
    %2101 = vmatpush1.msra.mxu0 %v2081
    %2102 = vmatprep.subr.mxu0 0.0
    %2103 = vmatpush1.msra.mxu0 %v2082
    %2104 = vmatprep.subr.mxu0 0.0
    %2105 = vmatpush1.msra.mxu0 0.0
    %2106 = vmatprep.subr.mxu0 0.0
    %2107 = vmatpush1.msra.mxu0 0.0
    %2108 = vmatprep.subr.mxu0 0.0
    %2109 = vmatpush1.msra.mxu0 0.0
    %2110 = vmatprep.subr.mxu0 0.0
    %2111 = vmatpush1.msra.mxu0 0.0
    %2112 = vmatprep.subr.mxu0 0.0
    %2113 = vmatpush1.msra.mxu0 0.0
    %2114 = vmatprep.subr.mxu0 0.0
    %2115 = vmatpush1.msra.mxu0 0.0
    %2116 = vmatprep.subr.mxu0 0.0
    %2117 = vmatpush1.msra.mxu0 0.0
    %2118 = vmatprep.subr.mxu0 0.0
    %2119 = vmatpush1.msra.mxu0 0.0
    %2120 = vmatprep.subr.mxu0 0.0
    %2121 = vmatpush1.msra.mxu0 0.0
    %2122 = vmatprep.subr.mxu0 0.0
    %2123 = vmatpush1.msra.mxu0 0.0
    %2124 = vmatprep.subr.mxu0 0.0
    %2125 = vmatpush1.msra.mxu0 0.0
    %2126 = vmatprep.subr.mxu0 0.0
    %2127 = vmatpush1.msra.mxu0 0.0
    %2128 = vmatprep.subr.mxu0 0.0
    %2129 = vmatpush1.msra.mxu0 0.0
    %2130 = vmatprep.subr.mxu0 0.0
    %2131 = vmatpush1.msra.mxu0 0.0
    %2132 = vmatprep.subr.mxu0 0.0
    %2133 = vmatpush1.msra.mxu0 0.0
    %2134 = vmatprep.subr.mxu0 0.0
    %2135 = vmatpush1.msra.mxu0 0.0
    %2136 = vmatprep.subr.mxu0 0.0
    %2137 = vmatpush1.msra.mxu0 0.0
    %2138 = vmatprep.subr.mxu0 0.0
    %2139 = vmatpush1.msra.mxu0 0.0
    %2140 = vmatprep.subr.mxu0 0.0
    %2141 = vmatpush1.msra.mxu0 0.0
    %2142 = vmatprep.subr.mxu0 0.0
    %2143 = vmatpush1.msra.mxu0 0.0
    %2144 = vmatprep.subr.mxu0 0.0
    %2145 = vmatpush1.msra.mxu0 0.0
    %2146 = vmatprep.subr.mxu0 0.0
    %2147 = vmatpush1.msra.mxu0 0.0
    %2148 = vmatprep.subr.mxu0 0.0
    %2149 = vmatpush1.msra.mxu0 0.0
    %2150 = vmatprep.subr.mxu0 0.0
    %2151 = vmatpush1.msra.mxu0 0.0
    %2152 = vmatprep.subr.mxu0 0.0
    %2153 = vmatpush1.msra.mxu0 0.0
    %2154 = vmatprep.subr.mxu0 0.0
    %2155 = vmatpush1.msra.mxu0 0.0
    %2156 = vmatprep.subr.mxu0 0.0
    %2157 = vmatpush1.msra.mxu0 0.0
    %2158 = vmatprep.subr.mxu0 0.0
    %2159 = vmatpush1.msra.mxu0 0.0
    %2160 = vmatprep.mubr.f32.mxu0 0.0
    %2161 = vmatmul.mubr.f32.gmra.mrb[0].mxu0 %v2085
    %v2162 = vpop.f32.mrb[0].mxu0
    %v2163 = vadd.f32 0.0, %v2162
    %v2164 = vpop.f32.mrb[0].mxu0
    %2165 = vmatprep.mubr.f32.mxu0 0.0
    %2166 = vmatmul.mubr.f32.gmra.mrb[0].mxu0 %v2088
    %v2167 = vpop.f32.mrb[0].mxu0
    %v2168 = vadd.f32 0.0, %v2167
    %v2169 = vpop.f32.mrb[0].mxu0
    %2170 = vmatprep.mubr.f32.mxu0 0.0
    %2171 = vmatmul.mubr.f32.gmra.mrb[0].mxu0 %v2091
    %v2172 = vpop.f32.mrb[0].mxu0
    %v2173 = vadd.f32 0.0, %v2172
    %v2174 = vpop.f32.mrb[0].mxu0
    %2175 = vmatprep.mubr.f32.mxu0 0.0
    %2176 = vmatmul.mubr.f32.gmra.mrb[0].mxu0 %v2094
    %v2177 = vpop.f32.mrb[0].mxu0
    %v2178 = vadd.f32 0.0, %v2177
    %v2179 = vpop.f32.mrb[0].mxu0
    %2180 = vdwg.mxu0
    %v2183 = vunpack.c.l.s4 1966171168
    %v2184 = vunpack.c.0.s8 %v2183
    %v2185 = vlaneseq
    %v2186 = vshrl.u32 %v2185, 7
    %v2187 = vsub.s32 %v2184, %v2186
    %v2188 = vrot.slane %v2072, %v2187
    %v2189 = vcombine.high %v2188, %v2188
    %v2191 = vunpack.c.l.s4 1966171168
    %v2192 = vunpack.c.0.s8 %v2191
    %v2193 = vlaneseq
    %v2194 = vshrl.u32 %v2193, 7
    %v2195 = vsub.s32 %v2192, %v2194
    %v2196 = vrot.slane %v2188, %v2195
    %v2198 = vunpack.c.l.s4 1966171168
    %v2199 = vunpack.c.0.s8 %v2198
    %v2200 = vlaneseq
    %v2201 = vshrl.u32 %v2200, 7
    %v2202 = vsub.s32 %v2199, %v2201
    %v2203 = vrot.slane %v2189, %v2202
    %v2204 = vlaneseq
    %v2205 = vshrl.u32 %v2204, 7
    %v2206 = vsub.s32 0, %v2205
    %v2207 = vrot.slane %v2196, %v2206
    %v2208 = vlaneseq
    %v2209 = vshrl.u32 %v2208, 7
    %v2210 = vsub.s32 0, %v2209
    %v2211 = vrot.slane %v2203, %v2210
    %v2214 = vmul.f32 %v2163, %v2207
    %v2215 = vmul.f32 %v2168, %v2211
    %v2216 = vcombine.high %v2196, %v2196
    %v2217 = vcombine.high %v2203, %v2203
    %v2218 = vlaneseq
    %v2219 = vshrl.u32 %v2218, 7
    %v2220 = vsub.s32 0, %v2219
    %v2221 = vrot.slane %v2216, %v2220
    %v2222 = vlaneseq
    %v2223 = vshrl.u32 %v2222, 7
    %v2224 = vsub.s32 0, %v2223
    %v2225 = vrot.slane %v2217, %v2224
    %v2228 = vmul.f32 %v2173, %v2221
    %v2229 = vmul.f32 %v2178, %v2225
    %v2230 = vadd.f32 %v2214, %v2228
    %v2231 = vadd.f32 %v2215, %v2229
    %2232 = vadd.xlane.f32.xlu0 %v2230
    %v2233 = vpop.xlane.xlu0 %2232
    %2234 = vadd.xlane.f32.xlu0 %v2231
    %v2235 = vpop.xlane.xlu0 %2234
    %v2238 = vlaneseq
    %v2239 = vand.u32 %v2238, 127
    %v2240 = vlaneseq
    %v2241 = vshrl.u32 %v2240, 7
    %v2242 = vsub.s32 %v2239, %v2241
    %v2243 = vrot.slane %v2233, %v2242
    %v2244 = vlaneseq
    %v2245 = vshrl.u32 %v2244, 7
    %v2246 = vsub.s32 %v2239, %v2245
    %v2247 = vrot.slane %v2235, %v2246
    %vm2248 = vcmask 1041409
    %v2249 = vsel %vm2248, %v2247, %v2243
    %vm2251 = vcmask 58368
    %v2252 = vsel %vm2251, %v2249, -inf
    %2253 = vmax.xlane.f32.xlu0 %v2252
    %v2254 = vpop.xlane.xlu0 %2253
    %v2256 = vlaneseq
    %v2257 = vshrl.u32 %v2256, 7
    %v2258 = vsub.s32 0, %v2257
    %v2259 = vrot.slane %v2254, %v2258
    %v2260 = vlaneseq
    %v2261 = vshrl.u32 %v2260, 7
    %v2262 = vsub.s32 1, %v2261
    %v2263 = vrot.slane %v2254, %v2262
    %v2266 = vsub.f32 %v2233, %v2259
    %v2267 = vsub.f32 %v2235, %v2263
    %v2268 = vmul.f32 %v2266, 1.442695
    %v2269 = vpow.pop %v2268
    %v2270 = vmul.f32 %v2267, 1.442695
    %v2271 = vpow.pop %v2270
    %2274 = vset.pattern.permute.xlu0 0
    %2275 = vperm.xlu0 %2274, %v2269
    %v2276 = vpop.permute.xlu0 %2275
    %2277 = vset.pattern.permute.xlu0 0
    %2278 = vperm.xlu0 %2277, %v2271
    %v2279 = vpop.permute.xlu0 %2278
    %v2280 = vlaneseq
    %v2281 = vshrl.u32 %v2280, 7
    %v2282 = vsub.s32 %v2239, %v2281
    %v2283 = vrot.slane %v2276, %v2282
    %v2284 = vlaneseq
    %v2285 = vshrl.u32 %v2284, 7
    %v2286 = vsub.s32 %v2239, %v2285
    %v2287 = vrot.slane %v2279, %v2286
    %v2288 = vsel %vm2248, %v2287, %v2283
    %v2290 = vsel %vm2251, %v2288, 0.0
    %2291 = vadd.xlane.f32.xlu0 %v2290
    %v2292 = vpop.xlane.xlu0 %2291
    %v2294 = vlaneseq
    %v2295 = vshrl.u32 %v2294, 7
    %v2296 = vsub.s32 0, %v2295
    %v2297 = vrot.slane %v2292, %v2296
    %v2298 = vlaneseq
    %v2299 = vshrl.u32 %v2298, 7
    %v2300 = vsub.s32 1, %v2299
    %v2301 = vrot.slane %v2292, %v2300
    %v2304 = vrcp.pop %v2297
    %v2305 = vmul.f32 %v2269, %v2304
    %v2306 = vrcp.pop %v2301
    %v2307 = vmul.f32 %v2271, %v2306
    %2309 = vset.pattern.permute.xlu0 0
    %2310 = vperm.xlu0 %2309, %v2305
    %v2311 = vpop.permute.xlu0 %2310
    %2314 = vset.pattern.permute.xlu0 0
    %2315 = vperm.xlu0 %2314, %v2307
    %v2316 = vpop.permute.xlu0 %2315
    %v2318 = vmul.f32 %v2163, %v2311
    %v2319 = vmul.f32 %v2168, %v2316
    %v2320 = vrot.slane %v2318, 4
    %v2321 = vadd.f32 %v2318, %v2320
    %v2322 = vrot.slane %v2321, 2
    %v2323 = vadd.f32 %v2321, %v2322
    %v2324 = vrot.slane %v2323, 1
    %v2325 = vadd.f32 %v2323, %v2324
    %v2326 = vrot.slane %v2319, 4
    %v2327 = vadd.f32 %v2319, %v2326
    %v2328 = vrot.slane %v2327, 2
    %v2329 = vadd.f32 %v2327, %v2328
    %v2330 = vrot.slane %v2329, 1
    %v2331 = vadd.f32 %v2329, %v2330
    %v2332 = vmul.f32 %v2173, %v2311
    %v2333 = vmul.f32 %v2178, %v2316
    %v2334 = vrot.slane %v2332, 4
    %v2335 = vadd.f32 %v2332, %v2334
    %v2336 = vrot.slane %v2335, 2
    %v2337 = vadd.f32 %v2335, %v2336
    %v2338 = vrot.slane %v2337, 1
    %v2339 = vadd.f32 %v2337, %v2338
    %v2340 = vrot.slane %v2333, 4
    %v2341 = vadd.f32 %v2333, %v2340
    %v2342 = vrot.slane %v2341, 2
    %v2343 = vadd.f32 %v2341, %v2342
    %v2344 = vrot.slane %v2343, 1
    %v2345 = vadd.f32 %v2343, %v2344
    %v2348 = vsel %vm2248, %v2331, %v2325
    %v2352 = vsel %vm2248, %v2345, %v2339
    %v2354 = vld [vmem:[%s6] sm:$0xff]
    %v2355 = vld [vmem:[%s6 + $0x8] sm:$0xff]
    %v2356 = vld [vmem:[%s6 + $0x10] sm:$0xff]
    %v2357 = vld [vmem:[%s6 + $0x18] sm:$0xff]
    %v2358 = vld [vmem:[%s6 + $0x20] sm:$0xff]
    %v2359 = vld [vmem:[%s6 + $0x28] sm:$0xff]
    %v2360 = vld [vmem:[%s6 + $0x30] sm:$0xff]
    %v2361 = vld [vmem:[%s6 + $0x38] sm:$0xff]
    %v2362 = vld [vmem:[%s6 + $0x40] sm:$0xff]
    %v2363 = vld [vmem:[%s6 + $0x48] sm:$0xff]
    %v2364 = vld [vmem:[%s6 + $0x50] sm:$0xff]
    %v2365 = vld [vmem:[%s6 + $0x58] sm:$0xff]
    %v2366 = vld [vmem:[%s6 + $0x60] sm:$0xff]
    %v2367 = vld [vmem:[%s6 + $0x68] sm:$0xff]
    %v2368 = vld [vmem:[%s6 + $0x70] sm:$0xff]
    %v2369 = vld [vmem:[%s6 + $0x78] sm:$0xff]
    %v2370 = vld [vmem:[%s6 + $0x80] sm:$0xff]
    %v2371 = vld [vmem:[%s6 + $0x88] sm:$0xff]
    %v2372 = vld [vmem:[%s6 + $0x90] sm:$0xff]
    %v2373 = vld [vmem:[%s6 + $0x98] sm:$0xff]
    %v2374 = vld [vmem:[%s6 + $0xa0] sm:$0xff]
    %v2375 = vld [vmem:[%s6 + $0xa8] sm:$0xff]
    %v2376 = vld [vmem:[%s6 + $0xb0] sm:$0xff]
    %v2377 = vld [vmem:[%s6 + $0xb8] sm:$0xff]
    %v2378 = vld [vmem:[%s6 + $0xc0] sm:$0xff]
    %v2379 = vld [vmem:[%s6 + $0xc8] sm:$0xff]
    %v2380 = vld [vmem:[%s6 + $0xd0] sm:$0xff]
    %v2381 = vld [vmem:[%s6 + $0xd8] sm:$0xff]
    %v2382 = vld [vmem:[%s6 + $0xe0] sm:$0xff]
    %v2383 = vld [vmem:[%s6 + $0xe8] sm:$0xff]
    %v2384 = vld [vmem:[%s6 + $0xf0] sm:$0xff]
    %v2385 = vld [vmem:[%s6 + $0xf8] sm:$0xff]
    %v2386 = vld [vmem:[%s7] sm:$0x1]
    %v2388 = vlaneseq
    %v2389 = vshrl.u32 %v2388, 7
    %v2390 = vsub.s32 0, %v2389
    %v2391 = vrot.slane %v2386, %v2390
    %2393 = vmatprep.subr.mxu0 0.0
    %2394 = vmatpush1.msra.mxu0 %v2354
    %2395 = vmatprep.subr.mxu0 0.0
    %2396 = vmatpush1.msra.mxu0 %v2355
    %2397 = vmatprep.subr.mxu0 0.0
    %2398 = vmatpush1.msra.mxu0 %v2356
    %2399 = vmatprep.subr.mxu0 0.0
    %2400 = vmatpush1.msra.mxu0 %v2357
    %2401 = vmatprep.subr.mxu0 0.0
    %2402 = vmatpush1.msra.mxu0 %v2358
    %2403 = vmatprep.subr.mxu0 0.0
    %2404 = vmatpush1.msra.mxu0 %v2359
    %2405 = vmatprep.subr.mxu0 0.0
    %2406 = vmatpush1.msra.mxu0 %v2360
    %2407 = vmatprep.subr.mxu0 0.0
    %2408 = vmatpush1.msra.mxu0 %v2361
    %2409 = vmatprep.subr.mxu0 0.0
    %2410 = vmatpush1.msra.mxu0 %v2362
    %2411 = vmatprep.subr.mxu0 0.0
    %2412 = vmatpush1.msra.mxu0 %v2363
    %2413 = vmatprep.subr.mxu0 0.0
    %2414 = vmatpush1.msra.mxu0 %v2364
    %2415 = vmatprep.subr.mxu0 0.0
    %2416 = vmatpush1.msra.mxu0 %v2365
    %2417 = vmatprep.subr.mxu0 0.0
    %2418 = vmatpush1.msra.mxu0 %v2366
    %2419 = vmatprep.subr.mxu0 0.0
    %2420 = vmatpush1.msra.mxu0 %v2367
    %2421 = vmatprep.subr.mxu0 0.0
    %2422 = vmatpush1.msra.mxu0 %v2368
    %2423 = vmatprep.subr.mxu0 0.0
    %2424 = vmatpush1.msra.mxu0 %v2369
    %2425 = vmatprep.subr.mxu0 0.0
    %2426 = vmatpush1.msra.mxu0 %v2370
    %2427 = vmatprep.subr.mxu0 0.0
    %2428 = vmatpush1.msra.mxu0 %v2371
    %2429 = vmatprep.subr.mxu0 0.0
    %2430 = vmatpush1.msra.mxu0 %v2372
    %2431 = vmatprep.subr.mxu0 0.0
    %2432 = vmatpush1.msra.mxu0 %v2373
    %2433 = vmatprep.subr.mxu0 0.0
    %2434 = vmatpush1.msra.mxu0 %v2374
    %2435 = vmatprep.subr.mxu0 0.0
    %2436 = vmatpush1.msra.mxu0 %v2375
    %2437 = vmatprep.subr.mxu0 0.0
    %2438 = vmatpush1.msra.mxu0 %v2376
    %2439 = vmatprep.subr.mxu0 0.0
    %2440 = vmatpush1.msra.mxu0 %v2377
    %2441 = vmatprep.subr.mxu0 0.0
    %2442 = vmatpush1.msra.mxu0 %v2378
    %2443 = vmatprep.subr.mxu0 0.0
    %2444 = vmatpush1.msra.mxu0 %v2379
    %2445 = vmatprep.subr.mxu0 0.0
    %2446 = vmatpush1.msra.mxu0 %v2380
    %2447 = vmatprep.subr.mxu0 0.0
    %2448 = vmatpush1.msra.mxu0 %v2381
    %2449 = vmatprep.subr.mxu0 0.0
    %2450 = vmatpush1.msra.mxu0 %v2382
    %2451 = vmatprep.subr.mxu0 0.0
    %2452 = vmatpush1.msra.mxu0 %v2383
    %2453 = vmatprep.subr.mxu0 0.0
    %2454 = vmatpush1.msra.mxu0 %v2384
    %2455 = vmatprep.subr.mxu0 0.0
    %2456 = vmatpush1.msra.mxu0 %v2385
    %2457 = vmatprep.mubr.f32.mxu0 %v2352
    %2458 = vmatmul.mubr.f32.gmra.mrb[0].mxu0 %v2348
    %v2459 = vpop.f32.mrb[0].mxu0
    %v2460 = vadd.f32 %v2391, %v2459
    %v2461 = vpop.f32.mrb[0].mxu0
    %2462 = vdwg.mxu0
    %vm2463 = vcmask 9216
    %2464 = vst.msk [vmem:[#allocation4] sm:$0x3] %vm2463, %v2460
    %v2465 = vlaneseq
    %v2466 = vshrl.u32 %v2465, 7
    %v2467 = vsub.s32 %v2239, %v2466
    %v2468 = vrot.slane %v2311, %v2467
    %v2469 = vlaneseq
    %v2470 = vshrl.u32 %v2469, 7
    %v2471 = vsub.s32 %v2239, %v2470
    %v2472 = vrot.slane %v2316, %v2471
    %v2473 = vsel %vm2248, %v2472, %v2468
    %2475 = vst.msk [vmem:[#allocation6] sm:$0x3] %vm2251, %v2473
    // Predicated region
    $region34: #{bilstm_attention_forward.1} parent=1 // pred_check
      _
    $region35: #{bilstm_attention_forward.1} parent=1 // pred_check_branch
      %2477 = sbr.rel (0) target = $region37
    $region36: #{bilstm_attention_forward.1} parent=1 // pred_region
      %s2479 = ssub.s32 32, 32
      %2480 = vsyncadd [#allocation5], %s2479
      %s2482 = sshll.u32 [#allocation4], 4
      %s2483 = int_to_ptr.vmem [resolvable:$true] %s2482
      %2485 = dma.vmem_to_hbm [thread:$0]  %s2483, 32, %s8, [#allocation5]
    $region37: #{bilstm_attention_forward.1} parent=1 // pred_fallthru
      _
    // Predicated region
    $region38: #{bilstm_attention_forward.1} parent=1 // pred_check
      _
    $region39: #{bilstm_attention_forward.1} parent=1 // pred_check_branch
      %2487 = sbr.rel (0) target = $region41
    $region40: #{bilstm_attention_forward.1} parent=1 // pred_region
      %s2489 = ssub.s32 32, 32
      %2490 = vsyncadd [#allocation7], %s2489
      %s2492 = sshll.u32 [#allocation6], 4
      %s2493 = int_to_ptr.vmem [resolvable:$true] %s2492
      %2495 = dma.vmem_to_hbm [thread:$0]  %s2493, 32, %s9, [#allocation7]
    $region41: #{bilstm_attention_forward.1} parent=1 // pred_fallthru
      _
    // Predicated region
    $region42: #{bilstm_attention_forward.1} parent=1 // pred_check
      _
    $region43: #{bilstm_attention_forward.1} parent=1 // pred_check_branch
      %2497 = sbr.rel (0) target = $region45
    $region44: #{bilstm_attention_forward.1} parent=1 // pred_region
      %2498 = dma.done [#allocation5], 32
    $region45: #{bilstm_attention_forward.1} parent=1 // pred_fallthru
      _
    // Predicated region
    $region46: #{bilstm_attention_forward.1} parent=1 // pred_check
      _
    $region47: #{bilstm_attention_forward.1} parent=1 // pred_check_branch
      %2500 = sbr.rel (0) target = $region49
    $region48: #{bilstm_attention_forward.1} parent=1 // pred_region
      %2501 = dma.done [#allocation7], 32
    $region49: #{bilstm_attention_forward.1} parent=1 // pred_fallthru
      _
    %2502 = vsyncpa [#allocation5], 1
    %2503 = vsyncpa [#allocation7], 1

</llo_original>
